<compile_context>
chip_gen: v7x
topology: tpu7x:2x2x1
jax: 0.10.0
libtpu: 0.0.40
codegen_flags: <defaults>
</compile_context>

<pallas_src>
import functools

import numpy as np

import jax
import jax.numpy as jnp
from jax.experimental import pallas as pl
from jax.experimental.pallas import tpu as pltpu


_POOL_SHAPE = (2048, 128)            # 262,144 actions per kernel invocation
_POOL_SIZE = _POOL_SHAPE[0] * _POOL_SHAPE[1]


def _action_dtype(action_dims: int):
    """Narrowest store / D2H dtype that holds [0, action_dims)."""
    if action_dims <= 128:
        return jnp.int8
    if action_dims <= 32768:
        return jnp.int16
    return jnp.int32


def _random_action_kernel(seed_ref, out_ref, seed_out_ref, *, action_dims: int):
    """Fill out_ref with uniform random actions in [0, action_dims).

    seed_ref     : SMEM int32[1]  -- device-resident draw counter (input)
    out_ref      : VMEM [2048,128] int8/int16/int32 action pool (output)
    seed_out_ref : SMEM int32[1]  -- next draw counter (output, written in-kernel)
    """
    shape = out_ref.shape

    # Per-element flat index within the tile: (row << 7) | col, all in uint32.
    row = jax.lax.broadcasted_iota(jnp.uint32, shape, 0)
    col = jax.lax.broadcasted_iota(jnp.uint32, shape, 1)
    idx = (row << jnp.uint32(7)) | col

    # Global counter: disjoint ranges for consecutive seeds (scalar mul, cheap).
    seed = seed_ref[0].astype(jnp.uint32)
    x = seed * jnp.uint32(_POOL_SIZE) + idx

    # lowbias32 integer finalizer (VALU-only; 2 multiplies + 3 xor-shifts).
    x = x ^ (x >> jnp.uint32(16))
    x = x * jnp.uint32(0x7FEB352D)
    x = x ^ (x >> jnp.uint32(15))
    x = x * jnp.uint32(0x846CA68B)
    x = x ^ (x >> jnp.uint32(16))

    if action_dims & (action_dims - 1) == 0:
        # Power of two: exact, unbiased, 1 VALU op.
        actions = x & jnp.uint32(action_dims - 1)
    else:
        # Fixed-point scaling on the high 16 bits (no integer divide/mod on the
        # VPU).  Bias <= action_dims/2^16, negligible for a random policy.
        # TODO(synk): full 32-bit Lemire mul-high for exact uniformity.
        actions = ((x >> jnp.uint32(16)) * jnp.uint32(action_dims)) >> jnp.uint32(16)

    out_ref[...] = actions.astype(jnp.int32).astype(out_ref.dtype)

    # Advance the seed counter on-device, inside the same custom call.
    seed_out_ref[0] = seed_ref[0] + jnp.int32(1)


@functools.lru_cache(maxsize=None)
def _make_action_sampler(action_dims: int):
    """Build (once per action_dims) a jitted sampler: seed -> (actions, next_seed)."""
    out_dtype = _action_dtype(action_dims)
    kernel = functools.partial(_random_action_kernel, action_dims=action_dims)
    draw = pl.pallas_call(
        kernel,
        out_shape=(
            jax.ShapeDtypeStruct(_POOL_SHAPE, out_dtype),   # action pool
            jax.ShapeDtypeStruct((1,), jnp.int32),          # next seed
        ),
        in_specs=[pl.BlockSpec(memory_space=pltpu.MemorySpace.SMEM)],
        out_specs=(
            pl.BlockSpec(memory_space=pltpu.MemorySpace.VMEM),
            pl.BlockSpec(memory_space=pltpu.MemorySpace.SMEM),
        ),
    )
    return jax.jit(draw)


class API:
    """JAX/Pallas mirror of the PyTorch random-policy API module."""

    def __init__(self, obs_dims, model_dims, action_dims):
        self.obs_dims = obs_dims
        self.model_dims = model_dims
        self.action_dims = int(action_dims)
        self._sampler = _make_action_sampler(self.action_dims)
        self._seed = jnp.zeros((1,), dtype=jnp.int32)  # device-resident counter
        self._pool = None          # host-side cache of pre-drawn actions
        self._pool_pos = 0

    # forward() in the reference is `pass` -> returns None.
    def forward(self, obs, reward):
        return None

    def __call__(self, obs, reward):
        return self.forward(obs, reward)

    def start_episode(self):
        pass

    def _refill_pool(self):
        actions, self._seed = self._sampler(self._seed)
        # np.asarray on a jax Array blocks on the D2H transfer; no extra sync.
        self._pool = np.asarray(actions).ravel()
        self._pool_pos = 0

    def policy(self, obs, reward):
        # obs / reward are ignored, exactly like the PyTorch reference.
        del obs, reward
        if self._pool is None or self._pool_pos >= self._pool.size:
            self._refill_pool()
        action = int(self._pool[self._pool_pos])
        self._pool_pos += 1
        return action

    def train_on_episode(self, obs, actions, rewards):
        pass


if __name__ == "__main__":
    obs_dims, model_dims, action_dims = 8, 32, 4

    key = jax.random.PRNGKey(0)
    k_obs, k_rew = jax.random.split(key)
    obs = jax.random.normal(k_obs, (obs_dims,), dtype=jnp.float32)
    reward = jax.random.normal(k_rew, (), dtype=jnp.float32)

    agent = API(obs_dims, model_dims, action_dims)
    agent.start_episode()

    # forward is a no-op, as in the reference.
    out = agent(obs, reward)
    assert out is None

    # Pallas-backed random policy: many steps trigger only ONE kernel launch
    # (pool of 262,144 actions drawn on the first call).
    actions_taken = [agent.policy(obs, reward) for _ in range(16)]
    for a in actions_taken:
        assert isinstance(a, int)
        assert 0 <= a < action_dims, f"action {a} out of range"

    # Run the raw (cached, jitted) sampler once more and block on it explicitly.
    sampler = _make_action_sampler(action_dims)
    raw, next_seed = sampler(jnp.array([123], dtype=jnp.int32))
    raw = jax.block_until_ready(raw)
    assert raw.shape == _POOL_SHAPE and raw.dtype == _action_dtype(action_dims)
    assert bool(jnp.all((raw >= 0) & (raw < action_dims)))
    assert int(np.asarray(next_seed)[0]) == 124

    agent.train_on_episode(obs, jnp.array(actions_taken), jnp.ones((16,), jnp.float32))

    print("KERNEL_OK")
</pallas_src>

<mosaic_0001>
module attributes {stable_mosaic.version = 11 : i64} {
  func.func @_random_action_kernel(%arg0: memref<1xi32, #tpu.memory_space<smem>>, %arg1: memref<2048x128xi8, #tpu.memory_space<vmem>>, %arg2: memref<1xi32, #tpu.memory_space<smem>>) attributes {dimension_semantics = [], scalar_prefetch = 0 : i64, scratch_operands = 0 : i64, tpu.core_type = #tpu.core_type<tc>} {
    %0 = tpu.iota {dimensions = array<i32: 0>} : vector<2048x128xi32>
    %1 = tpu.iota {dimensions = array<i32: 1>} : vector<2048x128xi32>
    %c7_i32 = arith.constant 7 : i32
    %2 = vector.broadcast %c7_i32 : i32 to vector<2048x128xi32>
    %3 = arith.shli %0, %2 : vector<2048x128xi32>
    %4 = arith.ori %3, %1 : vector<2048x128xi32>
    %c0 = arith.constant 0 : index
    %5 = memref.load %arg0[%c0] : memref<1xi32, #tpu.memory_space<smem>>
    %c262144_i32 = arith.constant 262144 : i32
    %6 = arith.muli %5, %c262144_i32 : i32
    %7 = vector.broadcast %6 : i32 to vector<2048x128xi32>
    %8 = arith.addi %7, %4 : vector<2048x128xi32>
    %c16_i32 = arith.constant 16 : i32
    %9 = vector.broadcast %c16_i32 : i32 to vector<2048x128xi32>
    %10 = arith.shrui %8, %9 : vector<2048x128xi32>
    %11 = arith.xori %8, %10 : vector<2048x128xi32>
    %c2146121005_i32 = arith.constant 2146121005 : i32
    %12 = vector.broadcast %c2146121005_i32 : i32 to vector<2048x128xi32>
    %13 = arith.muli %11, %12 : vector<2048x128xi32>
    %c15_i32 = arith.constant 15 : i32
    %14 = vector.broadcast %c15_i32 : i32 to vector<2048x128xi32>
    %15 = arith.shrui %13, %14 : vector<2048x128xi32>
    %16 = arith.xori %13, %15 : vector<2048x128xi32>
    %c-2073254261_i32 = arith.constant -2073254261 : i32
    %17 = vector.broadcast %c-2073254261_i32 : i32 to vector<2048x128xi32>
    %18 = arith.muli %16, %17 : vector<2048x128xi32>
    %c16_i32_0 = arith.constant 16 : i32
    %19 = vector.broadcast %c16_i32_0 : i32 to vector<2048x128xi32>
    %20 = arith.shrui %18, %19 : vector<2048x128xi32>
    %21 = arith.xori %18, %20 : vector<2048x128xi32>
    %c3_i32 = arith.constant 3 : i32
    %22 = vector.broadcast %c3_i32 : i32 to vector<2048x128xi32>
    %23 = arith.andi %21, %22 : vector<2048x128xi32>
    %24 = arith.trunci %23 : vector<2048x128xi32> to vector<2048x128xi8>
    %c0_1 = arith.constant 0 : index
    %c0_2 = arith.constant 0 : index
    %25 = vector.load %arg1[%c0_1, %c0_2] : memref<2048x128xi8, #tpu.memory_space<vmem>>, vector<2048x128xi8>
    tpu.vector_store %arg1[%c0_1, %c0_2], %24 {strides = array<i32>} : memref<2048x128xi8, #tpu.memory_space<vmem>>, vector<2048x128xi8>,
    %c0_3 = arith.constant 0 : index
    %26 = memref.load %arg0[%c0_3] : memref<1xi32, #tpu.memory_space<smem>>
    %c1_i32 = arith.constant 1 : i32
    %27 = arith.addi %26, %c1_i32 : i32
    %c0_4 = arith.constant 0 : index
    %28 = memref.load %arg2[%c0_4] : memref<1xi32, #tpu.memory_space<smem>>
    memref.store %27, %arg2[%c0_4] : memref<1xi32, #tpu.memory_space<smem>>
    return
  }
}

</mosaic_0001>

<llo_original>
// kernel: tpu_custom_call.1
$region0: #{tpu_custom_call.1}
  #allocation0 [shape = 'u32[]', space=smem, size = 0x4, offset = 0x4, fixed_abs, tag = 'smem constant byte address 0x4 - core index']
  #allocation1 [shape = 'u32[144,128]{1,0:T(1,128)}', space=vmem, size = 0x12000, scoped, tag = 'internal scratch']
  #allocation2 [shape = 's32[1]{0:T(128)S(6)}', space=smem, size = 0x200, scoped, tag = 'scoped memory for tpu_custom_call.1']
  %s0 = inlined_call_operand.<no memory space> [shape: s32[1], index: 0, kind: input, shape index: {}]
  %s1 = inlined_call_operand.hbm [shape: s8[2048,128], index: 1, kind: output, shape index: {0}]
  %s2 = inlined_call_operand.hbm [shape: s32[1], index: 2, kind: output, shape index: {1}]
  %3 = xla_tuple %s1, %s2
  %s4 = sld [smem:[#allocation0]]
  $region22: #{tpu_custom_call.1} parent=0
    _
  %s6 = ssub.s32 1, %s4
  %s7 = scalar_select 0, %s6, %s4
  %8 = sst [smem:[#allocation2]] %s0
  $region1: #{tpu_custom_call.1} parent=0
    #allocation3 [shape = 'u8[262144]{0}', space=vmem, size = 0x40000, scoped, tag = 'output window, operand 0, single buffered']
    #allocation4 [shape = 's32[1]{0}', space=sflag, size = 0x4, scoped, tag = 'scoped memory for tpu_custom_call.1']
    #allocation5 [shape = 's32[1]{0}', space=sflag, size = 0x4, scoped, tag = 'scoped memory for tpu_custom_call.1']
    #allocation6 [shape = 'u8[512]{0}', space=smem, size = 0x200, scoped, tag = 'output window, operand 1, single buffered']
    %9 = vsyncpa [#allocation4], 0
    %10 = vsyncpa [#allocation5], 0
    // Predicated region
    $region2: #{tpu_custom_call.1} parent=1 // pred_check
      _
    $region3: #{tpu_custom_call.1} parent=1 // pred_check_branch
      %12 = sbr.rel (0) target = $region5
    $region4: #{tpu_custom_call.1} parent=1 // pred_region
      _
    $region5: #{tpu_custom_call.1} parent=1 // pred_fallthru
      _
    %v13 = vlaneseq
    %v14 = vshrl.u32 %v13, 7
    %v15 = vadd.s32 %v14, 8
    %v16 = vadd.s32 %v14, 16
    %v17 = vadd.s32 %v14, 24
    %v18 = vadd.s32 %v14, 32
    %v19 = vadd.s32 %v14, 40
    %v20 = vadd.s32 %v14, 48
    %v21 = vadd.s32 %v14, 56
    %v22 = vadd.s32 %v14, 64
    %v23 = vadd.s32 %v14, 72
    %v24 = vadd.s32 %v14, 80
    %v25 = vadd.s32 %v14, 88
    %v26 = vadd.s32 %v14, 96
    %v27 = vadd.s32 %v14, 104
    %v28 = vadd.s32 %v14, 112
    %v29 = vadd.s32 %v14, 120
    %v30 = vadd.s32 %v14, 128
    %v31 = vadd.s32 %v14, 136
    %v32 = vadd.s32 %v14, 144
    %v33 = vadd.s32 %v14, 152
    %v34 = vadd.s32 %v14, 160
    %v35 = vadd.s32 %v14, 168
    %v36 = vadd.s32 %v14, 176
    %v37 = vadd.s32 %v14, 184
    %v38 = vadd.s32 %v14, 192
    %v39 = vadd.s32 %v14, 200
    %v40 = vadd.s32 %v14, 208
    %v41 = vadd.s32 %v14, 216
    %v42 = vadd.s32 %v14, 224
    %v43 = vadd.s32 %v14, 232
    %v44 = vadd.s32 %v14, 240
    %v45 = vadd.s32 %v14, 248
    %v46 = vadd.s32 %v14, 256
    %v47 = vadd.s32 %v14, 264
    %v48 = vadd.s32 %v14, 272
    %v49 = vadd.s32 %v14, 280
    %v50 = vadd.s32 %v14, 288
    %v51 = vadd.s32 %v14, 296
    %v52 = vadd.s32 %v14, 304
    %v53 = vadd.s32 %v14, 312
    %v54 = vadd.s32 %v14, 320
    %v55 = vadd.s32 %v14, 328
    %v56 = vadd.s32 %v14, 336
    %v57 = vadd.s32 %v14, 344
    %v58 = vadd.s32 %v14, 352
    %v59 = vadd.s32 %v14, 360
    %v60 = vadd.s32 %v14, 368
    %v61 = vadd.s32 %v14, 376
    %v62 = vadd.s32 %v14, 384
    %v63 = vadd.s32 %v14, 392
    %v64 = vadd.s32 %v14, 400
    %v65 = vadd.s32 %v14, 408
    %v66 = vadd.s32 %v14, 416
    %v67 = vadd.s32 %v14, 424
    %v68 = vadd.s32 %v14, 432
    %v69 = vadd.s32 %v14, 440
    %v70 = vadd.s32 %v14, 448
    %v71 = vadd.s32 %v14, 456
    %v72 = vadd.s32 %v14, 464
    %v73 = vadd.s32 %v14, 472
    %v74 = vadd.s32 %v14, 480
    %v75 = vadd.s32 %v14, 488
    %v76 = vadd.s32 %v14, 496
    %v77 = vadd.s32 %v14, 504
    %v78 = vadd.s32 %v14, 512
    %v79 = vadd.s32 %v14, 520
    %v80 = vadd.s32 %v14, 528
    %v81 = vadd.s32 %v14, 536
    %v82 = vadd.s32 %v14, 544
    %v83 = vadd.s32 %v14, 552
    %v84 = vadd.s32 %v14, 560
    %v85 = vadd.s32 %v14, 568
    %v86 = vadd.s32 %v14, 576
    %v87 = vadd.s32 %v14, 584
    %v88 = vadd.s32 %v14, 592
    %v89 = vadd.s32 %v14, 600
    %v90 = vadd.s32 %v14, 608
    %v91 = vadd.s32 %v14, 616
    %v92 = vadd.s32 %v14, 624
    %v93 = vadd.s32 %v14, 632
    %v94 = vadd.s32 %v14, 640
    %v95 = vadd.s32 %v14, 648
    %v96 = vadd.s32 %v14, 656
    %v97 = vadd.s32 %v14, 664
    %v98 = vadd.s32 %v14, 672
    %v99 = vadd.s32 %v14, 680
    %v100 = vadd.s32 %v14, 688
    %v101 = vadd.s32 %v14, 696
    %v102 = vadd.s32 %v14, 704
    %v103 = vadd.s32 %v14, 712
    %v104 = vadd.s32 %v14, 720
    %v105 = vadd.s32 %v14, 728
    %v106 = vadd.s32 %v14, 736
    %v107 = vadd.s32 %v14, 744
    %v108 = vadd.s32 %v14, 752
    %v109 = vadd.s32 %v14, 760
    %v110 = vadd.s32 %v14, 768
    %v111 = vadd.s32 %v14, 776
    %v112 = vadd.s32 %v14, 784
    %v113 = vadd.s32 %v14, 792
    %v114 = vadd.s32 %v14, 800
    %v115 = vadd.s32 %v14, 808
    %v116 = vadd.s32 %v14, 816
    %v117 = vadd.s32 %v14, 824
    %v118 = vadd.s32 %v14, 832
    %v119 = vadd.s32 %v14, 840
    %v120 = vadd.s32 %v14, 848
    %v121 = vadd.s32 %v14, 856
    %v122 = vadd.s32 %v14, 864
    %v123 = vadd.s32 %v14, 872
    %v124 = vadd.s32 %v14, 880
    %v125 = vadd.s32 %v14, 888
    %v126 = vadd.s32 %v14, 896
    %v127 = vadd.s32 %v14, 904
    %v128 = vadd.s32 %v14, 912
    %v129 = vadd.s32 %v14, 920
    %v130 = vadd.s32 %v14, 928
    %v131 = vadd.s32 %v14, 936
    %v132 = vadd.s32 %v14, 944
    %v133 = vadd.s32 %v14, 952
    %v134 = vadd.s32 %v14, 960
    %v135 = vadd.s32 %v14, 968
    %v136 = vadd.s32 %v14, 976
    %v137 = vadd.s32 %v14, 984
    %v138 = vadd.s32 %v14, 992
    %v139 = vadd.s32 %v14, 1000
    %v140 = vadd.s32 %v14, 1008
    %v141 = vadd.s32 %v14, 1016
    %v142 = vadd.s32 %v14, 1024
    %v143 = vadd.s32 %v14, 1032
    %v144 = vadd.s32 %v14, 1040
    %v145 = vadd.s32 %v14, 1048
    %v146 = vadd.s32 %v14, 1056
    %v147 = vadd.s32 %v14, 1064
    %v148 = vadd.s32 %v14, 1072
    %v149 = vadd.s32 %v14, 1080
    %v150 = vadd.s32 %v14, 1088
    %v151 = vadd.s32 %v14, 1096
    %v152 = vadd.s32 %v14, 1104
    %v153 = vadd.s32 %v14, 1112
    %v154 = vadd.s32 %v14, 1120
    %v155 = vadd.s32 %v14, 1128
    %v156 = vadd.s32 %v14, 1136
    %v157 = vadd.s32 %v14, 1144
    %v158 = vadd.s32 %v14, 1152
    %v159 = vadd.s32 %v14, 1160
    %v160 = vadd.s32 %v14, 1168
    %v161 = vadd.s32 %v14, 1176
    %v162 = vadd.s32 %v14, 1184
    %v163 = vadd.s32 %v14, 1192
    %v164 = vadd.s32 %v14, 1200
    %v165 = vadd.s32 %v14, 1208
    %v166 = vadd.s32 %v14, 1216
    %v167 = vadd.s32 %v14, 1224
    %v168 = vadd.s32 %v14, 1232
    %v169 = vadd.s32 %v14, 1240
    %v170 = vadd.s32 %v14, 1248
    %v171 = vadd.s32 %v14, 1256
    %v172 = vadd.s32 %v14, 1264
    %v173 = vadd.s32 %v14, 1272
    %v174 = vadd.s32 %v14, 1280
    %v175 = vadd.s32 %v14, 1288
    %v176 = vadd.s32 %v14, 1296
    %v177 = vadd.s32 %v14, 1304
    %v178 = vadd.s32 %v14, 1312
    %v179 = vadd.s32 %v14, 1320
    %v180 = vadd.s32 %v14, 1328
    %v181 = vadd.s32 %v14, 1336
    %v182 = vadd.s32 %v14, 1344
    %v183 = vadd.s32 %v14, 1352
    %v184 = vadd.s32 %v14, 1360
    %v185 = vadd.s32 %v14, 1368
    %v186 = vadd.s32 %v14, 1376
    %v187 = vadd.s32 %v14, 1384
    %v188 = vadd.s32 %v14, 1392
    %v189 = vadd.s32 %v14, 1400
    %v190 = vadd.s32 %v14, 1408
    %v191 = vadd.s32 %v14, 1416
    %v192 = vadd.s32 %v14, 1424
    %v193 = vadd.s32 %v14, 1432
    %v194 = vadd.s32 %v14, 1440
    %v195 = vadd.s32 %v14, 1448
    %v196 = vadd.s32 %v14, 1456
    %v197 = vadd.s32 %v14, 1464
    %v198 = vadd.s32 %v14, 1472
    %v199 = vadd.s32 %v14, 1480
    %v200 = vadd.s32 %v14, 1488
    %v201 = vadd.s32 %v14, 1496
    %v202 = vadd.s32 %v14, 1504
    %v203 = vadd.s32 %v14, 1512
    %v204 = vadd.s32 %v14, 1520
    %v205 = vadd.s32 %v14, 1528
    %v206 = vadd.s32 %v14, 1536
    %v207 = vadd.s32 %v14, 1544
    %v208 = vadd.s32 %v14, 1552
    %v209 = vadd.s32 %v14, 1560
    %v210 = vadd.s32 %v14, 1568
    %v211 = vadd.s32 %v14, 1576
    %v212 = vadd.s32 %v14, 1584
    %v213 = vadd.s32 %v14, 1592
    %v214 = vadd.s32 %v14, 1600
    %v215 = vadd.s32 %v14, 1608
    %v216 = vadd.s32 %v14, 1616
    %v217 = vadd.s32 %v14, 1624
    %v218 = vadd.s32 %v14, 1632
    %v219 = vadd.s32 %v14, 1640
    %v220 = vadd.s32 %v14, 1648
    %v221 = vadd.s32 %v14, 1656
    %v222 = vadd.s32 %v14, 1664
    %v223 = vadd.s32 %v14, 1672
    %v224 = vadd.s32 %v14, 1680
    %v225 = vadd.s32 %v14, 1688
    %v226 = vadd.s32 %v14, 1696
    %v227 = vadd.s32 %v14, 1704
    %v228 = vadd.s32 %v14, 1712
    %v229 = vadd.s32 %v14, 1720
    %v230 = vadd.s32 %v14, 1728
    %v231 = vadd.s32 %v14, 1736
    %v232 = vadd.s32 %v14, 1744
    %v233 = vadd.s32 %v14, 1752
    %v234 = vadd.s32 %v14, 1760
    %v235 = vadd.s32 %v14, 1768
    %v236 = vadd.s32 %v14, 1776
    %v237 = vadd.s32 %v14, 1784
    %v238 = vadd.s32 %v14, 1792
    %v239 = vadd.s32 %v14, 1800
    %v240 = vadd.s32 %v14, 1808
    %v241 = vadd.s32 %v14, 1816
    %v242 = vadd.s32 %v14, 1824
    %v243 = vadd.s32 %v14, 1832
    %v244 = vadd.s32 %v14, 1840
    %v245 = vadd.s32 %v14, 1848
    %v246 = vadd.s32 %v14, 1856
    %v247 = vadd.s32 %v14, 1864
    %v248 = vadd.s32 %v14, 1872
    %v249 = vadd.s32 %v14, 1880
    %v250 = vadd.s32 %v14, 1888
    %v251 = vadd.s32 %v14, 1896
    %v252 = vadd.s32 %v14, 1904
    %v253 = vadd.s32 %v14, 1912
    %v254 = vadd.s32 %v14, 1920
    %v255 = vadd.s32 %v14, 1928
    %v256 = vadd.s32 %v14, 1936
    %v257 = vadd.s32 %v14, 1944
    %v258 = vadd.s32 %v14, 1952
    %v259 = vadd.s32 %v14, 1960
    %v260 = vadd.s32 %v14, 1968
    %v261 = vadd.s32 %v14, 1976
    %v262 = vadd.s32 %v14, 1984
    %v263 = vadd.s32 %v14, 1992
    %v264 = vadd.s32 %v14, 2000
    %v265 = vadd.s32 %v14, 2008
    %v266 = vadd.s32 %v14, 2016
    %v267 = vadd.s32 %v14, 2024
    %v268 = vadd.s32 %v14, 2032
    %v269 = vadd.s32 %v14, 2040
    %v270 = vlaneseq
    %v271 = vand.u32 %v270, 127
    %v272 = vshll.u32 %v14, 7
    %v273 = vshll.u32 %v15, 7
    %v274 = vshll.u32 %v16, 7
    %v275 = vshll.u32 %v17, 7
    %v276 = vshll.u32 %v18, 7
    %v277 = vshll.u32 %v19, 7
    %v278 = vshll.u32 %v20, 7
    %v279 = vshll.u32 %v21, 7
    %v280 = vshll.u32 %v22, 7
    %v281 = vshll.u32 %v23, 7
    %v282 = vshll.u32 %v24, 7
    %v283 = vshll.u32 %v25, 7
    %v284 = vshll.u32 %v26, 7
    %v285 = vshll.u32 %v27, 7
    %v286 = vshll.u32 %v28, 7
    %v287 = vshll.u32 %v29, 7
    %v288 = vshll.u32 %v30, 7
    %v289 = vshll.u32 %v31, 7
    %v290 = vshll.u32 %v32, 7
    %v291 = vshll.u32 %v33, 7
    %v292 = vshll.u32 %v34, 7
    %v293 = vshll.u32 %v35, 7
    %v294 = vshll.u32 %v36, 7
    %v295 = vshll.u32 %v37, 7
    %v296 = vshll.u32 %v38, 7
    %v297 = vshll.u32 %v39, 7
    %v298 = vshll.u32 %v40, 7
    %v299 = vshll.u32 %v41, 7
    %v300 = vshll.u32 %v42, 7
    %v301 = vshll.u32 %v43, 7
    %v302 = vshll.u32 %v44, 7
    %v303 = vshll.u32 %v45, 7
    %v304 = vshll.u32 %v46, 7
    %v305 = vshll.u32 %v47, 7
    %v306 = vshll.u32 %v48, 7
    %v307 = vshll.u32 %v49, 7
    %v308 = vshll.u32 %v50, 7
    %v309 = vshll.u32 %v51, 7
    %v310 = vshll.u32 %v52, 7
    %v311 = vshll.u32 %v53, 7
    %v312 = vshll.u32 %v54, 7
    %v313 = vshll.u32 %v55, 7
    %v314 = vshll.u32 %v56, 7
    %v315 = vshll.u32 %v57, 7
    %v316 = vshll.u32 %v58, 7
    %v317 = vshll.u32 %v59, 7
    %v318 = vshll.u32 %v60, 7
    %v319 = vshll.u32 %v61, 7
    %v320 = vshll.u32 %v62, 7
    %v321 = vshll.u32 %v63, 7
    %v322 = vshll.u32 %v64, 7
    %v323 = vshll.u32 %v65, 7
    %v324 = vshll.u32 %v66, 7
    %v325 = vshll.u32 %v67, 7
    %v326 = vshll.u32 %v68, 7
    %v327 = vshll.u32 %v69, 7
    %v328 = vshll.u32 %v70, 7
    %v329 = vshll.u32 %v71, 7
    %v330 = vshll.u32 %v72, 7
    %v331 = vshll.u32 %v73, 7
    %v332 = vshll.u32 %v74, 7
    %v333 = vshll.u32 %v75, 7
    %v334 = vshll.u32 %v76, 7
    %v335 = vshll.u32 %v77, 7
    %v336 = vshll.u32 %v78, 7
    %v337 = vshll.u32 %v79, 7
    %v338 = vshll.u32 %v80, 7
    %v339 = vshll.u32 %v81, 7
    %v340 = vshll.u32 %v82, 7
    %v341 = vshll.u32 %v83, 7
    %v342 = vshll.u32 %v84, 7
    %v343 = vshll.u32 %v85, 7
    %v344 = vshll.u32 %v86, 7
    %v345 = vshll.u32 %v87, 7
    %v346 = vshll.u32 %v88, 7
    %v347 = vshll.u32 %v89, 7
    %v348 = vshll.u32 %v90, 7
    %v349 = vshll.u32 %v91, 7
    %v350 = vshll.u32 %v92, 7
    %v351 = vshll.u32 %v93, 7
    %v352 = vshll.u32 %v94, 7
    %v353 = vshll.u32 %v95, 7
    %v354 = vshll.u32 %v96, 7
    %v355 = vshll.u32 %v97, 7
    %v356 = vshll.u32 %v98, 7
    %v357 = vshll.u32 %v99, 7
    %v358 = vshll.u32 %v100, 7
    %v359 = vshll.u32 %v101, 7
    %v360 = vshll.u32 %v102, 7
    %v361 = vshll.u32 %v103, 7
    %v362 = vshll.u32 %v104, 7
    %v363 = vshll.u32 %v105, 7
    %v364 = vshll.u32 %v106, 7
    %v365 = vshll.u32 %v107, 7
    %v366 = vshll.u32 %v108, 7
    %v367 = vshll.u32 %v109, 7
    %v368 = vshll.u32 %v110, 7
    %v369 = vshll.u32 %v111, 7
    %v370 = vshll.u32 %v112, 7
    %v371 = vshll.u32 %v113, 7
    %v372 = vshll.u32 %v114, 7
    %v373 = vshll.u32 %v115, 7
    %v374 = vshll.u32 %v116, 7
    %v375 = vshll.u32 %v117, 7
    %v376 = vshll.u32 %v118, 7
    %v377 = vshll.u32 %v119, 7
    %v378 = vshll.u32 %v120, 7
    %v379 = vshll.u32 %v121, 7
    %v380 = vshll.u32 %v122, 7
    %v381 = vshll.u32 %v123, 7
    %v382 = vshll.u32 %v124, 7
    %v383 = vshll.u32 %v125, 7
    %v384 = vshll.u32 %v126, 7
    %v385 = vshll.u32 %v127, 7
    %v386 = vshll.u32 %v128, 7
    %v387 = vshll.u32 %v129, 7
    %v388 = vshll.u32 %v130, 7
    %v389 = vshll.u32 %v131, 7
    %v390 = vshll.u32 %v132, 7
    %v391 = vshll.u32 %v133, 7
    %v392 = vshll.u32 %v134, 7
    %v393 = vshll.u32 %v135, 7
    %v394 = vshll.u32 %v136, 7
    %v395 = vshll.u32 %v137, 7
    %v396 = vshll.u32 %v138, 7
    %v397 = vshll.u32 %v139, 7
    %v398 = vshll.u32 %v140, 7
    %v399 = vshll.u32 %v141, 7
    %v400 = vshll.u32 %v142, 7
    %v401 = vshll.u32 %v143, 7
    %v402 = vshll.u32 %v144, 7
    %v403 = vshll.u32 %v145, 7
    %v404 = vshll.u32 %v146, 7
    %v405 = vshll.u32 %v147, 7
    %v406 = vshll.u32 %v148, 7
    %v407 = vshll.u32 %v149, 7
    %v408 = vshll.u32 %v150, 7
    %v409 = vshll.u32 %v151, 7
    %v410 = vshll.u32 %v152, 7
    %v411 = vshll.u32 %v153, 7
    %v412 = vshll.u32 %v154, 7
    %v413 = vshll.u32 %v155, 7
    %v414 = vshll.u32 %v156, 7
    %v415 = vshll.u32 %v157, 7
    %v416 = vshll.u32 %v158, 7
    %v417 = vshll.u32 %v159, 7
    %v418 = vshll.u32 %v160, 7
    %v419 = vshll.u32 %v161, 7
    %v420 = vshll.u32 %v162, 7
    %v421 = vshll.u32 %v163, 7
    %v422 = vshll.u32 %v164, 7
    %v423 = vshll.u32 %v165, 7
    %v424 = vshll.u32 %v166, 7
    %v425 = vshll.u32 %v167, 7
    %v426 = vshll.u32 %v168, 7
    %v427 = vshll.u32 %v169, 7
    %v428 = vshll.u32 %v170, 7
    %v429 = vshll.u32 %v171, 7
    %v430 = vshll.u32 %v172, 7
    %v431 = vshll.u32 %v173, 7
    %v432 = vshll.u32 %v174, 7
    %v433 = vshll.u32 %v175, 7
    %v434 = vshll.u32 %v176, 7
    %v435 = vshll.u32 %v177, 7
    %v436 = vshll.u32 %v178, 7
    %v437 = vshll.u32 %v179, 7
    %v438 = vshll.u32 %v180, 7
    %v439 = vshll.u32 %v181, 7
    %v440 = vshll.u32 %v182, 7
    %v441 = vshll.u32 %v183, 7
    %v442 = vshll.u32 %v184, 7
    %v443 = vshll.u32 %v185, 7
    %v444 = vshll.u32 %v186, 7
    %v445 = vshll.u32 %v187, 7
    %v446 = vshll.u32 %v188, 7
    %v447 = vshll.u32 %v189, 7
    %v448 = vshll.u32 %v190, 7
    %v449 = vshll.u32 %v191, 7
    %v450 = vshll.u32 %v192, 7
    %v451 = vshll.u32 %v193, 7
    %v452 = vshll.u32 %v194, 7
    %v453 = vshll.u32 %v195, 7
    %v454 = vshll.u32 %v196, 7
    %v455 = vshll.u32 %v197, 7
    %v456 = vshll.u32 %v198, 7
    %v457 = vshll.u32 %v199, 7
    %v458 = vshll.u32 %v200, 7
    %v459 = vshll.u32 %v201, 7
    %v460 = vshll.u32 %v202, 7
    %v461 = vshll.u32 %v203, 7
    %v462 = vshll.u32 %v204, 7
    %v463 = vshll.u32 %v205, 7
    %v464 = vshll.u32 %v206, 7
    %v465 = vshll.u32 %v207, 7
    %v466 = vshll.u32 %v208, 7
    %v467 = vshll.u32 %v209, 7
    %v468 = vshll.u32 %v210, 7
    %v469 = vshll.u32 %v211, 7
    %v470 = vshll.u32 %v212, 7
    %v471 = vshll.u32 %v213, 7
    %v472 = vshll.u32 %v214, 7
    %v473 = vshll.u32 %v215, 7
    %v474 = vshll.u32 %v216, 7
    %v475 = vshll.u32 %v217, 7
    %v476 = vshll.u32 %v218, 7
    %v477 = vshll.u32 %v219, 7
    %v478 = vshll.u32 %v220, 7
    %v479 = vshll.u32 %v221, 7
    %v480 = vshll.u32 %v222, 7
    %v481 = vshll.u32 %v223, 7
    %v482 = vshll.u32 %v224, 7
    %v483 = vshll.u32 %v225, 7
    %v484 = vshll.u32 %v226, 7
    %v485 = vshll.u32 %v227, 7
    %v486 = vshll.u32 %v228, 7
    %v487 = vshll.u32 %v229, 7
    %v488 = vshll.u32 %v230, 7
    %v489 = vshll.u32 %v231, 7
    %v490 = vshll.u32 %v232, 7
    %v491 = vshll.u32 %v233, 7
    %v492 = vshll.u32 %v234, 7
    %v493 = vshll.u32 %v235, 7
    %v494 = vshll.u32 %v236, 7
    %v495 = vshll.u32 %v237, 7
    %v496 = vshll.u32 %v238, 7
    %v497 = vshll.u32 %v239, 7
    %v498 = vshll.u32 %v240, 7
    %v499 = vshll.u32 %v241, 7
    %v500 = vshll.u32 %v242, 7
    %v501 = vshll.u32 %v243, 7
    %v502 = vshll.u32 %v244, 7
    %v503 = vshll.u32 %v245, 7
    %v504 = vshll.u32 %v246, 7
    %v505 = vshll.u32 %v247, 7
    %v506 = vshll.u32 %v248, 7
    %v507 = vshll.u32 %v249, 7
    %v508 = vshll.u32 %v250, 7
    %v509 = vshll.u32 %v251, 7
    %v510 = vshll.u32 %v252, 7
    %v511 = vshll.u32 %v253, 7
    %v512 = vshll.u32 %v254, 7
    %v513 = vshll.u32 %v255, 7
    %v514 = vshll.u32 %v256, 7
    %v515 = vshll.u32 %v257, 7
    %v516 = vshll.u32 %v258, 7
    %v517 = vshll.u32 %v259, 7
    %v518 = vshll.u32 %v260, 7
    %v519 = vshll.u32 %v261, 7
    %v520 = vshll.u32 %v262, 7
    %v521 = vshll.u32 %v263, 7
    %v522 = vshll.u32 %v264, 7
    %v523 = vshll.u32 %v265, 7
    %v524 = vshll.u32 %v266, 7
    %v525 = vshll.u32 %v267, 7
    %v526 = vshll.u32 %v268, 7
    %v527 = vshll.u32 %v269, 7
    %v528 = vor.u32 %v272, %v271
    %v529 = vor.u32 %v273, %v271
    %v530 = vor.u32 %v274, %v271
    %v531 = vor.u32 %v275, %v271
    %v532 = vor.u32 %v276, %v271
    %v533 = vor.u32 %v277, %v271
    %v534 = vor.u32 %v278, %v271
    %v535 = vor.u32 %v279, %v271
    %v536 = vor.u32 %v280, %v271
    %v537 = vor.u32 %v281, %v271
    %v538 = vor.u32 %v282, %v271
    %v539 = vor.u32 %v283, %v271
    %v540 = vor.u32 %v284, %v271
    %v541 = vor.u32 %v285, %v271
    %v542 = vor.u32 %v286, %v271
    %v543 = vor.u32 %v287, %v271
    %v544 = vor.u32 %v288, %v271
    %v545 = vor.u32 %v289, %v271
    %v546 = vor.u32 %v290, %v271
    %v547 = vor.u32 %v291, %v271
    %v548 = vor.u32 %v292, %v271
    %v549 = vor.u32 %v293, %v271
    %v550 = vor.u32 %v294, %v271
    %v551 = vor.u32 %v295, %v271
    %v552 = vor.u32 %v296, %v271
    %v553 = vor.u32 %v297, %v271
    %v554 = vor.u32 %v298, %v271
    %v555 = vor.u32 %v299, %v271
    %v556 = vor.u32 %v300, %v271
    %v557 = vor.u32 %v301, %v271
    %v558 = vor.u32 %v302, %v271
    %v559 = vor.u32 %v303, %v271
    %v560 = vor.u32 %v304, %v271
    %v561 = vor.u32 %v305, %v271
    %v562 = vor.u32 %v306, %v271
    %v563 = vor.u32 %v307, %v271
    %v564 = vor.u32 %v308, %v271
    %v565 = vor.u32 %v309, %v271
    %v566 = vor.u32 %v310, %v271
    %v567 = vor.u32 %v311, %v271
    %v568 = vor.u32 %v312, %v271
    %v569 = vor.u32 %v313, %v271
    %v570 = vor.u32 %v314, %v271
    %v571 = vor.u32 %v315, %v271
    %v572 = vor.u32 %v316, %v271
    %v573 = vor.u32 %v317, %v271
    %v574 = vor.u32 %v318, %v271
    %v575 = vor.u32 %v319, %v271
    %v576 = vor.u32 %v320, %v271
    %v577 = vor.u32 %v321, %v271
    %v578 = vor.u32 %v322, %v271
    %v579 = vor.u32 %v323, %v271
    %v580 = vor.u32 %v324, %v271
    %v581 = vor.u32 %v325, %v271
    %v582 = vor.u32 %v326, %v271
    %v583 = vor.u32 %v327, %v271
    %v584 = vor.u32 %v328, %v271
    %v585 = vor.u32 %v329, %v271
    %v586 = vor.u32 %v330, %v271
    %v587 = vor.u32 %v331, %v271
    %v588 = vor.u32 %v332, %v271
    %v589 = vor.u32 %v333, %v271
    %v590 = vor.u32 %v334, %v271
    %v591 = vor.u32 %v335, %v271
    %v592 = vor.u32 %v336, %v271
    %v593 = vor.u32 %v337, %v271
    %v594 = vor.u32 %v338, %v271
    %v595 = vor.u32 %v339, %v271
    %v596 = vor.u32 %v340, %v271
    %v597 = vor.u32 %v341, %v271
    %v598 = vor.u32 %v342, %v271
    %v599 = vor.u32 %v343, %v271
    %v600 = vor.u32 %v344, %v271
    %v601 = vor.u32 %v345, %v271
    %v602 = vor.u32 %v346, %v271
    %v603 = vor.u32 %v347, %v271
    %v604 = vor.u32 %v348, %v271
    %v605 = vor.u32 %v349, %v271
    %v606 = vor.u32 %v350, %v271
    %v607 = vor.u32 %v351, %v271
    %v608 = vor.u32 %v352, %v271
    %v609 = vor.u32 %v353, %v271
    %v610 = vor.u32 %v354, %v271
    %v611 = vor.u32 %v355, %v271
    %v612 = vor.u32 %v356, %v271
    %v613 = vor.u32 %v357, %v271
    %v614 = vor.u32 %v358, %v271
    %v615 = vor.u32 %v359, %v271
    %v616 = vor.u32 %v360, %v271
    %v617 = vor.u32 %v361, %v271
    %v618 = vor.u32 %v362, %v271
    %v619 = vor.u32 %v363, %v271
    %v620 = vor.u32 %v364, %v271
    %v621 = vor.u32 %v365, %v271
    %v622 = vor.u32 %v366, %v271
    %v623 = vor.u32 %v367, %v271
    %v624 = vor.u32 %v368, %v271
    %v625 = vor.u32 %v369, %v271
    %v626 = vor.u32 %v370, %v271
    %v627 = vor.u32 %v371, %v271
    %v628 = vor.u32 %v372, %v271
    %v629 = vor.u32 %v373, %v271
    %v630 = vor.u32 %v374, %v271
    %v631 = vor.u32 %v375, %v271
    %v632 = vor.u32 %v376, %v271
    %v633 = vor.u32 %v377, %v271
    %v634 = vor.u32 %v378, %v271
    %v635 = vor.u32 %v379, %v271
    %v636 = vor.u32 %v380, %v271
    %v637 = vor.u32 %v381, %v271
    %v638 = vor.u32 %v382, %v271
    %v639 = vor.u32 %v383, %v271
    %v640 = vor.u32 %v384, %v271
    %v641 = vor.u32 %v385, %v271
    %v642 = vor.u32 %v386, %v271
    %v643 = vor.u32 %v387, %v271
    %v644 = vor.u32 %v388, %v271
    %v645 = vor.u32 %v389, %v271
    %v646 = vor.u32 %v390, %v271
    %v647 = vor.u32 %v391, %v271
    %v648 = vor.u32 %v392, %v271
    %v649 = vor.u32 %v393, %v271
    %v650 = vor.u32 %v394, %v271
    %v651 = vor.u32 %v395, %v271
    %v652 = vor.u32 %v396, %v271
    %v653 = vor.u32 %v397, %v271
    %v654 = vor.u32 %v398, %v271
    %v655 = vor.u32 %v399, %v271
    %v656 = vor.u32 %v400, %v271
    %v657 = vor.u32 %v401, %v271
    %v658 = vor.u32 %v402, %v271
    %v659 = vor.u32 %v403, %v271
    %v660 = vor.u32 %v404, %v271
    %v661 = vor.u32 %v405, %v271
    %v662 = vor.u32 %v406, %v271
    %v663 = vor.u32 %v407, %v271
    %v664 = vor.u32 %v408, %v271
    %v665 = vor.u32 %v409, %v271
    %v666 = vor.u32 %v410, %v271
    %v667 = vor.u32 %v411, %v271
    %v668 = vor.u32 %v412, %v271
    %v669 = vor.u32 %v413, %v271
    %v670 = vor.u32 %v414, %v271
    %v671 = vor.u32 %v415, %v271
    %v672 = vor.u32 %v416, %v271
    %v673 = vor.u32 %v417, %v271
    %v674 = vor.u32 %v418, %v271
    %v675 = vor.u32 %v419, %v271
    %v676 = vor.u32 %v420, %v271
    %v677 = vor.u32 %v421, %v271
    %v678 = vor.u32 %v422, %v271
    %v679 = vor.u32 %v423, %v271
    %v680 = vor.u32 %v424, %v271
    %v681 = vor.u32 %v425, %v271
    %v682 = vor.u32 %v426, %v271
    %v683 = vor.u32 %v427, %v271
    %v684 = vor.u32 %v428, %v271
    %v685 = vor.u32 %v429, %v271
    %v686 = vor.u32 %v430, %v271
    %v687 = vor.u32 %v431, %v271
    %v688 = vor.u32 %v432, %v271
    %v689 = vor.u32 %v433, %v271
    %v690 = vor.u32 %v434, %v271
    %v691 = vor.u32 %v435, %v271
    %v692 = vor.u32 %v436, %v271
    %v693 = vor.u32 %v437, %v271
    %v694 = vor.u32 %v438, %v271
    %v695 = vor.u32 %v439, %v271
    %v696 = vor.u32 %v440, %v271
    %v697 = vor.u32 %v441, %v271
    %v698 = vor.u32 %v442, %v271
    %v699 = vor.u32 %v443, %v271
    %v700 = vor.u32 %v444, %v271
    %v701 = vor.u32 %v445, %v271
    %v702 = vor.u32 %v446, %v271
    %v703 = vor.u32 %v447, %v271
    %v704 = vor.u32 %v448, %v271
    %v705 = vor.u32 %v449, %v271
    %v706 = vor.u32 %v450, %v271
    %v707 = vor.u32 %v451, %v271
    %v708 = vor.u32 %v452, %v271
    %v709 = vor.u32 %v453, %v271
    %v710 = vor.u32 %v454, %v271
    %v711 = vor.u32 %v455, %v271
    %v712 = vor.u32 %v456, %v271
    %v713 = vor.u32 %v457, %v271
    %v714 = vor.u32 %v458, %v271
    %v715 = vor.u32 %v459, %v271
    %v716 = vor.u32 %v460, %v271
    %v717 = vor.u32 %v461, %v271
    %v718 = vor.u32 %v462, %v271
    %v719 = vor.u32 %v463, %v271
    %v720 = vor.u32 %v464, %v271
    %v721 = vor.u32 %v465, %v271
    %v722 = vor.u32 %v466, %v271
    %v723 = vor.u32 %v467, %v271
    %v724 = vor.u32 %v468, %v271
    %v725 = vor.u32 %v469, %v271
    %v726 = vor.u32 %v470, %v271
    %v727 = vor.u32 %v471, %v271
    %v728 = vor.u32 %v472, %v271
    %v729 = vor.u32 %v473, %v271
    %v730 = vor.u32 %v474, %v271
    %v731 = vor.u32 %v475, %v271
    %v732 = vor.u32 %v476, %v271
    %v733 = vor.u32 %v477, %v271
    %v734 = vor.u32 %v478, %v271
    %v735 = vor.u32 %v479, %v271
    %v736 = vor.u32 %v480, %v271
    %v737 = vor.u32 %v481, %v271
    %v738 = vor.u32 %v482, %v271
    %v739 = vor.u32 %v483, %v271
    %v740 = vor.u32 %v484, %v271
    %v741 = vor.u32 %v485, %v271
    %v742 = vor.u32 %v486, %v271
    %v743 = vor.u32 %v487, %v271
    %v744 = vor.u32 %v488, %v271
    %v745 = vor.u32 %v489, %v271
    %v746 = vor.u32 %v490, %v271
    %v747 = vor.u32 %v491, %v271
    %v748 = vor.u32 %v492, %v271
    %v749 = vor.u32 %v493, %v271
    %v750 = vor.u32 %v494, %v271
    %v751 = vor.u32 %v495, %v271
    %v752 = vor.u32 %v496, %v271
    %v753 = vor.u32 %v497, %v271
    %v754 = vor.u32 %v498, %v271
    %v755 = vor.u32 %v499, %v271
    %v756 = vor.u32 %v500, %v271
    %v757 = vor.u32 %v501, %v271
    %v758 = vor.u32 %v502, %v271
    %v759 = vor.u32 %v503, %v271
    %v760 = vor.u32 %v504, %v271
    %v761 = vor.u32 %v505, %v271
    %v762 = vor.u32 %v506, %v271
    %v763 = vor.u32 %v507, %v271
    %v764 = vor.u32 %v508, %v271
    %v765 = vor.u32 %v509, %v271
    %v766 = vor.u32 %v510, %v271
    %v767 = vor.u32 %v511, %v271
    %v768 = vor.u32 %v512, %v271
    %v769 = vor.u32 %v513, %v271
    %v770 = vor.u32 %v514, %v271
    %v771 = vor.u32 %v515, %v271
    %v772 = vor.u32 %v516, %v271
    %v773 = vor.u32 %v517, %v271
    %v774 = vor.u32 %v518, %v271
    %v775 = vor.u32 %v519, %v271
    %v776 = vor.u32 %v520, %v271
    %v777 = vor.u32 %v521, %v271
    %v778 = vor.u32 %v522, %v271
    %v779 = vor.u32 %v523, %v271
    %v780 = vor.u32 %v524, %v271
    %v781 = vor.u32 %v525, %v271
    %v782 = vor.u32 %v526, %v271
    %v783 = vor.u32 %v527, %v271
    %s784 = sld [smem:[#allocation2]]
    %s785 = smul.u32 %s784, 262144
    %v786 = vstv %s785
    %v787 = vadd.s32 %v786, %v528
    %v788 = vadd.s32 %v786, %v529
    %v789 = vadd.s32 %v786, %v530
    %v790 = vadd.s32 %v786, %v531
    %v791 = vadd.s32 %v786, %v532
    %v792 = vadd.s32 %v786, %v533
    %v793 = vadd.s32 %v786, %v534
    %v794 = vadd.s32 %v786, %v535
    %v795 = vadd.s32 %v786, %v536
    %v796 = vadd.s32 %v786, %v537
    %v797 = vadd.s32 %v786, %v538
    %v798 = vadd.s32 %v786, %v539
    %v799 = vadd.s32 %v786, %v540
    %v800 = vadd.s32 %v786, %v541
    %v801 = vadd.s32 %v786, %v542
    %v802 = vadd.s32 %v786, %v543
    %v803 = vadd.s32 %v786, %v544
    %v804 = vadd.s32 %v786, %v545
    %v805 = vadd.s32 %v786, %v546
    %v806 = vadd.s32 %v786, %v547
    %v807 = vadd.s32 %v786, %v548
    %v808 = vadd.s32 %v786, %v549
    %v809 = vadd.s32 %v786, %v550
    %v810 = vadd.s32 %v786, %v551
    %v811 = vadd.s32 %v786, %v552
    %v812 = vadd.s32 %v786, %v553
    %v813 = vadd.s32 %v786, %v554
    %v814 = vadd.s32 %v786, %v555
    %v815 = vadd.s32 %v786, %v556
    %v816 = vadd.s32 %v786, %v557
    %v817 = vadd.s32 %v786, %v558
    %v818 = vadd.s32 %v786, %v559
    %v819 = vadd.s32 %v786, %v560
    %v820 = vadd.s32 %v786, %v561
    %v821 = vadd.s32 %v786, %v562
    %v822 = vadd.s32 %v786, %v563
    %v823 = vadd.s32 %v786, %v564
    %v824 = vadd.s32 %v786, %v565
    %v825 = vadd.s32 %v786, %v566
    %v826 = vadd.s32 %v786, %v567
    %v827 = vadd.s32 %v786, %v568
    %v828 = vadd.s32 %v786, %v569
    %v829 = vadd.s32 %v786, %v570
    %v830 = vadd.s32 %v786, %v571
    %v831 = vadd.s32 %v786, %v572
    %v832 = vadd.s32 %v786, %v573
    %v833 = vadd.s32 %v786, %v574
    %v834 = vadd.s32 %v786, %v575
    %v835 = vadd.s32 %v786, %v576
    %v836 = vadd.s32 %v786, %v577
    %v837 = vadd.s32 %v786, %v578
    %v838 = vadd.s32 %v786, %v579
    %v839 = vadd.s32 %v786, %v580
    %v840 = vadd.s32 %v786, %v581
    %v841 = vadd.s32 %v786, %v582
    %v842 = vadd.s32 %v786, %v583
    %v843 = vadd.s32 %v786, %v584
    %v844 = vadd.s32 %v786, %v585
    %v845 = vadd.s32 %v786, %v586
    %v846 = vadd.s32 %v786, %v587
    %v847 = vadd.s32 %v786, %v588
    %v848 = vadd.s32 %v786, %v589
    %v849 = vadd.s32 %v786, %v590
    %v850 = vadd.s32 %v786, %v591
    %v851 = vadd.s32 %v786, %v592
    %v852 = vadd.s32 %v786, %v593
    %v853 = vadd.s32 %v786, %v594
    %v854 = vadd.s32 %v786, %v595
    %v855 = vadd.s32 %v786, %v596
    %v856 = vadd.s32 %v786, %v597
    %v857 = vadd.s32 %v786, %v598
    %v858 = vadd.s32 %v786, %v599
    %v859 = vadd.s32 %v786, %v600
    %v860 = vadd.s32 %v786, %v601
    %v861 = vadd.s32 %v786, %v602
    %v862 = vadd.s32 %v786, %v603
    %v863 = vadd.s32 %v786, %v604
    %v864 = vadd.s32 %v786, %v605
    %v865 = vadd.s32 %v786, %v606
    %v866 = vadd.s32 %v786, %v607
    %v867 = vadd.s32 %v786, %v608
    %v868 = vadd.s32 %v786, %v609
    %v869 = vadd.s32 %v786, %v610
    %v870 = vadd.s32 %v786, %v611
    %v871 = vadd.s32 %v786, %v612
    %v872 = vadd.s32 %v786, %v613
    %v873 = vadd.s32 %v786, %v614
    %v874 = vadd.s32 %v786, %v615
    %v875 = vadd.s32 %v786, %v616
    %v876 = vadd.s32 %v786, %v617
    %v877 = vadd.s32 %v786, %v618
    %v878 = vadd.s32 %v786, %v619
    %v879 = vadd.s32 %v786, %v620
    %v880 = vadd.s32 %v786, %v621
    %v881 = vadd.s32 %v786, %v622
    %v882 = vadd.s32 %v786, %v623
    %v883 = vadd.s32 %v786, %v624
    %v884 = vadd.s32 %v786, %v625
    %v885 = vadd.s32 %v786, %v626
    %v886 = vadd.s32 %v786, %v627
    %v887 = vadd.s32 %v786, %v628
    %v888 = vadd.s32 %v786, %v629
    %v889 = vadd.s32 %v786, %v630
    %v890 = vadd.s32 %v786, %v631
    %v891 = vadd.s32 %v786, %v632
    %v892 = vadd.s32 %v786, %v633
    %v893 = vadd.s32 %v786, %v634
    %v894 = vadd.s32 %v786, %v635
    %v895 = vadd.s32 %v786, %v636
    %v896 = vadd.s32 %v786, %v637
    %v897 = vadd.s32 %v786, %v638
    %v898 = vadd.s32 %v786, %v639
    %v899 = vadd.s32 %v786, %v640
    %v900 = vadd.s32 %v786, %v641
    %v901 = vadd.s32 %v786, %v642
    %v902 = vadd.s32 %v786, %v643
    %v903 = vadd.s32 %v786, %v644
    %v904 = vadd.s32 %v786, %v645
    %v905 = vadd.s32 %v786, %v646
    %v906 = vadd.s32 %v786, %v647
    %v907 = vadd.s32 %v786, %v648
    %v908 = vadd.s32 %v786, %v649
    %v909 = vadd.s32 %v786, %v650
    %v910 = vadd.s32 %v786, %v651
    %v911 = vadd.s32 %v786, %v652
    %v912 = vadd.s32 %v786, %v653
    %v913 = vadd.s32 %v786, %v654
    %v914 = vadd.s32 %v786, %v655
    %v915 = vadd.s32 %v786, %v656
    %v916 = vadd.s32 %v786, %v657
    %v917 = vadd.s32 %v786, %v658
    %v918 = vadd.s32 %v786, %v659
    %v919 = vadd.s32 %v786, %v660
    %v920 = vadd.s32 %v786, %v661
    %v921 = vadd.s32 %v786, %v662
    %v922 = vadd.s32 %v786, %v663
    %v923 = vadd.s32 %v786, %v664
    %v924 = vadd.s32 %v786, %v665
    %v925 = vadd.s32 %v786, %v666
    %v926 = vadd.s32 %v786, %v667
    %v927 = vadd.s32 %v786, %v668
    %v928 = vadd.s32 %v786, %v669
    %v929 = vadd.s32 %v786, %v670
    %v930 = vadd.s32 %v786, %v671
    %v931 = vadd.s32 %v786, %v672
    %v932 = vadd.s32 %v786, %v673
    %v933 = vadd.s32 %v786, %v674
    %v934 = vadd.s32 %v786, %v675
    %v935 = vadd.s32 %v786, %v676
    %v936 = vadd.s32 %v786, %v677
    %v937 = vadd.s32 %v786, %v678
    %v938 = vadd.s32 %v786, %v679
    %v939 = vadd.s32 %v786, %v680
    %v940 = vadd.s32 %v786, %v681
    %v941 = vadd.s32 %v786, %v682
    %v942 = vadd.s32 %v786, %v683
    %v943 = vadd.s32 %v786, %v684
    %v944 = vadd.s32 %v786, %v685
    %v945 = vadd.s32 %v786, %v686
    %v946 = vadd.s32 %v786, %v687
    %v947 = vadd.s32 %v786, %v688
    %v948 = vadd.s32 %v786, %v689
    %v949 = vadd.s32 %v786, %v690
    %v950 = vadd.s32 %v786, %v691
    %v951 = vadd.s32 %v786, %v692
    %v952 = vadd.s32 %v786, %v693
    %v953 = vadd.s32 %v786, %v694
    %v954 = vadd.s32 %v786, %v695
    %v955 = vadd.s32 %v786, %v696
    %v956 = vadd.s32 %v786, %v697
    %v957 = vadd.s32 %v786, %v698
    %v958 = vadd.s32 %v786, %v699
    %v959 = vadd.s32 %v786, %v700
    %v960 = vadd.s32 %v786, %v701
    %v961 = vadd.s32 %v786, %v702
    %v962 = vadd.s32 %v786, %v703
    %v963 = vadd.s32 %v786, %v704
    %v964 = vadd.s32 %v786, %v705
    %v965 = vadd.s32 %v786, %v706
    %v966 = vadd.s32 %v786, %v707
    %v967 = vadd.s32 %v786, %v708
    %v968 = vadd.s32 %v786, %v709
    %v969 = vadd.s32 %v786, %v710
    %v970 = vadd.s32 %v786, %v711
    %v971 = vadd.s32 %v786, %v712
    %v972 = vadd.s32 %v786, %v713
    %v973 = vadd.s32 %v786, %v714
    %v974 = vadd.s32 %v786, %v715
    %v975 = vadd.s32 %v786, %v716
    %v976 = vadd.s32 %v786, %v717
    %v977 = vadd.s32 %v786, %v718
    %v978 = vadd.s32 %v786, %v719
    %v979 = vadd.s32 %v786, %v720
    %v980 = vadd.s32 %v786, %v721
    %v981 = vadd.s32 %v786, %v722
    %v982 = vadd.s32 %v786, %v723
    %v983 = vadd.s32 %v786, %v724
    %v984 = vadd.s32 %v786, %v725
    %v985 = vadd.s32 %v786, %v726
    %v986 = vadd.s32 %v786, %v727
    %v987 = vadd.s32 %v786, %v728
    %v988 = vadd.s32 %v786, %v729
    %v989 = vadd.s32 %v786, %v730
    %v990 = vadd.s32 %v786, %v731
    %v991 = vadd.s32 %v786, %v732
    %v992 = vadd.s32 %v786, %v733
    %v993 = vadd.s32 %v786, %v734
    %v994 = vadd.s32 %v786, %v735
    %v995 = vadd.s32 %v786, %v736
    %v996 = vadd.s32 %v786, %v737
    %v997 = vadd.s32 %v786, %v738
    %v998 = vadd.s32 %v786, %v739
    %v999 = vadd.s32 %v786, %v740
    %v1000 = vadd.s32 %v786, %v741
    %v1001 = vadd.s32 %v786, %v742
    %v1002 = vadd.s32 %v786, %v743
    %v1003 = vadd.s32 %v786, %v744
    %v1004 = vadd.s32 %v786, %v745
    %v1005 = vadd.s32 %v786, %v746
    %v1006 = vadd.s32 %v786, %v747
    %v1007 = vadd.s32 %v786, %v748
    %v1008 = vadd.s32 %v786, %v749
    %v1009 = vadd.s32 %v786, %v750
    %v1010 = vadd.s32 %v786, %v751
    %v1011 = vadd.s32 %v786, %v752
    %v1012 = vadd.s32 %v786, %v753
    %v1013 = vadd.s32 %v786, %v754
    %v1014 = vadd.s32 %v786, %v755
    %v1015 = vadd.s32 %v786, %v756
    %v1016 = vadd.s32 %v786, %v757
    %v1017 = vadd.s32 %v786, %v758
    %v1018 = vadd.s32 %v786, %v759
    %v1019 = vadd.s32 %v786, %v760
    %v1020 = vadd.s32 %v786, %v761
    %v1021 = vadd.s32 %v786, %v762
    %v1022 = vadd.s32 %v786, %v763
    %v1023 = vadd.s32 %v786, %v764
    %v1024 = vadd.s32 %v786, %v765
    %v1025 = vadd.s32 %v786, %v766
    %v1026 = vadd.s32 %v786, %v767
    %v1027 = vadd.s32 %v786, %v768
    %v1028 = vadd.s32 %v786, %v769
    %v1029 = vadd.s32 %v786, %v770
    %v1030 = vadd.s32 %v786, %v771
    %v1031 = vadd.s32 %v786, %v772
    %v1032 = vadd.s32 %v786, %v773
    %v1033 = vadd.s32 %v786, %v774
    %v1034 = vadd.s32 %v786, %v775
    %v1035 = vadd.s32 %v786, %v776
    %v1036 = vadd.s32 %v786, %v777
    %v1037 = vadd.s32 %v786, %v778
    %v1038 = vadd.s32 %v786, %v779
    %v1039 = vadd.s32 %v786, %v780
    %v1040 = vadd.s32 %v786, %v781
    %v1041 = vadd.s32 %v786, %v782
    %v1042 = vadd.s32 %v786, %v783
    %v1043 = vshrl.u32 %v787, 16
    %v1044 = vshrl.u32 %v788, 16
    %v1045 = vshrl.u32 %v789, 16
    %v1046 = vshrl.u32 %v790, 16
    %v1047 = vshrl.u32 %v791, 16
    %v1048 = vshrl.u32 %v792, 16
    %v1049 = vshrl.u32 %v793, 16
    %v1050 = vshrl.u32 %v794, 16
    %v1051 = vshrl.u32 %v795, 16
    %v1052 = vshrl.u32 %v796, 16
    %v1053 = vshrl.u32 %v797, 16
    %v1054 = vshrl.u32 %v798, 16
    %v1055 = vshrl.u32 %v799, 16
    %v1056 = vshrl.u32 %v800, 16
    %v1057 = vshrl.u32 %v801, 16
    %v1058 = vshrl.u32 %v802, 16
    %v1059 = vshrl.u32 %v803, 16
    %v1060 = vshrl.u32 %v804, 16
    %v1061 = vshrl.u32 %v805, 16
    %v1062 = vshrl.u32 %v806, 16
    %v1063 = vshrl.u32 %v807, 16
    %v1064 = vshrl.u32 %v808, 16
    %v1065 = vshrl.u32 %v809, 16
    %v1066 = vshrl.u32 %v810, 16
    %v1067 = vshrl.u32 %v811, 16
    %v1068 = vshrl.u32 %v812, 16
    %v1069 = vshrl.u32 %v813, 16
    %v1070 = vshrl.u32 %v814, 16
    %v1071 = vshrl.u32 %v815, 16
    %v1072 = vshrl.u32 %v816, 16
    %v1073 = vshrl.u32 %v817, 16
    %v1074 = vshrl.u32 %v818, 16
    %v1075 = vshrl.u32 %v819, 16
    %v1076 = vshrl.u32 %v820, 16
    %v1077 = vshrl.u32 %v821, 16
    %v1078 = vshrl.u32 %v822, 16
    %v1079 = vshrl.u32 %v823, 16
    %v1080 = vshrl.u32 %v824, 16
    %v1081 = vshrl.u32 %v825, 16
    %v1082 = vshrl.u32 %v826, 16
    %v1083 = vshrl.u32 %v827, 16
    %v1084 = vshrl.u32 %v828, 16
    %v1085 = vshrl.u32 %v829, 16
    %v1086 = vshrl.u32 %v830, 16
    %v1087 = vshrl.u32 %v831, 16
    %v1088 = vshrl.u32 %v832, 16
    %v1089 = vshrl.u32 %v833, 16
    %v1090 = vshrl.u32 %v834, 16
    %v1091 = vshrl.u32 %v835, 16
    %v1092 = vshrl.u32 %v836, 16
    %v1093 = vshrl.u32 %v837, 16
    %v1094 = vshrl.u32 %v838, 16
    %v1095 = vshrl.u32 %v839, 16
    %v1096 = vshrl.u32 %v840, 16
    %v1097 = vshrl.u32 %v841, 16
    %v1098 = vshrl.u32 %v842, 16
    %v1099 = vshrl.u32 %v843, 16
    %v1100 = vshrl.u32 %v844, 16
    %v1101 = vshrl.u32 %v845, 16
    %v1102 = vshrl.u32 %v846, 16
    %v1103 = vshrl.u32 %v847, 16
    %v1104 = vshrl.u32 %v848, 16
    %v1105 = vshrl.u32 %v849, 16
    %v1106 = vshrl.u32 %v850, 16
    %v1107 = vshrl.u32 %v851, 16
    %v1108 = vshrl.u32 %v852, 16
    %v1109 = vshrl.u32 %v853, 16
    %v1110 = vshrl.u32 %v854, 16
    %v1111 = vshrl.u32 %v855, 16
    %v1112 = vshrl.u32 %v856, 16
    %v1113 = vshrl.u32 %v857, 16
    %v1114 = vshrl.u32 %v858, 16
    %v1115 = vshrl.u32 %v859, 16
    %v1116 = vshrl.u32 %v860, 16
    %v1117 = vshrl.u32 %v861, 16
    %v1118 = vshrl.u32 %v862, 16
    %v1119 = vshrl.u32 %v863, 16
    %v1120 = vshrl.u32 %v864, 16
    %v1121 = vshrl.u32 %v865, 16
    %v1122 = vshrl.u32 %v866, 16
    %v1123 = vshrl.u32 %v867, 16
    %v1124 = vshrl.u32 %v868, 16
    %v1125 = vshrl.u32 %v869, 16
    %v1126 = vshrl.u32 %v870, 16
    %v1127 = vshrl.u32 %v871, 16
    %v1128 = vshrl.u32 %v872, 16
    %v1129 = vshrl.u32 %v873, 16
    %v1130 = vshrl.u32 %v874, 16
    %v1131 = vshrl.u32 %v875, 16
    %v1132 = vshrl.u32 %v876, 16
    %v1133 = vshrl.u32 %v877, 16
    %v1134 = vshrl.u32 %v878, 16
    %v1135 = vshrl.u32 %v879, 16
    %v1136 = vshrl.u32 %v880, 16
    %v1137 = vshrl.u32 %v881, 16
    %v1138 = vshrl.u32 %v882, 16
    %v1139 = vshrl.u32 %v883, 16
    %v1140 = vshrl.u32 %v884, 16
    %v1141 = vshrl.u32 %v885, 16
    %v1142 = vshrl.u32 %v886, 16
    %v1143 = vshrl.u32 %v887, 16
    %v1144 = vshrl.u32 %v888, 16
    %v1145 = vshrl.u32 %v889, 16
    %v1146 = vshrl.u32 %v890, 16
    %v1147 = vshrl.u32 %v891, 16
    %v1148 = vshrl.u32 %v892, 16
    %v1149 = vshrl.u32 %v893, 16
    %v1150 = vshrl.u32 %v894, 16
    %v1151 = vshrl.u32 %v895, 16
    %v1152 = vshrl.u32 %v896, 16
    %v1153 = vshrl.u32 %v897, 16
    %v1154 = vshrl.u32 %v898, 16
    %v1155 = vshrl.u32 %v899, 16
    %v1156 = vshrl.u32 %v900, 16
    %v1157 = vshrl.u32 %v901, 16
    %v1158 = vshrl.u32 %v902, 16
    %v1159 = vshrl.u32 %v903, 16
    %v1160 = vshrl.u32 %v904, 16
    %v1161 = vshrl.u32 %v905, 16
    %v1162 = vshrl.u32 %v906, 16
    %v1163 = vshrl.u32 %v907, 16
    %v1164 = vshrl.u32 %v908, 16
    %v1165 = vshrl.u32 %v909, 16
    %v1166 = vshrl.u32 %v910, 16
    %v1167 = vshrl.u32 %v911, 16
    %v1168 = vshrl.u32 %v912, 16
    %v1169 = vshrl.u32 %v913, 16
    %v1170 = vshrl.u32 %v914, 16
    %v1171 = vshrl.u32 %v915, 16
    %v1172 = vshrl.u32 %v916, 16
    %v1173 = vshrl.u32 %v917, 16
    %v1174 = vshrl.u32 %v918, 16
    %v1175 = vshrl.u32 %v919, 16
    %v1176 = vshrl.u32 %v920, 16
    %v1177 = vshrl.u32 %v921, 16
    %v1178 = vshrl.u32 %v922, 16
    %v1179 = vshrl.u32 %v923, 16
    %v1180 = vshrl.u32 %v924, 16
    %v1181 = vshrl.u32 %v925, 16
    %v1182 = vshrl.u32 %v926, 16
    %v1183 = vshrl.u32 %v927, 16
    %v1184 = vshrl.u32 %v928, 16
    %v1185 = vshrl.u32 %v929, 16
    %v1186 = vshrl.u32 %v930, 16
    %v1187 = vshrl.u32 %v931, 16
    %v1188 = vshrl.u32 %v932, 16
    %v1189 = vshrl.u32 %v933, 16
    %v1190 = vshrl.u32 %v934, 16
    %v1191 = vshrl.u32 %v935, 16
    %v1192 = vshrl.u32 %v936, 16
    %v1193 = vshrl.u32 %v937, 16
    %v1194 = vshrl.u32 %v938, 16
    %v1195 = vshrl.u32 %v939, 16
    %v1196 = vshrl.u32 %v940, 16
    %v1197 = vshrl.u32 %v941, 16
    %v1198 = vshrl.u32 %v942, 16
    %v1199 = vshrl.u32 %v943, 16
    %v1200 = vshrl.u32 %v944, 16
    %v1201 = vshrl.u32 %v945, 16
    %v1202 = vshrl.u32 %v946, 16
    %v1203 = vshrl.u32 %v947, 16
    %v1204 = vshrl.u32 %v948, 16
    %v1205 = vshrl.u32 %v949, 16
    %v1206 = vshrl.u32 %v950, 16
    %v1207 = vshrl.u32 %v951, 16
    %v1208 = vshrl.u32 %v952, 16
    %v1209 = vshrl.u32 %v953, 16
    %v1210 = vshrl.u32 %v954, 16
    %v1211 = vshrl.u32 %v955, 16
    %v1212 = vshrl.u32 %v956, 16
    %v1213 = vshrl.u32 %v957, 16
    %v1214 = vshrl.u32 %v958, 16
    %v1215 = vshrl.u32 %v959, 16
    %v1216 = vshrl.u32 %v960, 16
    %v1217 = vshrl.u32 %v961, 16
    %v1218 = vshrl.u32 %v962, 16
    %v1219 = vshrl.u32 %v963, 16
    %v1220 = vshrl.u32 %v964, 16
    %v1221 = vshrl.u32 %v965, 16
    %v1222 = vshrl.u32 %v966, 16
    %v1223 = vshrl.u32 %v967, 16
    %v1224 = vshrl.u32 %v968, 16
    %v1225 = vshrl.u32 %v969, 16
    %v1226 = vshrl.u32 %v970, 16
    %v1227 = vshrl.u32 %v971, 16
    %v1228 = vshrl.u32 %v972, 16
    %v1229 = vshrl.u32 %v973, 16
    %v1230 = vshrl.u32 %v974, 16
    %v1231 = vshrl.u32 %v975, 16
    %v1232 = vshrl.u32 %v976, 16
    %v1233 = vshrl.u32 %v977, 16
    %v1234 = vshrl.u32 %v978, 16
    %v1235 = vshrl.u32 %v979, 16
    %v1236 = vshrl.u32 %v980, 16
    %v1237 = vshrl.u32 %v981, 16
    %v1238 = vshrl.u32 %v982, 16
    %v1239 = vshrl.u32 %v983, 16
    %v1240 = vshrl.u32 %v984, 16
    %v1241 = vshrl.u32 %v985, 16
    %v1242 = vshrl.u32 %v986, 16
    %v1243 = vshrl.u32 %v987, 16
    %v1244 = vshrl.u32 %v988, 16
    %v1245 = vshrl.u32 %v989, 16
    %v1246 = vshrl.u32 %v990, 16
    %v1247 = vshrl.u32 %v991, 16
    %v1248 = vshrl.u32 %v992, 16
    %v1249 = vshrl.u32 %v993, 16
    %v1250 = vshrl.u32 %v994, 16
    %v1251 = vshrl.u32 %v995, 16
    %v1252 = vshrl.u32 %v996, 16
    %v1253 = vshrl.u32 %v997, 16
    %v1254 = vshrl.u32 %v998, 16
    %v1255 = vshrl.u32 %v999, 16
    %v1256 = vshrl.u32 %v1000, 16
    %v1257 = vshrl.u32 %v1001, 16
    %v1258 = vshrl.u32 %v1002, 16
    %v1259 = vshrl.u32 %v1003, 16
    %v1260 = vshrl.u32 %v1004, 16
    %v1261 = vshrl.u32 %v1005, 16
    %v1262 = vshrl.u32 %v1006, 16
    %v1263 = vshrl.u32 %v1007, 16
    %v1264 = vshrl.u32 %v1008, 16
    %v1265 = vshrl.u32 %v1009, 16
    %v1266 = vshrl.u32 %v1010, 16
    %v1267 = vshrl.u32 %v1011, 16
    %v1268 = vshrl.u32 %v1012, 16
    %v1269 = vshrl.u32 %v1013, 16
    %v1270 = vshrl.u32 %v1014, 16
    %v1271 = vshrl.u32 %v1015, 16
    %v1272 = vshrl.u32 %v1016, 16
    %v1273 = vshrl.u32 %v1017, 16
    %v1274 = vshrl.u32 %v1018, 16
    %v1275 = vshrl.u32 %v1019, 16
    %v1276 = vshrl.u32 %v1020, 16
    %v1277 = vshrl.u32 %v1021, 16
    %v1278 = vshrl.u32 %v1022, 16
    %v1279 = vshrl.u32 %v1023, 16
    %v1280 = vshrl.u32 %v1024, 16
    %v1281 = vshrl.u32 %v1025, 16
    %v1282 = vshrl.u32 %v1026, 16
    %v1283 = vshrl.u32 %v1027, 16
    %v1284 = vshrl.u32 %v1028, 16
    %v1285 = vshrl.u32 %v1029, 16
    %v1286 = vshrl.u32 %v1030, 16
    %v1287 = vshrl.u32 %v1031, 16
    %v1288 = vshrl.u32 %v1032, 16
    %v1289 = vshrl.u32 %v1033, 16
    %v1290 = vshrl.u32 %v1034, 16
    %v1291 = vshrl.u32 %v1035, 16
    %v1292 = vshrl.u32 %v1036, 16
    %v1293 = vshrl.u32 %v1037, 16
    %v1294 = vshrl.u32 %v1038, 16
    %v1295 = vshrl.u32 %v1039, 16
    %v1296 = vshrl.u32 %v1040, 16
    %v1297 = vshrl.u32 %v1041, 16
    %v1298 = vshrl.u32 %v1042, 16
    %v1299 = vxor.u32 %v787, %v1043
    %v1300 = vxor.u32 %v788, %v1044
    %v1301 = vxor.u32 %v789, %v1045
    %v1302 = vxor.u32 %v790, %v1046
    %v1303 = vxor.u32 %v791, %v1047
    %v1304 = vxor.u32 %v792, %v1048
    %v1305 = vxor.u32 %v793, %v1049
    %v1306 = vxor.u32 %v794, %v1050
    %v1307 = vxor.u32 %v795, %v1051
    %v1308 = vxor.u32 %v796, %v1052
    %v1309 = vxor.u32 %v797, %v1053
    %v1310 = vxor.u32 %v798, %v1054
    %v1311 = vxor.u32 %v799, %v1055
    %v1312 = vxor.u32 %v800, %v1056
    %v1313 = vxor.u32 %v801, %v1057
    %v1314 = vxor.u32 %v802, %v1058
    %v1315 = vxor.u32 %v803, %v1059
    %v1316 = vxor.u32 %v804, %v1060
    %v1317 = vxor.u32 %v805, %v1061
    %v1318 = vxor.u32 %v806, %v1062
    %v1319 = vxor.u32 %v807, %v1063
    %v1320 = vxor.u32 %v808, %v1064
    %v1321 = vxor.u32 %v809, %v1065
    %v1322 = vxor.u32 %v810, %v1066
    %v1323 = vxor.u32 %v811, %v1067
    %v1324 = vxor.u32 %v812, %v1068
    %v1325 = vxor.u32 %v813, %v1069
    %v1326 = vxor.u32 %v814, %v1070
    %v1327 = vxor.u32 %v815, %v1071
    %v1328 = vxor.u32 %v816, %v1072
    %v1329 = vxor.u32 %v817, %v1073
    %v1330 = vxor.u32 %v818, %v1074
    %v1331 = vxor.u32 %v819, %v1075
    %v1332 = vxor.u32 %v820, %v1076
    %v1333 = vxor.u32 %v821, %v1077
    %v1334 = vxor.u32 %v822, %v1078
    %v1335 = vxor.u32 %v823, %v1079
    %v1336 = vxor.u32 %v824, %v1080
    %v1337 = vxor.u32 %v825, %v1081
    %v1338 = vxor.u32 %v826, %v1082
    %v1339 = vxor.u32 %v827, %v1083
    %v1340 = vxor.u32 %v828, %v1084
    %v1341 = vxor.u32 %v829, %v1085
    %v1342 = vxor.u32 %v830, %v1086
    %v1343 = vxor.u32 %v831, %v1087
    %v1344 = vxor.u32 %v832, %v1088
    %v1345 = vxor.u32 %v833, %v1089
    %v1346 = vxor.u32 %v834, %v1090
    %v1347 = vxor.u32 %v835, %v1091
    %v1348 = vxor.u32 %v836, %v1092
    %v1349 = vxor.u32 %v837, %v1093
    %v1350 = vxor.u32 %v838, %v1094
    %v1351 = vxor.u32 %v839, %v1095
    %v1352 = vxor.u32 %v840, %v1096
    %v1353 = vxor.u32 %v841, %v1097
    %v1354 = vxor.u32 %v842, %v1098
    %v1355 = vxor.u32 %v843, %v1099
    %v1356 = vxor.u32 %v844, %v1100
    %v1357 = vxor.u32 %v845, %v1101
    %v1358 = vxor.u32 %v846, %v1102
    %v1359 = vxor.u32 %v847, %v1103
    %v1360 = vxor.u32 %v848, %v1104
    %v1361 = vxor.u32 %v849, %v1105
    %v1362 = vxor.u32 %v850, %v1106
    %v1363 = vxor.u32 %v851, %v1107
    %v1364 = vxor.u32 %v852, %v1108
    %v1365 = vxor.u32 %v853, %v1109
    %v1366 = vxor.u32 %v854, %v1110
    %v1367 = vxor.u32 %v855, %v1111
    %v1368 = vxor.u32 %v856, %v1112
    %v1369 = vxor.u32 %v857, %v1113
    %v1370 = vxor.u32 %v858, %v1114
    %v1371 = vxor.u32 %v859, %v1115
    %v1372 = vxor.u32 %v860, %v1116
    %v1373 = vxor.u32 %v861, %v1117
    %v1374 = vxor.u32 %v862, %v1118
    %v1375 = vxor.u32 %v863, %v1119
    %v1376 = vxor.u32 %v864, %v1120
    %v1377 = vxor.u32 %v865, %v1121
    %v1378 = vxor.u32 %v866, %v1122
    %v1379 = vxor.u32 %v867, %v1123
    %v1380 = vxor.u32 %v868, %v1124
    %v1381 = vxor.u32 %v869, %v1125
    %v1382 = vxor.u32 %v870, %v1126
    %v1383 = vxor.u32 %v871, %v1127
    %v1384 = vxor.u32 %v872, %v1128
    %v1385 = vxor.u32 %v873, %v1129
    %v1386 = vxor.u32 %v874, %v1130
    %v1387 = vxor.u32 %v875, %v1131
    %v1388 = vxor.u32 %v876, %v1132
    %v1389 = vxor.u32 %v877, %v1133
    %v1390 = vxor.u32 %v878, %v1134
    %v1391 = vxor.u32 %v879, %v1135
    %v1392 = vxor.u32 %v880, %v1136
    %v1393 = vxor.u32 %v881, %v1137
    %v1394 = vxor.u32 %v882, %v1138
    %v1395 = vxor.u32 %v883, %v1139
    %v1396 = vxor.u32 %v884, %v1140
    %v1397 = vxor.u32 %v885, %v1141
    %v1398 = vxor.u32 %v886, %v1142
    %v1399 = vxor.u32 %v887, %v1143
    %v1400 = vxor.u32 %v888, %v1144
    %v1401 = vxor.u32 %v889, %v1145
    %v1402 = vxor.u32 %v890, %v1146
    %v1403 = vxor.u32 %v891, %v1147
    %v1404 = vxor.u32 %v892, %v1148
    %v1405 = vxor.u32 %v893, %v1149
    %v1406 = vxor.u32 %v894, %v1150
    %v1407 = vxor.u32 %v895, %v1151
    %v1408 = vxor.u32 %v896, %v1152
    %v1409 = vxor.u32 %v897, %v1153
    %v1410 = vxor.u32 %v898, %v1154
    %v1411 = vxor.u32 %v899, %v1155
    %v1412 = vxor.u32 %v900, %v1156
    %v1413 = vxor.u32 %v901, %v1157
    %v1414 = vxor.u32 %v902, %v1158
    %v1415 = vxor.u32 %v903, %v1159
    %v1416 = vxor.u32 %v904, %v1160
    %v1417 = vxor.u32 %v905, %v1161
    %v1418 = vxor.u32 %v906, %v1162
    %v1419 = vxor.u32 %v907, %v1163
    %v1420 = vxor.u32 %v908, %v1164
    %v1421 = vxor.u32 %v909, %v1165
    %v1422 = vxor.u32 %v910, %v1166
    %v1423 = vxor.u32 %v911, %v1167
    %v1424 = vxor.u32 %v912, %v1168
    %v1425 = vxor.u32 %v913, %v1169
    %v1426 = vxor.u32 %v914, %v1170
    %v1427 = vxor.u32 %v915, %v1171
    %v1428 = vxor.u32 %v916, %v1172
    %v1429 = vxor.u32 %v917, %v1173
    %v1430 = vxor.u32 %v918, %v1174
    %v1431 = vxor.u32 %v919, %v1175
    %v1432 = vxor.u32 %v920, %v1176
    %v1433 = vxor.u32 %v921, %v1177
    %v1434 = vxor.u32 %v922, %v1178
    %v1435 = vxor.u32 %v923, %v1179
    %v1436 = vxor.u32 %v924, %v1180
    %v1437 = vxor.u32 %v925, %v1181
    %v1438 = vxor.u32 %v926, %v1182
    %v1439 = vxor.u32 %v927, %v1183
    %v1440 = vxor.u32 %v928, %v1184
    %v1441 = vxor.u32 %v929, %v1185
    %v1442 = vxor.u32 %v930, %v1186
    %v1443 = vxor.u32 %v931, %v1187
    %v1444 = vxor.u32 %v932, %v1188
    %v1445 = vxor.u32 %v933, %v1189
    %v1446 = vxor.u32 %v934, %v1190
    %v1447 = vxor.u32 %v935, %v1191
    %v1448 = vxor.u32 %v936, %v1192
    %v1449 = vxor.u32 %v937, %v1193
    %v1450 = vxor.u32 %v938, %v1194
    %v1451 = vxor.u32 %v939, %v1195
    %v1452 = vxor.u32 %v940, %v1196
    %v1453 = vxor.u32 %v941, %v1197
    %v1454 = vxor.u32 %v942, %v1198
    %v1455 = vxor.u32 %v943, %v1199
    %v1456 = vxor.u32 %v944, %v1200
    %v1457 = vxor.u32 %v945, %v1201
    %v1458 = vxor.u32 %v946, %v1202
    %v1459 = vxor.u32 %v947, %v1203
    %v1460 = vxor.u32 %v948, %v1204
    %v1461 = vxor.u32 %v949, %v1205
    %v1462 = vxor.u32 %v950, %v1206
    %v1463 = vxor.u32 %v951, %v1207
    %v1464 = vxor.u32 %v952, %v1208
    %v1465 = vxor.u32 %v953, %v1209
    %v1466 = vxor.u32 %v954, %v1210
    %v1467 = vxor.u32 %v955, %v1211
    %v1468 = vxor.u32 %v956, %v1212
    %v1469 = vxor.u32 %v957, %v1213
    %v1470 = vxor.u32 %v958, %v1214
    %v1471 = vxor.u32 %v959, %v1215
    %v1472 = vxor.u32 %v960, %v1216
    %v1473 = vxor.u32 %v961, %v1217
    %v1474 = vxor.u32 %v962, %v1218
    %v1475 = vxor.u32 %v963, %v1219
    %v1476 = vxor.u32 %v964, %v1220
    %v1477 = vxor.u32 %v965, %v1221
    %v1478 = vxor.u32 %v966, %v1222
    %v1479 = vxor.u32 %v967, %v1223
    %v1480 = vxor.u32 %v968, %v1224
    %v1481 = vxor.u32 %v969, %v1225
    %v1482 = vxor.u32 %v970, %v1226
    %v1483 = vxor.u32 %v971, %v1227
    %v1484 = vxor.u32 %v972, %v1228
    %v1485 = vxor.u32 %v973, %v1229
    %v1486 = vxor.u32 %v974, %v1230
    %v1487 = vxor.u32 %v975, %v1231
    %v1488 = vxor.u32 %v976, %v1232
    %v1489 = vxor.u32 %v977, %v1233
    %v1490 = vxor.u32 %v978, %v1234
    %v1491 = vxor.u32 %v979, %v1235
    %v1492 = vxor.u32 %v980, %v1236
    %v1493 = vxor.u32 %v981, %v1237
    %v1494 = vxor.u32 %v982, %v1238
    %v1495 = vxor.u32 %v983, %v1239
    %v1496 = vxor.u32 %v984, %v1240
    %v1497 = vxor.u32 %v985, %v1241
    %v1498 = vxor.u32 %v986, %v1242
    %v1499 = vxor.u32 %v987, %v1243
    %v1500 = vxor.u32 %v988, %v1244
    %v1501 = vxor.u32 %v989, %v1245
    %v1502 = vxor.u32 %v990, %v1246
    %v1503 = vxor.u32 %v991, %v1247
    %v1504 = vxor.u32 %v992, %v1248
    %v1505 = vxor.u32 %v993, %v1249
    %v1506 = vxor.u32 %v994, %v1250
    %v1507 = vxor.u32 %v995, %v1251
    %v1508 = vxor.u32 %v996, %v1252
    %v1509 = vxor.u32 %v997, %v1253
    %v1510 = vxor.u32 %v998, %v1254
    %v1511 = vxor.u32 %v999, %v1255
    %v1512 = vxor.u32 %v1000, %v1256
    %v1513 = vxor.u32 %v1001, %v1257
    %v1514 = vxor.u32 %v1002, %v1258
    %v1515 = vxor.u32 %v1003, %v1259
    %v1516 = vxor.u32 %v1004, %v1260
    %v1517 = vxor.u32 %v1005, %v1261
    %v1518 = vxor.u32 %v1006, %v1262
    %v1519 = vxor.u32 %v1007, %v1263
    %v1520 = vxor.u32 %v1008, %v1264
    %v1521 = vxor.u32 %v1009, %v1265
    %v1522 = vxor.u32 %v1010, %v1266
    %v1523 = vxor.u32 %v1011, %v1267
    %v1524 = vxor.u32 %v1012, %v1268
    %v1525 = vxor.u32 %v1013, %v1269
    %v1526 = vxor.u32 %v1014, %v1270
    %v1527 = vxor.u32 %v1015, %v1271
    %v1528 = vxor.u32 %v1016, %v1272
    %v1529 = vxor.u32 %v1017, %v1273
    %v1530 = vxor.u32 %v1018, %v1274
    %v1531 = vxor.u32 %v1019, %v1275
    %v1532 = vxor.u32 %v1020, %v1276
    %v1533 = vxor.u32 %v1021, %v1277
    %v1534 = vxor.u32 %v1022, %v1278
    %v1535 = vxor.u32 %v1023, %v1279
    %v1536 = vxor.u32 %v1024, %v1280
    %v1537 = vxor.u32 %v1025, %v1281
    %v1538 = vxor.u32 %v1026, %v1282
    %v1539 = vxor.u32 %v1027, %v1283
    %v1540 = vxor.u32 %v1028, %v1284
    %v1541 = vxor.u32 %v1029, %v1285
    %v1542 = vxor.u32 %v1030, %v1286
    %v1543 = vxor.u32 %v1031, %v1287
    %v1544 = vxor.u32 %v1032, %v1288
    %v1545 = vxor.u32 %v1033, %v1289
    %v1546 = vxor.u32 %v1034, %v1290
    %v1547 = vxor.u32 %v1035, %v1291
    %v1548 = vxor.u32 %v1036, %v1292
    %v1549 = vxor.u32 %v1037, %v1293
    %v1550 = vxor.u32 %v1038, %v1294
    %v1551 = vxor.u32 %v1039, %v1295
    %v1552 = vxor.u32 %v1040, %v1296
    %v1553 = vxor.u32 %v1041, %v1297
    %v1554 = vxor.u32 %v1042, %v1298
    %v1555 = vmul.u32 %v1299, 2146121005
    %v1556 = vmul.u32 %v1300, 2146121005
    %v1557 = vmul.u32 %v1301, 2146121005
    %v1558 = vmul.u32 %v1302, 2146121005
    %v1559 = vmul.u32 %v1303, 2146121005
    %v1560 = vmul.u32 %v1304, 2146121005
    %v1561 = vmul.u32 %v1305, 2146121005
    %v1562 = vmul.u32 %v1306, 2146121005
    %v1563 = vmul.u32 %v1307, 2146121005
    %v1564 = vmul.u32 %v1308, 2146121005
    %v1565 = vmul.u32 %v1309, 2146121005
    %v1566 = vmul.u32 %v1310, 2146121005
    %v1567 = vmul.u32 %v1311, 2146121005
    %v1568 = vmul.u32 %v1312, 2146121005
    %v1569 = vmul.u32 %v1313, 2146121005
    %v1570 = vmul.u32 %v1314, 2146121005
    %v1571 = vmul.u32 %v1315, 2146121005
    %v1572 = vmul.u32 %v1316, 2146121005
    %v1573 = vmul.u32 %v1317, 2146121005
    %v1574 = vmul.u32 %v1318, 2146121005
    %v1575 = vmul.u32 %v1319, 2146121005
    %v1576 = vmul.u32 %v1320, 2146121005
    %v1577 = vmul.u32 %v1321, 2146121005
    %v1578 = vmul.u32 %v1322, 2146121005
    %v1579 = vmul.u32 %v1323, 2146121005
    %v1580 = vmul.u32 %v1324, 2146121005
    %v1581 = vmul.u32 %v1325, 2146121005
    %v1582 = vmul.u32 %v1326, 2146121005
    %v1583 = vmul.u32 %v1327, 2146121005
    %v1584 = vmul.u32 %v1328, 2146121005
    %v1585 = vmul.u32 %v1329, 2146121005
    %v1586 = vmul.u32 %v1330, 2146121005
    %v1587 = vmul.u32 %v1331, 2146121005
    %v1588 = vmul.u32 %v1332, 2146121005
    %v1589 = vmul.u32 %v1333, 2146121005
    %v1590 = vmul.u32 %v1334, 2146121005
    %v1591 = vmul.u32 %v1335, 2146121005
    %v1592 = vmul.u32 %v1336, 2146121005
    %v1593 = vmul.u32 %v1337, 2146121005
    %v1594 = vmul.u32 %v1338, 2146121005
    %v1595 = vmul.u32 %v1339, 2146121005
    %v1596 = vmul.u32 %v1340, 2146121005
    %v1597 = vmul.u32 %v1341, 2146121005
    %v1598 = vmul.u32 %v1342, 2146121005
    %v1599 = vmul.u32 %v1343, 2146121005
    %v1600 = vmul.u32 %v1344, 2146121005
    %v1601 = vmul.u32 %v1345, 2146121005
    %v1602 = vmul.u32 %v1346, 2146121005
    %v1603 = vmul.u32 %v1347, 2146121005
    %v1604 = vmul.u32 %v1348, 2146121005
    %v1605 = vmul.u32 %v1349, 2146121005
    %v1606 = vmul.u32 %v1350, 2146121005
    %v1607 = vmul.u32 %v1351, 2146121005
    %v1608 = vmul.u32 %v1352, 2146121005
    %v1609 = vmul.u32 %v1353, 2146121005
    %v1610 = vmul.u32 %v1354, 2146121005
    %v1611 = vmul.u32 %v1355, 2146121005
    %v1612 = vmul.u32 %v1356, 2146121005
    %v1613 = vmul.u32 %v1357, 2146121005
    %v1614 = vmul.u32 %v1358, 2146121005
    %v1615 = vmul.u32 %v1359, 2146121005
    %v1616 = vmul.u32 %v1360, 2146121005
    %v1617 = vmul.u32 %v1361, 2146121005
    %v1618 = vmul.u32 %v1362, 2146121005
    %v1619 = vmul.u32 %v1363, 2146121005
    %v1620 = vmul.u32 %v1364, 2146121005
    %v1621 = vmul.u32 %v1365, 2146121005
    %v1622 = vmul.u32 %v1366, 2146121005
    %v1623 = vmul.u32 %v1367, 2146121005
    %v1624 = vmul.u32 %v1368, 2146121005
    %v1625 = vmul.u32 %v1369, 2146121005
    %v1626 = vmul.u32 %v1370, 2146121005
    %v1627 = vmul.u32 %v1371, 2146121005
    %v1628 = vmul.u32 %v1372, 2146121005
    %v1629 = vmul.u32 %v1373, 2146121005
    %v1630 = vmul.u32 %v1374, 2146121005
    %v1631 = vmul.u32 %v1375, 2146121005
    %v1632 = vmul.u32 %v1376, 2146121005
    %v1633 = vmul.u32 %v1377, 2146121005
    %v1634 = vmul.u32 %v1378, 2146121005
    %v1635 = vmul.u32 %v1379, 2146121005
    %v1636 = vmul.u32 %v1380, 2146121005
    %v1637 = vmul.u32 %v1381, 2146121005
    %v1638 = vmul.u32 %v1382, 2146121005
    %v1639 = vmul.u32 %v1383, 2146121005
    %v1640 = vmul.u32 %v1384, 2146121005
    %v1641 = vmul.u32 %v1385, 2146121005
    %v1642 = vmul.u32 %v1386, 2146121005
    %v1643 = vmul.u32 %v1387, 2146121005
    %v1644 = vmul.u32 %v1388, 2146121005
    %v1645 = vmul.u32 %v1389, 2146121005
    %v1646 = vmul.u32 %v1390, 2146121005
    %v1647 = vmul.u32 %v1391, 2146121005
    %v1648 = vmul.u32 %v1392, 2146121005
    %v1649 = vmul.u32 %v1393, 2146121005
    %v1650 = vmul.u32 %v1394, 2146121005
    %v1651 = vmul.u32 %v1395, 2146121005
    %v1652 = vmul.u32 %v1396, 2146121005
    %v1653 = vmul.u32 %v1397, 2146121005
    %v1654 = vmul.u32 %v1398, 2146121005
    %v1655 = vmul.u32 %v1399, 2146121005
    %v1656 = vmul.u32 %v1400, 2146121005
    %v1657 = vmul.u32 %v1401, 2146121005
    %v1658 = vmul.u32 %v1402, 2146121005
    %v1659 = vmul.u32 %v1403, 2146121005
    %v1660 = vmul.u32 %v1404, 2146121005
    %v1661 = vmul.u32 %v1405, 2146121005
    %v1662 = vmul.u32 %v1406, 2146121005
    %v1663 = vmul.u32 %v1407, 2146121005
    %v1664 = vmul.u32 %v1408, 2146121005
    %v1665 = vmul.u32 %v1409, 2146121005
    %v1666 = vmul.u32 %v1410, 2146121005
    %v1667 = vmul.u32 %v1411, 2146121005
    %v1668 = vmul.u32 %v1412, 2146121005
    %v1669 = vmul.u32 %v1413, 2146121005
    %v1670 = vmul.u32 %v1414, 2146121005
    %v1671 = vmul.u32 %v1415, 2146121005
    %v1672 = vmul.u32 %v1416, 2146121005
    %v1673 = vmul.u32 %v1417, 2146121005
    %v1674 = vmul.u32 %v1418, 2146121005
    %v1675 = vmul.u32 %v1419, 2146121005
    %v1676 = vmul.u32 %v1420, 2146121005
    %v1677 = vmul.u32 %v1421, 2146121005
    %v1678 = vmul.u32 %v1422, 2146121005
    %v1679 = vmul.u32 %v1423, 2146121005
    %v1680 = vmul.u32 %v1424, 2146121005
    %v1681 = vmul.u32 %v1425, 2146121005
    %v1682 = vmul.u32 %v1426, 2146121005
    %v1683 = vmul.u32 %v1427, 2146121005
    %v1684 = vmul.u32 %v1428, 2146121005
    %v1685 = vmul.u32 %v1429, 2146121005
    %v1686 = vmul.u32 %v1430, 2146121005
    %v1687 = vmul.u32 %v1431, 2146121005
    %v1688 = vmul.u32 %v1432, 2146121005
    %v1689 = vmul.u32 %v1433, 2146121005
    %v1690 = vmul.u32 %v1434, 2146121005
    %v1691 = vmul.u32 %v1435, 2146121005
    %v1692 = vmul.u32 %v1436, 2146121005
    %v1693 = vmul.u32 %v1437, 2146121005
    %v1694 = vmul.u32 %v1438, 2146121005
    %v1695 = vmul.u32 %v1439, 2146121005
    %v1696 = vmul.u32 %v1440, 2146121005
    %v1697 = vmul.u32 %v1441, 2146121005
    %v1698 = vmul.u32 %v1442, 2146121005
    %v1699 = vmul.u32 %v1443, 2146121005
    %v1700 = vmul.u32 %v1444, 2146121005
    %v1701 = vmul.u32 %v1445, 2146121005
    %v1702 = vmul.u32 %v1446, 2146121005
    %v1703 = vmul.u32 %v1447, 2146121005
    %v1704 = vmul.u32 %v1448, 2146121005
    %v1705 = vmul.u32 %v1449, 2146121005
    %v1706 = vmul.u32 %v1450, 2146121005
    %v1707 = vmul.u32 %v1451, 2146121005
    %v1708 = vmul.u32 %v1452, 2146121005
    %v1709 = vmul.u32 %v1453, 2146121005
    %v1710 = vmul.u32 %v1454, 2146121005
    %v1711 = vmul.u32 %v1455, 2146121005
    %v1712 = vmul.u32 %v1456, 2146121005
    %v1713 = vmul.u32 %v1457, 2146121005
    %v1714 = vmul.u32 %v1458, 2146121005
    %v1715 = vmul.u32 %v1459, 2146121005
    %v1716 = vmul.u32 %v1460, 2146121005
    %v1717 = vmul.u32 %v1461, 2146121005
    %v1718 = vmul.u32 %v1462, 2146121005
    %v1719 = vmul.u32 %v1463, 2146121005
    %v1720 = vmul.u32 %v1464, 2146121005
    %v1721 = vmul.u32 %v1465, 2146121005
    %v1722 = vmul.u32 %v1466, 2146121005
    %v1723 = vmul.u32 %v1467, 2146121005
    %v1724 = vmul.u32 %v1468, 2146121005
    %v1725 = vmul.u32 %v1469, 2146121005
    %v1726 = vmul.u32 %v1470, 2146121005
    %v1727 = vmul.u32 %v1471, 2146121005
    %v1728 = vmul.u32 %v1472, 2146121005
    %v1729 = vmul.u32 %v1473, 2146121005
    %v1730 = vmul.u32 %v1474, 2146121005
    %v1731 = vmul.u32 %v1475, 2146121005
    %v1732 = vmul.u32 %v1476, 2146121005
    %v1733 = vmul.u32 %v1477, 2146121005
    %v1734 = vmul.u32 %v1478, 2146121005
    %v1735 = vmul.u32 %v1479, 2146121005
    %v1736 = vmul.u32 %v1480, 2146121005
    %v1737 = vmul.u32 %v1481, 2146121005
    %v1738 = vmul.u32 %v1482, 2146121005
    %v1739 = vmul.u32 %v1483, 2146121005
    %v1740 = vmul.u32 %v1484, 2146121005
    %v1741 = vmul.u32 %v1485, 2146121005
    %v1742 = vmul.u32 %v1486, 2146121005
    %v1743 = vmul.u32 %v1487, 2146121005
    %v1744 = vmul.u32 %v1488, 2146121005
    %v1745 = vmul.u32 %v1489, 2146121005
    %v1746 = vmul.u32 %v1490, 2146121005
    %v1747 = vmul.u32 %v1491, 2146121005
    %v1748 = vmul.u32 %v1492, 2146121005
    %v1749 = vmul.u32 %v1493, 2146121005
    %v1750 = vmul.u32 %v1494, 2146121005
    %v1751 = vmul.u32 %v1495, 2146121005
    %v1752 = vmul.u32 %v1496, 2146121005
    %v1753 = vmul.u32 %v1497, 2146121005
    %v1754 = vmul.u32 %v1498, 2146121005
    %v1755 = vmul.u32 %v1499, 2146121005
    %v1756 = vmul.u32 %v1500, 2146121005
    %v1757 = vmul.u32 %v1501, 2146121005
    %v1758 = vmul.u32 %v1502, 2146121005
    %v1759 = vmul.u32 %v1503, 2146121005
    %v1760 = vmul.u32 %v1504, 2146121005
    %v1761 = vmul.u32 %v1505, 2146121005
    %v1762 = vmul.u32 %v1506, 2146121005
    %v1763 = vmul.u32 %v1507, 2146121005
    %v1764 = vmul.u32 %v1508, 2146121005
    %v1765 = vmul.u32 %v1509, 2146121005
    %v1766 = vmul.u32 %v1510, 2146121005
    %v1767 = vmul.u32 %v1511, 2146121005
    %v1768 = vmul.u32 %v1512, 2146121005
    %v1769 = vmul.u32 %v1513, 2146121005
    %v1770 = vmul.u32 %v1514, 2146121005
    %v1771 = vmul.u32 %v1515, 2146121005
    %v1772 = vmul.u32 %v1516, 2146121005
    %v1773 = vmul.u32 %v1517, 2146121005
    %v1774 = vmul.u32 %v1518, 2146121005
    %v1775 = vmul.u32 %v1519, 2146121005
    %v1776 = vmul.u32 %v1520, 2146121005
    %v1777 = vmul.u32 %v1521, 2146121005
    %v1778 = vmul.u32 %v1522, 2146121005
    %v1779 = vmul.u32 %v1523, 2146121005
    %v1780 = vmul.u32 %v1524, 2146121005
    %v1781 = vmul.u32 %v1525, 2146121005
    %v1782 = vmul.u32 %v1526, 2146121005
    %v1783 = vmul.u32 %v1527, 2146121005
    %v1784 = vmul.u32 %v1528, 2146121005
    %v1785 = vmul.u32 %v1529, 2146121005
    %v1786 = vmul.u32 %v1530, 2146121005
    %v1787 = vmul.u32 %v1531, 2146121005
    %v1788 = vmul.u32 %v1532, 2146121005
    %v1789 = vmul.u32 %v1533, 2146121005
    %v1790 = vmul.u32 %v1534, 2146121005
    %v1791 = vmul.u32 %v1535, 2146121005
    %v1792 = vmul.u32 %v1536, 2146121005
    %v1793 = vmul.u32 %v1537, 2146121005
    %v1794 = vmul.u32 %v1538, 2146121005
    %v1795 = vmul.u32 %v1539, 2146121005
    %v1796 = vmul.u32 %v1540, 2146121005
    %v1797 = vmul.u32 %v1541, 2146121005
    %v1798 = vmul.u32 %v1542, 2146121005
    %v1799 = vmul.u32 %v1543, 2146121005
    %v1800 = vmul.u32 %v1544, 2146121005
    %v1801 = vmul.u32 %v1545, 2146121005
    %v1802 = vmul.u32 %v1546, 2146121005
    %v1803 = vmul.u32 %v1547, 2146121005
    %v1804 = vmul.u32 %v1548, 2146121005
    %v1805 = vmul.u32 %v1549, 2146121005
    %v1806 = vmul.u32 %v1550, 2146121005
    %v1807 = vmul.u32 %v1551, 2146121005
    %v1808 = vmul.u32 %v1552, 2146121005
    %v1809 = vmul.u32 %v1553, 2146121005
    %v1810 = vmul.u32 %v1554, 2146121005
    %v1811 = vshrl.u32 %v1555, 15
    %v1812 = vshrl.u32 %v1556, 15
    %v1813 = vshrl.u32 %v1557, 15
    %v1814 = vshrl.u32 %v1558, 15
    %v1815 = vshrl.u32 %v1559, 15
    %v1816 = vshrl.u32 %v1560, 15
    %v1817 = vshrl.u32 %v1561, 15
    %v1818 = vshrl.u32 %v1562, 15
    %v1819 = vshrl.u32 %v1563, 15
    %v1820 = vshrl.u32 %v1564, 15
    %v1821 = vshrl.u32 %v1565, 15
    %v1822 = vshrl.u32 %v1566, 15
    %v1823 = vshrl.u32 %v1567, 15
    %v1824 = vshrl.u32 %v1568, 15
    %v1825 = vshrl.u32 %v1569, 15
    %v1826 = vshrl.u32 %v1570, 15
    %v1827 = vshrl.u32 %v1571, 15
    %v1828 = vshrl.u32 %v1572, 15
    %v1829 = vshrl.u32 %v1573, 15
    %v1830 = vshrl.u32 %v1574, 15
    %v1831 = vshrl.u32 %v1575, 15
    %v1832 = vshrl.u32 %v1576, 15
    %v1833 = vshrl.u32 %v1577, 15
    %v1834 = vshrl.u32 %v1578, 15
    %v1835 = vshrl.u32 %v1579, 15
    %v1836 = vshrl.u32 %v1580, 15
    %v1837 = vshrl.u32 %v1581, 15
    %v1838 = vshrl.u32 %v1582, 15
    %v1839 = vshrl.u32 %v1583, 15
    %v1840 = vshrl.u32 %v1584, 15
    %v1841 = vshrl.u32 %v1585, 15
    %v1842 = vshrl.u32 %v1586, 15
    %v1843 = vshrl.u32 %v1587, 15
    %v1844 = vshrl.u32 %v1588, 15
    %v1845 = vshrl.u32 %v1589, 15
    %v1846 = vshrl.u32 %v1590, 15
    %v1847 = vshrl.u32 %v1591, 15
    %v1848 = vshrl.u32 %v1592, 15
    %v1849 = vshrl.u32 %v1593, 15
    %v1850 = vshrl.u32 %v1594, 15
    %v1851 = vshrl.u32 %v1595, 15
    %v1852 = vshrl.u32 %v1596, 15
    %v1853 = vshrl.u32 %v1597, 15
    %v1854 = vshrl.u32 %v1598, 15
    %v1855 = vshrl.u32 %v1599, 15
    %v1856 = vshrl.u32 %v1600, 15
    %v1857 = vshrl.u32 %v1601, 15
    %v1858 = vshrl.u32 %v1602, 15
    %v1859 = vshrl.u32 %v1603, 15
    %v1860 = vshrl.u32 %v1604, 15
    %v1861 = vshrl.u32 %v1605, 15
    %v1862 = vshrl.u32 %v1606, 15
    %v1863 = vshrl.u32 %v1607, 15
    %v1864 = vshrl.u32 %v1608, 15
    %v1865 = vshrl.u32 %v1609, 15
    %v1866 = vshrl.u32 %v1610, 15
    %v1867 = vshrl.u32 %v1611, 15
    %v1868 = vshrl.u32 %v1612, 15
    %v1869 = vshrl.u32 %v1613, 15
    %v1870 = vshrl.u32 %v1614, 15
    %v1871 = vshrl.u32 %v1615, 15
    %v1872 = vshrl.u32 %v1616, 15
    %v1873 = vshrl.u32 %v1617, 15
    %v1874 = vshrl.u32 %v1618, 15
    %v1875 = vshrl.u32 %v1619, 15
    %v1876 = vshrl.u32 %v1620, 15
    %v1877 = vshrl.u32 %v1621, 15
    %v1878 = vshrl.u32 %v1622, 15
    %v1879 = vshrl.u32 %v1623, 15
    %v1880 = vshrl.u32 %v1624, 15
    %v1881 = vshrl.u32 %v1625, 15
    %v1882 = vshrl.u32 %v1626, 15
    %v1883 = vshrl.u32 %v1627, 15
    %v1884 = vshrl.u32 %v1628, 15
    %v1885 = vshrl.u32 %v1629, 15
    %v1886 = vshrl.u32 %v1630, 15
    %v1887 = vshrl.u32 %v1631, 15
    %v1888 = vshrl.u32 %v1632, 15
    %v1889 = vshrl.u32 %v1633, 15
    %v1890 = vshrl.u32 %v1634, 15
    %v1891 = vshrl.u32 %v1635, 15
    %v1892 = vshrl.u32 %v1636, 15
    %v1893 = vshrl.u32 %v1637, 15
    %v1894 = vshrl.u32 %v1638, 15
    %v1895 = vshrl.u32 %v1639, 15
    %v1896 = vshrl.u32 %v1640, 15
    %v1897 = vshrl.u32 %v1641, 15
    %v1898 = vshrl.u32 %v1642, 15
    %v1899 = vshrl.u32 %v1643, 15
    %v1900 = vshrl.u32 %v1644, 15
    %v1901 = vshrl.u32 %v1645, 15
    %v1902 = vshrl.u32 %v1646, 15
    %v1903 = vshrl.u32 %v1647, 15
    %v1904 = vshrl.u32 %v1648, 15
    %v1905 = vshrl.u32 %v1649, 15
    %v1906 = vshrl.u32 %v1650, 15
    %v1907 = vshrl.u32 %v1651, 15
    %v1908 = vshrl.u32 %v1652, 15
    %v1909 = vshrl.u32 %v1653, 15
    %v1910 = vshrl.u32 %v1654, 15
    %v1911 = vshrl.u32 %v1655, 15
    %v1912 = vshrl.u32 %v1656, 15
    %v1913 = vshrl.u32 %v1657, 15
    %v1914 = vshrl.u32 %v1658, 15
    %v1915 = vshrl.u32 %v1659, 15
    %v1916 = vshrl.u32 %v1660, 15
    %v1917 = vshrl.u32 %v1661, 15
    %v1918 = vshrl.u32 %v1662, 15
    %v1919 = vshrl.u32 %v1663, 15
    %v1920 = vshrl.u32 %v1664, 15
    %v1921 = vshrl.u32 %v1665, 15
    %v1922 = vshrl.u32 %v1666, 15
    %v1923 = vshrl.u32 %v1667, 15
    %v1924 = vshrl.u32 %v1668, 15
    %v1925 = vshrl.u32 %v1669, 15
    %v1926 = vshrl.u32 %v1670, 15
    %v1927 = vshrl.u32 %v1671, 15
    %v1928 = vshrl.u32 %v1672, 15
    %v1929 = vshrl.u32 %v1673, 15
    %v1930 = vshrl.u32 %v1674, 15
    %v1931 = vshrl.u32 %v1675, 15
    %v1932 = vshrl.u32 %v1676, 15
    %v1933 = vshrl.u32 %v1677, 15
    %v1934 = vshrl.u32 %v1678, 15
    %v1935 = vshrl.u32 %v1679, 15
    %v1936 = vshrl.u32 %v1680, 15
    %v1937 = vshrl.u32 %v1681, 15
    %v1938 = vshrl.u32 %v1682, 15
    %v1939 = vshrl.u32 %v1683, 15
    %v1940 = vshrl.u32 %v1684, 15
    %v1941 = vshrl.u32 %v1685, 15
    %v1942 = vshrl.u32 %v1686, 15
    %v1943 = vshrl.u32 %v1687, 15
    %v1944 = vshrl.u32 %v1688, 15
    %v1945 = vshrl.u32 %v1689, 15
    %v1946 = vshrl.u32 %v1690, 15
    %v1947 = vshrl.u32 %v1691, 15
    %v1948 = vshrl.u32 %v1692, 15
    %v1949 = vshrl.u32 %v1693, 15
    %v1950 = vshrl.u32 %v1694, 15
    %v1951 = vshrl.u32 %v1695, 15
    %v1952 = vshrl.u32 %v1696, 15
    %v1953 = vshrl.u32 %v1697, 15
    %v1954 = vshrl.u32 %v1698, 15
    %v1955 = vshrl.u32 %v1699, 15
    %v1956 = vshrl.u32 %v1700, 15
    %v1957 = vshrl.u32 %v1701, 15
    %v1958 = vshrl.u32 %v1702, 15
    %v1959 = vshrl.u32 %v1703, 15
    %v1960 = vshrl.u32 %v1704, 15
    %v1961 = vshrl.u32 %v1705, 15
    %v1962 = vshrl.u32 %v1706, 15
    %v1963 = vshrl.u32 %v1707, 15
    %v1964 = vshrl.u32 %v1708, 15
    %v1965 = vshrl.u32 %v1709, 15
    %v1966 = vshrl.u32 %v1710, 15
    %v1967 = vshrl.u32 %v1711, 15
    %v1968 = vshrl.u32 %v1712, 15
    %v1969 = vshrl.u32 %v1713, 15
    %v1970 = vshrl.u32 %v1714, 15
    %v1971 = vshrl.u32 %v1715, 15
    %v1972 = vshrl.u32 %v1716, 15
    %v1973 = vshrl.u32 %v1717, 15
    %v1974 = vshrl.u32 %v1718, 15
    %v1975 = vshrl.u32 %v1719, 15
    %v1976 = vshrl.u32 %v1720, 15
    %v1977 = vshrl.u32 %v1721, 15
    %v1978 = vshrl.u32 %v1722, 15
    %v1979 = vshrl.u32 %v1723, 15
    %v1980 = vshrl.u32 %v1724, 15
    %v1981 = vshrl.u32 %v1725, 15
    %v1982 = vshrl.u32 %v1726, 15
    %v1983 = vshrl.u32 %v1727, 15
    %v1984 = vshrl.u32 %v1728, 15
    %v1985 = vshrl.u32 %v1729, 15
    %v1986 = vshrl.u32 %v1730, 15
    %v1987 = vshrl.u32 %v1731, 15
    %v1988 = vshrl.u32 %v1732, 15
    %v1989 = vshrl.u32 %v1733, 15
    %v1990 = vshrl.u32 %v1734, 15
    %v1991 = vshrl.u32 %v1735, 15
    %v1992 = vshrl.u32 %v1736, 15
    %v1993 = vshrl.u32 %v1737, 15
    %v1994 = vshrl.u32 %v1738, 15
    %v1995 = vshrl.u32 %v1739, 15
    %v1996 = vshrl.u32 %v1740, 15
    %v1997 = vshrl.u32 %v1741, 15
    %v1998 = vshrl.u32 %v1742, 15
    %v1999 = vshrl.u32 %v1743, 15
    %v2000 = vshrl.u32 %v1744, 15
    %v2001 = vshrl.u32 %v1745, 15
    %v2002 = vshrl.u32 %v1746, 15
    %v2003 = vshrl.u32 %v1747, 15
    %v2004 = vshrl.u32 %v1748, 15
    %v2005 = vshrl.u32 %v1749, 15
    %v2006 = vshrl.u32 %v1750, 15
    %v2007 = vshrl.u32 %v1751, 15
    %v2008 = vshrl.u32 %v1752, 15
    %v2009 = vshrl.u32 %v1753, 15
    %v2010 = vshrl.u32 %v1754, 15
    %v2011 = vshrl.u32 %v1755, 15
    %v2012 = vshrl.u32 %v1756, 15
    %v2013 = vshrl.u32 %v1757, 15
    %v2014 = vshrl.u32 %v1758, 15
    %v2015 = vshrl.u32 %v1759, 15
    %v2016 = vshrl.u32 %v1760, 15
    %v2017 = vshrl.u32 %v1761, 15
    %v2018 = vshrl.u32 %v1762, 15
    %v2019 = vshrl.u32 %v1763, 15
    %v2020 = vshrl.u32 %v1764, 15
    %v2021 = vshrl.u32 %v1765, 15
    %v2022 = vshrl.u32 %v1766, 15
    %v2023 = vshrl.u32 %v1767, 15
    %v2024 = vshrl.u32 %v1768, 15
    %v2025 = vshrl.u32 %v1769, 15
    %v2026 = vshrl.u32 %v1770, 15
    %v2027 = vshrl.u32 %v1771, 15
    %v2028 = vshrl.u32 %v1772, 15
    %v2029 = vshrl.u32 %v1773, 15
    %v2030 = vshrl.u32 %v1774, 15
    %v2031 = vshrl.u32 %v1775, 15
    %v2032 = vshrl.u32 %v1776, 15
    %v2033 = vshrl.u32 %v1777, 15
    %v2034 = vshrl.u32 %v1778, 15
    %v2035 = vshrl.u32 %v1779, 15
    %v2036 = vshrl.u32 %v1780, 15
    %v2037 = vshrl.u32 %v1781, 15
    %v2038 = vshrl.u32 %v1782, 15
    %v2039 = vshrl.u32 %v1783, 15
    %v2040 = vshrl.u32 %v1784, 15
    %v2041 = vshrl.u32 %v1785, 15
    %v2042 = vshrl.u32 %v1786, 15
    %v2043 = vshrl.u32 %v1787, 15
    %v2044 = vshrl.u32 %v1788, 15
    %v2045 = vshrl.u32 %v1789, 15
    %v2046 = vshrl.u32 %v1790, 15
    %v2047 = vshrl.u32 %v1791, 15
    %v2048 = vshrl.u32 %v1792, 15
    %v2049 = vshrl.u32 %v1793, 15
    %v2050 = vshrl.u32 %v1794, 15
    %v2051 = vshrl.u32 %v1795, 15
    %v2052 = vshrl.u32 %v1796, 15
    %v2053 = vshrl.u32 %v1797, 15
    %v2054 = vshrl.u32 %v1798, 15
    %v2055 = vshrl.u32 %v1799, 15
    %v2056 = vshrl.u32 %v1800, 15
    %v2057 = vshrl.u32 %v1801, 15
    %v2058 = vshrl.u32 %v1802, 15
    %v2059 = vshrl.u32 %v1803, 15
    %v2060 = vshrl.u32 %v1804, 15
    %v2061 = vshrl.u32 %v1805, 15
    %v2062 = vshrl.u32 %v1806, 15
    %v2063 = vshrl.u32 %v1807, 15
    %v2064 = vshrl.u32 %v1808, 15
    %v2065 = vshrl.u32 %v1809, 15
    %v2066 = vshrl.u32 %v1810, 15
    %v2067 = vxor.u32 %v1555, %v1811
    %v2068 = vxor.u32 %v1556, %v1812
    %v2069 = vxor.u32 %v1557, %v1813
    %v2070 = vxor.u32 %v1558, %v1814
    %v2071 = vxor.u32 %v1559, %v1815
    %v2072 = vxor.u32 %v1560, %v1816
    %v2073 = vxor.u32 %v1561, %v1817
    %v2074 = vxor.u32 %v1562, %v1818
    %v2075 = vxor.u32 %v1563, %v1819
    %v2076 = vxor.u32 %v1564, %v1820
    %v2077 = vxor.u32 %v1565, %v1821
    %v2078 = vxor.u32 %v1566, %v1822
    %v2079 = vxor.u32 %v1567, %v1823
    %v2080 = vxor.u32 %v1568, %v1824
    %v2081 = vxor.u32 %v1569, %v1825
    %v2082 = vxor.u32 %v1570, %v1826
    %v2083 = vxor.u32 %v1571, %v1827
    %v2084 = vxor.u32 %v1572, %v1828
    %v2085 = vxor.u32 %v1573, %v1829
    %v2086 = vxor.u32 %v1574, %v1830
    %v2087 = vxor.u32 %v1575, %v1831
    %v2088 = vxor.u32 %v1576, %v1832
    %v2089 = vxor.u32 %v1577, %v1833
    %v2090 = vxor.u32 %v1578, %v1834
    %v2091 = vxor.u32 %v1579, %v1835
    %v2092 = vxor.u32 %v1580, %v1836
    %v2093 = vxor.u32 %v1581, %v1837
    %v2094 = vxor.u32 %v1582, %v1838
    %v2095 = vxor.u32 %v1583, %v1839
    %v2096 = vxor.u32 %v1584, %v1840
    %v2097 = vxor.u32 %v1585, %v1841
    %v2098 = vxor.u32 %v1586, %v1842
    %v2099 = vxor.u32 %v1587, %v1843
    %v2100 = vxor.u32 %v1588, %v1844
    %v2101 = vxor.u32 %v1589, %v1845
    %v2102 = vxor.u32 %v1590, %v1846
    %v2103 = vxor.u32 %v1591, %v1847
    %v2104 = vxor.u32 %v1592, %v1848
    %v2105 = vxor.u32 %v1593, %v1849
    %v2106 = vxor.u32 %v1594, %v1850
    %v2107 = vxor.u32 %v1595, %v1851
    %v2108 = vxor.u32 %v1596, %v1852
    %v2109 = vxor.u32 %v1597, %v1853
    %v2110 = vxor.u32 %v1598, %v1854
    %v2111 = vxor.u32 %v1599, %v1855
    %v2112 = vxor.u32 %v1600, %v1856
    %v2113 = vxor.u32 %v1601, %v1857
    %v2114 = vxor.u32 %v1602, %v1858
    %v2115 = vxor.u32 %v1603, %v1859
    %v2116 = vxor.u32 %v1604, %v1860
    %v2117 = vxor.u32 %v1605, %v1861
    %v2118 = vxor.u32 %v1606, %v1862
    %v2119 = vxor.u32 %v1607, %v1863
    %v2120 = vxor.u32 %v1608, %v1864
    %v2121 = vxor.u32 %v1609, %v1865
    %v2122 = vxor.u32 %v1610, %v1866
    %v2123 = vxor.u32 %v1611, %v1867
    %v2124 = vxor.u32 %v1612, %v1868
    %v2125 = vxor.u32 %v1613, %v1869
    %v2126 = vxor.u32 %v1614, %v1870
    %v2127 = vxor.u32 %v1615, %v1871
    %v2128 = vxor.u32 %v1616, %v1872
    %v2129 = vxor.u32 %v1617, %v1873
    %v2130 = vxor.u32 %v1618, %v1874
    %v2131 = vxor.u32 %v1619, %v1875
    %v2132 = vxor.u32 %v1620, %v1876
    %v2133 = vxor.u32 %v1621, %v1877
    %v2134 = vxor.u32 %v1622, %v1878
    %v2135 = vxor.u32 %v1623, %v1879
    %v2136 = vxor.u32 %v1624, %v1880
    %v2137 = vxor.u32 %v1625, %v1881
    %v2138 = vxor.u32 %v1626, %v1882
    %v2139 = vxor.u32 %v1627, %v1883
    %v2140 = vxor.u32 %v1628, %v1884
    %v2141 = vxor.u32 %v1629, %v1885
    %v2142 = vxor.u32 %v1630, %v1886
    %v2143 = vxor.u32 %v1631, %v1887
    %v2144 = vxor.u32 %v1632, %v1888
    %v2145 = vxor.u32 %v1633, %v1889
    %v2146 = vxor.u32 %v1634, %v1890
    %v2147 = vxor.u32 %v1635, %v1891
    %v2148 = vxor.u32 %v1636, %v1892
    %v2149 = vxor.u32 %v1637, %v1893
    %v2150 = vxor.u32 %v1638, %v1894
    %v2151 = vxor.u32 %v1639, %v1895
    %v2152 = vxor.u32 %v1640, %v1896
    %v2153 = vxor.u32 %v1641, %v1897
    %v2154 = vxor.u32 %v1642, %v1898
    %v2155 = vxor.u32 %v1643, %v1899
    %v2156 = vxor.u32 %v1644, %v1900
    %v2157 = vxor.u32 %v1645, %v1901
    %v2158 = vxor.u32 %v1646, %v1902
    %v2159 = vxor.u32 %v1647, %v1903
    %v2160 = vxor.u32 %v1648, %v1904
    %v2161 = vxor.u32 %v1649, %v1905
    %v2162 = vxor.u32 %v1650, %v1906
    %v2163 = vxor.u32 %v1651, %v1907
    %v2164 = vxor.u32 %v1652, %v1908
    %v2165 = vxor.u32 %v1653, %v1909
    %v2166 = vxor.u32 %v1654, %v1910
    %v2167 = vxor.u32 %v1655, %v1911
    %v2168 = vxor.u32 %v1656, %v1912
    %v2169 = vxor.u32 %v1657, %v1913
    %v2170 = vxor.u32 %v1658, %v1914
    %v2171 = vxor.u32 %v1659, %v1915
    %v2172 = vxor.u32 %v1660, %v1916
    %v2173 = vxor.u32 %v1661, %v1917
    %v2174 = vxor.u32 %v1662, %v1918
    %v2175 = vxor.u32 %v1663, %v1919
    %v2176 = vxor.u32 %v1664, %v1920
    %v2177 = vxor.u32 %v1665, %v1921
    %v2178 = vxor.u32 %v1666, %v1922
    %v2179 = vxor.u32 %v1667, %v1923
    %v2180 = vxor.u32 %v1668, %v1924
    %v2181 = vxor.u32 %v1669, %v1925
    %v2182 = vxor.u32 %v1670, %v1926
    %v2183 = vxor.u32 %v1671, %v1927
    %v2184 = vxor.u32 %v1672, %v1928
    %v2185 = vxor.u32 %v1673, %v1929
    %v2186 = vxor.u32 %v1674, %v1930
    %v2187 = vxor.u32 %v1675, %v1931
    %v2188 = vxor.u32 %v1676, %v1932
    %v2189 = vxor.u32 %v1677, %v1933
    %v2190 = vxor.u32 %v1678, %v1934
    %v2191 = vxor.u32 %v1679, %v1935
    %v2192 = vxor.u32 %v1680, %v1936
    %v2193 = vxor.u32 %v1681, %v1937
    %v2194 = vxor.u32 %v1682, %v1938
    %v2195 = vxor.u32 %v1683, %v1939
    %v2196 = vxor.u32 %v1684, %v1940
    %v2197 = vxor.u32 %v1685, %v1941
    %v2198 = vxor.u32 %v1686, %v1942
    %v2199 = vxor.u32 %v1687, %v1943
    %v2200 = vxor.u32 %v1688, %v1944
    %v2201 = vxor.u32 %v1689, %v1945
    %v2202 = vxor.u32 %v1690, %v1946
    %v2203 = vxor.u32 %v1691, %v1947
    %v2204 = vxor.u32 %v1692, %v1948
    %v2205 = vxor.u32 %v1693, %v1949
    %v2206 = vxor.u32 %v1694, %v1950
    %v2207 = vxor.u32 %v1695, %v1951
    %v2208 = vxor.u32 %v1696, %v1952
    %v2209 = vxor.u32 %v1697, %v1953
    %v2210 = vxor.u32 %v1698, %v1954
    %v2211 = vxor.u32 %v1699, %v1955
    %v2212 = vxor.u32 %v1700, %v1956
    %v2213 = vxor.u32 %v1701, %v1957
    %v2214 = vxor.u32 %v1702, %v1958
    %v2215 = vxor.u32 %v1703, %v1959
    %v2216 = vxor.u32 %v1704, %v1960
    %v2217 = vxor.u32 %v1705, %v1961
    %v2218 = vxor.u32 %v1706, %v1962
    %v2219 = vxor.u32 %v1707, %v1963
    %v2220 = vxor.u32 %v1708, %v1964
    %v2221 = vxor.u32 %v1709, %v1965
    %v2222 = vxor.u32 %v1710, %v1966
    %v2223 = vxor.u32 %v1711, %v1967
    %v2224 = vxor.u32 %v1712, %v1968
    %v2225 = vxor.u32 %v1713, %v1969
    %v2226 = vxor.u32 %v1714, %v1970
    %v2227 = vxor.u32 %v1715, %v1971
    %v2228 = vxor.u32 %v1716, %v1972
    %v2229 = vxor.u32 %v1717, %v1973
    %v2230 = vxor.u32 %v1718, %v1974
    %v2231 = vxor.u32 %v1719, %v1975
    %v2232 = vxor.u32 %v1720, %v1976
    %v2233 = vxor.u32 %v1721, %v1977
    %v2234 = vxor.u32 %v1722, %v1978
    %v2235 = vxor.u32 %v1723, %v1979
    %v2236 = vxor.u32 %v1724, %v1980
    %v2237 = vxor.u32 %v1725, %v1981
    %v2238 = vxor.u32 %v1726, %v1982
    %v2239 = vxor.u32 %v1727, %v1983
    %v2240 = vxor.u32 %v1728, %v1984
    %v2241 = vxor.u32 %v1729, %v1985
    %v2242 = vxor.u32 %v1730, %v1986
    %v2243 = vxor.u32 %v1731, %v1987
    %v2244 = vxor.u32 %v1732, %v1988
    %v2245 = vxor.u32 %v1733, %v1989
    %v2246 = vxor.u32 %v1734, %v1990
    %v2247 = vxor.u32 %v1735, %v1991
    %v2248 = vxor.u32 %v1736, %v1992
    %v2249 = vxor.u32 %v1737, %v1993
    %v2250 = vxor.u32 %v1738, %v1994
    %v2251 = vxor.u32 %v1739, %v1995
    %v2252 = vxor.u32 %v1740, %v1996
    %v2253 = vxor.u32 %v1741, %v1997
    %v2254 = vxor.u32 %v1742, %v1998
    %v2255 = vxor.u32 %v1743, %v1999
    %v2256 = vxor.u32 %v1744, %v2000
    %v2257 = vxor.u32 %v1745, %v2001
    %v2258 = vxor.u32 %v1746, %v2002
    %v2259 = vxor.u32 %v1747, %v2003
    %v2260 = vxor.u32 %v1748, %v2004
    %v2261 = vxor.u32 %v1749, %v2005
    %v2262 = vxor.u32 %v1750, %v2006
    %v2263 = vxor.u32 %v1751, %v2007
    %v2264 = vxor.u32 %v1752, %v2008
    %v2265 = vxor.u32 %v1753, %v2009
    %v2266 = vxor.u32 %v1754, %v2010
    %v2267 = vxor.u32 %v1755, %v2011
    %v2268 = vxor.u32 %v1756, %v2012
    %v2269 = vxor.u32 %v1757, %v2013
    %v2270 = vxor.u32 %v1758, %v2014
    %v2271 = vxor.u32 %v1759, %v2015
    %v2272 = vxor.u32 %v1760, %v2016
    %v2273 = vxor.u32 %v1761, %v2017
    %v2274 = vxor.u32 %v1762, %v2018
    %v2275 = vxor.u32 %v1763, %v2019
    %v2276 = vxor.u32 %v1764, %v2020
    %v2277 = vxor.u32 %v1765, %v2021
    %v2278 = vxor.u32 %v1766, %v2022
    %v2279 = vxor.u32 %v1767, %v2023
    %v2280 = vxor.u32 %v1768, %v2024
    %v2281 = vxor.u32 %v1769, %v2025
    %v2282 = vxor.u32 %v1770, %v2026
    %v2283 = vxor.u32 %v1771, %v2027
    %v2284 = vxor.u32 %v1772, %v2028
    %v2285 = vxor.u32 %v1773, %v2029
    %v2286 = vxor.u32 %v1774, %v2030
    %v2287 = vxor.u32 %v1775, %v2031
    %v2288 = vxor.u32 %v1776, %v2032
    %v2289 = vxor.u32 %v1777, %v2033
    %v2290 = vxor.u32 %v1778, %v2034
    %v2291 = vxor.u32 %v1779, %v2035
    %v2292 = vxor.u32 %v1780, %v2036
    %v2293 = vxor.u32 %v1781, %v2037
    %v2294 = vxor.u32 %v1782, %v2038
    %v2295 = vxor.u32 %v1783, %v2039
    %v2296 = vxor.u32 %v1784, %v2040
    %v2297 = vxor.u32 %v1785, %v2041
    %v2298 = vxor.u32 %v1786, %v2042
    %v2299 = vxor.u32 %v1787, %v2043
    %v2300 = vxor.u32 %v1788, %v2044
    %v2301 = vxor.u32 %v1789, %v2045
    %v2302 = vxor.u32 %v1790, %v2046
    %v2303 = vxor.u32 %v1791, %v2047
    %v2304 = vxor.u32 %v1792, %v2048
    %v2305 = vxor.u32 %v1793, %v2049
    %v2306 = vxor.u32 %v1794, %v2050
    %v2307 = vxor.u32 %v1795, %v2051
    %v2308 = vxor.u32 %v1796, %v2052
    %v2309 = vxor.u32 %v1797, %v2053
    %v2310 = vxor.u32 %v1798, %v2054
    %v2311 = vxor.u32 %v1799, %v2055
    %v2312 = vxor.u32 %v1800, %v2056
    %v2313 = vxor.u32 %v1801, %v2057
    %v2314 = vxor.u32 %v1802, %v2058
    %v2315 = vxor.u32 %v1803, %v2059
    %v2316 = vxor.u32 %v1804, %v2060
    %v2317 = vxor.u32 %v1805, %v2061
    %v2318 = vxor.u32 %v1806, %v2062
    %v2319 = vxor.u32 %v1807, %v2063
    %v2320 = vxor.u32 %v1808, %v2064
    %v2321 = vxor.u32 %v1809, %v2065
    %v2322 = vxor.u32 %v1810, %v2066
    %v2323 = vmul.u32 %v2067, 2221713035
    %v2324 = vmul.u32 %v2068, 2221713035
    %v2325 = vmul.u32 %v2069, 2221713035
    %v2326 = vmul.u32 %v2070, 2221713035
    %v2327 = vmul.u32 %v2071, 2221713035
    %v2328 = vmul.u32 %v2072, 2221713035
    %v2329 = vmul.u32 %v2073, 2221713035
    %v2330 = vmul.u32 %v2074, 2221713035
    %v2331 = vmul.u32 %v2075, 2221713035
    %v2332 = vmul.u32 %v2076, 2221713035
    %v2333 = vmul.u32 %v2077, 2221713035
    %v2334 = vmul.u32 %v2078, 2221713035
    %v2335 = vmul.u32 %v2079, 2221713035
    %v2336 = vmul.u32 %v2080, 2221713035
    %v2337 = vmul.u32 %v2081, 2221713035
    %v2338 = vmul.u32 %v2082, 2221713035
    %v2339 = vmul.u32 %v2083, 2221713035
    %v2340 = vmul.u32 %v2084, 2221713035
    %v2341 = vmul.u32 %v2085, 2221713035
    %v2342 = vmul.u32 %v2086, 2221713035
    %v2343 = vmul.u32 %v2087, 2221713035
    %v2344 = vmul.u32 %v2088, 2221713035
    %v2345 = vmul.u32 %v2089, 2221713035
    %v2346 = vmul.u32 %v2090, 2221713035
    %v2347 = vmul.u32 %v2091, 2221713035
    %v2348 = vmul.u32 %v2092, 2221713035
    %v2349 = vmul.u32 %v2093, 2221713035
    %v2350 = vmul.u32 %v2094, 2221713035
    %v2351 = vmul.u32 %v2095, 2221713035
    %v2352 = vmul.u32 %v2096, 2221713035
    %v2353 = vmul.u32 %v2097, 2221713035
    %v2354 = vmul.u32 %v2098, 2221713035
    %v2355 = vmul.u32 %v2099, 2221713035
    %v2356 = vmul.u32 %v2100, 2221713035
    %v2357 = vmul.u32 %v2101, 2221713035
    %v2358 = vmul.u32 %v2102, 2221713035
    %v2359 = vmul.u32 %v2103, 2221713035
    %v2360 = vmul.u32 %v2104, 2221713035
    %v2361 = vmul.u32 %v2105, 2221713035
    %v2362 = vmul.u32 %v2106, 2221713035
    %v2363 = vmul.u32 %v2107, 2221713035
    %v2364 = vmul.u32 %v2108, 2221713035
    %v2365 = vmul.u32 %v2109, 2221713035
    %v2366 = vmul.u32 %v2110, 2221713035
    %v2367 = vmul.u32 %v2111, 2221713035
    %v2368 = vmul.u32 %v2112, 2221713035
    %v2369 = vmul.u32 %v2113, 2221713035
    %v2370 = vmul.u32 %v2114, 2221713035
    %v2371 = vmul.u32 %v2115, 2221713035
    %v2372 = vmul.u32 %v2116, 2221713035
    %v2373 = vmul.u32 %v2117, 2221713035
    %v2374 = vmul.u32 %v2118, 2221713035
    %v2375 = vmul.u32 %v2119, 2221713035
    %v2376 = vmul.u32 %v2120, 2221713035
    %v2377 = vmul.u32 %v2121, 2221713035
    %v2378 = vmul.u32 %v2122, 2221713035
    %v2379 = vmul.u32 %v2123, 2221713035
    %v2380 = vmul.u32 %v2124, 2221713035
    %v2381 = vmul.u32 %v2125, 2221713035
    %v2382 = vmul.u32 %v2126, 2221713035
    %v2383 = vmul.u32 %v2127, 2221713035
    %v2384 = vmul.u32 %v2128, 2221713035
    %v2385 = vmul.u32 %v2129, 2221713035
    %v2386 = vmul.u32 %v2130, 2221713035
    %v2387 = vmul.u32 %v2131, 2221713035
    %v2388 = vmul.u32 %v2132, 2221713035
    %v2389 = vmul.u32 %v2133, 2221713035
    %v2390 = vmul.u32 %v2134, 2221713035
    %v2391 = vmul.u32 %v2135, 2221713035
    %v2392 = vmul.u32 %v2136, 2221713035
    %v2393 = vmul.u32 %v2137, 2221713035
    %v2394 = vmul.u32 %v2138, 2221713035
    %v2395 = vmul.u32 %v2139, 2221713035
    %v2396 = vmul.u32 %v2140, 2221713035
    %v2397 = vmul.u32 %v2141, 2221713035
    %v2398 = vmul.u32 %v2142, 2221713035
    %v2399 = vmul.u32 %v2143, 2221713035
    %v2400 = vmul.u32 %v2144, 2221713035
    %v2401 = vmul.u32 %v2145, 2221713035
    %v2402 = vmul.u32 %v2146, 2221713035
    %v2403 = vmul.u32 %v2147, 2221713035
    %v2404 = vmul.u32 %v2148, 2221713035
    %v2405 = vmul.u32 %v2149, 2221713035
    %v2406 = vmul.u32 %v2150, 2221713035
    %v2407 = vmul.u32 %v2151, 2221713035
    %v2408 = vmul.u32 %v2152, 2221713035
    %v2409 = vmul.u32 %v2153, 2221713035
    %v2410 = vmul.u32 %v2154, 2221713035
    %v2411 = vmul.u32 %v2155, 2221713035
    %v2412 = vmul.u32 %v2156, 2221713035
    %v2413 = vmul.u32 %v2157, 2221713035
    %v2414 = vmul.u32 %v2158, 2221713035
    %v2415 = vmul.u32 %v2159, 2221713035
    %v2416 = vmul.u32 %v2160, 2221713035
    %v2417 = vmul.u32 %v2161, 2221713035
    %v2418 = vmul.u32 %v2162, 2221713035
    %v2419 = vmul.u32 %v2163, 2221713035
    %v2420 = vmul.u32 %v2164, 2221713035
    %v2421 = vmul.u32 %v2165, 2221713035
    %v2422 = vmul.u32 %v2166, 2221713035
    %v2423 = vmul.u32 %v2167, 2221713035
    %v2424 = vmul.u32 %v2168, 2221713035
    %v2425 = vmul.u32 %v2169, 2221713035
    %v2426 = vmul.u32 %v2170, 2221713035
    %v2427 = vmul.u32 %v2171, 2221713035
    %v2428 = vmul.u32 %v2172, 2221713035
    %v2429 = vmul.u32 %v2173, 2221713035
    %v2430 = vmul.u32 %v2174, 2221713035
    %v2431 = vmul.u32 %v2175, 2221713035
    %v2432 = vmul.u32 %v2176, 2221713035
    %v2433 = vmul.u32 %v2177, 2221713035
    %v2434 = vmul.u32 %v2178, 2221713035
    %v2435 = vmul.u32 %v2179, 2221713035
    %v2436 = vmul.u32 %v2180, 2221713035
    %v2437 = vmul.u32 %v2181, 2221713035
    %v2438 = vmul.u32 %v2182, 2221713035
    %v2439 = vmul.u32 %v2183, 2221713035
    %v2440 = vmul.u32 %v2184, 2221713035
    %v2441 = vmul.u32 %v2185, 2221713035
    %v2442 = vmul.u32 %v2186, 2221713035
    %v2443 = vmul.u32 %v2187, 2221713035
    %v2444 = vmul.u32 %v2188, 2221713035
    %v2445 = vmul.u32 %v2189, 2221713035
    %v2446 = vmul.u32 %v2190, 2221713035
    %v2447 = vmul.u32 %v2191, 2221713035
    %v2448 = vmul.u32 %v2192, 2221713035
    %v2449 = vmul.u32 %v2193, 2221713035
    %v2450 = vmul.u32 %v2194, 2221713035
    %v2451 = vmul.u32 %v2195, 2221713035
    %v2452 = vmul.u32 %v2196, 2221713035
    %v2453 = vmul.u32 %v2197, 2221713035
    %v2454 = vmul.u32 %v2198, 2221713035
    %v2455 = vmul.u32 %v2199, 2221713035
    %v2456 = vmul.u32 %v2200, 2221713035
    %v2457 = vmul.u32 %v2201, 2221713035
    %v2458 = vmul.u32 %v2202, 2221713035
    %v2459 = vmul.u32 %v2203, 2221713035
    %v2460 = vmul.u32 %v2204, 2221713035
    %v2461 = vmul.u32 %v2205, 2221713035
    %v2462 = vmul.u32 %v2206, 2221713035
    %v2463 = vmul.u32 %v2207, 2221713035
    %v2464 = vmul.u32 %v2208, 2221713035
    %v2465 = vmul.u32 %v2209, 2221713035
    %v2466 = vmul.u32 %v2210, 2221713035
    %v2467 = vmul.u32 %v2211, 2221713035
    %v2468 = vmul.u32 %v2212, 2221713035
    %v2469 = vmul.u32 %v2213, 2221713035
    %v2470 = vmul.u32 %v2214, 2221713035
    %v2471 = vmul.u32 %v2215, 2221713035
    %v2472 = vmul.u32 %v2216, 2221713035
    %v2473 = vmul.u32 %v2217, 2221713035
    %v2474 = vmul.u32 %v2218, 2221713035
    %v2475 = vmul.u32 %v2219, 2221713035
    %v2476 = vmul.u32 %v2220, 2221713035
    %v2477 = vmul.u32 %v2221, 2221713035
    %v2478 = vmul.u32 %v2222, 2221713035
    %v2479 = vmul.u32 %v2223, 2221713035
    %v2480 = vmul.u32 %v2224, 2221713035
    %v2481 = vmul.u32 %v2225, 2221713035
    %v2482 = vmul.u32 %v2226, 2221713035
    %v2483 = vmul.u32 %v2227, 2221713035
    %v2484 = vmul.u32 %v2228, 2221713035
    %v2485 = vmul.u32 %v2229, 2221713035
    %v2486 = vmul.u32 %v2230, 2221713035
    %v2487 = vmul.u32 %v2231, 2221713035
    %v2488 = vmul.u32 %v2232, 2221713035
    %v2489 = vmul.u32 %v2233, 2221713035
    %v2490 = vmul.u32 %v2234, 2221713035
    %v2491 = vmul.u32 %v2235, 2221713035
    %v2492 = vmul.u32 %v2236, 2221713035
    %v2493 = vmul.u32 %v2237, 2221713035
    %v2494 = vmul.u32 %v2238, 2221713035
    %v2495 = vmul.u32 %v2239, 2221713035
    %v2496 = vmul.u32 %v2240, 2221713035
    %v2497 = vmul.u32 %v2241, 2221713035
    %v2498 = vmul.u32 %v2242, 2221713035
    %v2499 = vmul.u32 %v2243, 2221713035
    %v2500 = vmul.u32 %v2244, 2221713035
    %v2501 = vmul.u32 %v2245, 2221713035
    %v2502 = vmul.u32 %v2246, 2221713035
    %v2503 = vmul.u32 %v2247, 2221713035
    %v2504 = vmul.u32 %v2248, 2221713035
    %v2505 = vmul.u32 %v2249, 2221713035
    %v2506 = vmul.u32 %v2250, 2221713035
    %v2507 = vmul.u32 %v2251, 2221713035
    %v2508 = vmul.u32 %v2252, 2221713035
    %v2509 = vmul.u32 %v2253, 2221713035
    %v2510 = vmul.u32 %v2254, 2221713035
    %v2511 = vmul.u32 %v2255, 2221713035
    %v2512 = vmul.u32 %v2256, 2221713035
    %v2513 = vmul.u32 %v2257, 2221713035
    %v2514 = vmul.u32 %v2258, 2221713035
    %v2515 = vmul.u32 %v2259, 2221713035
    %v2516 = vmul.u32 %v2260, 2221713035
    %v2517 = vmul.u32 %v2261, 2221713035
    %v2518 = vmul.u32 %v2262, 2221713035
    %v2519 = vmul.u32 %v2263, 2221713035
    %v2520 = vmul.u32 %v2264, 2221713035
    %v2521 = vmul.u32 %v2265, 2221713035
    %v2522 = vmul.u32 %v2266, 2221713035
    %v2523 = vmul.u32 %v2267, 2221713035
    %v2524 = vmul.u32 %v2268, 2221713035
    %v2525 = vmul.u32 %v2269, 2221713035
    %v2526 = vmul.u32 %v2270, 2221713035
    %v2527 = vmul.u32 %v2271, 2221713035
    %v2528 = vmul.u32 %v2272, 2221713035
    %v2529 = vmul.u32 %v2273, 2221713035
    %v2530 = vmul.u32 %v2274, 2221713035
    %v2531 = vmul.u32 %v2275, 2221713035
    %v2532 = vmul.u32 %v2276, 2221713035
    %v2533 = vmul.u32 %v2277, 2221713035
    %v2534 = vmul.u32 %v2278, 2221713035
    %v2535 = vmul.u32 %v2279, 2221713035
    %v2536 = vmul.u32 %v2280, 2221713035
    %v2537 = vmul.u32 %v2281, 2221713035
    %v2538 = vmul.u32 %v2282, 2221713035
    %v2539 = vmul.u32 %v2283, 2221713035
    %v2540 = vmul.u32 %v2284, 2221713035
    %v2541 = vmul.u32 %v2285, 2221713035
    %v2542 = vmul.u32 %v2286, 2221713035
    %v2543 = vmul.u32 %v2287, 2221713035
    %v2544 = vmul.u32 %v2288, 2221713035
    %v2545 = vmul.u32 %v2289, 2221713035
    %v2546 = vmul.u32 %v2290, 2221713035
    %v2547 = vmul.u32 %v2291, 2221713035
    %v2548 = vmul.u32 %v2292, 2221713035
    %v2549 = vmul.u32 %v2293, 2221713035
    %v2550 = vmul.u32 %v2294, 2221713035
    %v2551 = vmul.u32 %v2295, 2221713035
    %v2552 = vmul.u32 %v2296, 2221713035
    %v2553 = vmul.u32 %v2297, 2221713035
    %v2554 = vmul.u32 %v2298, 2221713035
    %v2555 = vmul.u32 %v2299, 2221713035
    %v2556 = vmul.u32 %v2300, 2221713035
    %v2557 = vmul.u32 %v2301, 2221713035
    %v2558 = vmul.u32 %v2302, 2221713035
    %v2559 = vmul.u32 %v2303, 2221713035
    %v2560 = vmul.u32 %v2304, 2221713035
    %v2561 = vmul.u32 %v2305, 2221713035
    %v2562 = vmul.u32 %v2306, 2221713035
    %v2563 = vmul.u32 %v2307, 2221713035
    %v2564 = vmul.u32 %v2308, 2221713035
    %v2565 = vmul.u32 %v2309, 2221713035
    %v2566 = vmul.u32 %v2310, 2221713035
    %v2567 = vmul.u32 %v2311, 2221713035
    %v2568 = vmul.u32 %v2312, 2221713035
    %v2569 = vmul.u32 %v2313, 2221713035
    %v2570 = vmul.u32 %v2314, 2221713035
    %v2571 = vmul.u32 %v2315, 2221713035
    %v2572 = vmul.u32 %v2316, 2221713035
    %v2573 = vmul.u32 %v2317, 2221713035
    %v2574 = vmul.u32 %v2318, 2221713035
    %v2575 = vmul.u32 %v2319, 2221713035
    %v2576 = vmul.u32 %v2320, 2221713035
    %v2577 = vmul.u32 %v2321, 2221713035
    %v2578 = vmul.u32 %v2322, 2221713035
    %v2579 = vshrl.u32 %v2323, 16
    %v2580 = vshrl.u32 %v2324, 16
    %v2581 = vshrl.u32 %v2325, 16
    %v2582 = vshrl.u32 %v2326, 16
    %v2583 = vshrl.u32 %v2327, 16
    %v2584 = vshrl.u32 %v2328, 16
    %v2585 = vshrl.u32 %v2329, 16
    %v2586 = vshrl.u32 %v2330, 16
    %v2587 = vshrl.u32 %v2331, 16
    %v2588 = vshrl.u32 %v2332, 16
    %v2589 = vshrl.u32 %v2333, 16
    %v2590 = vshrl.u32 %v2334, 16
    %v2591 = vshrl.u32 %v2335, 16
    %v2592 = vshrl.u32 %v2336, 16
    %v2593 = vshrl.u32 %v2337, 16
    %v2594 = vshrl.u32 %v2338, 16
    %v2595 = vshrl.u32 %v2339, 16
    %v2596 = vshrl.u32 %v2340, 16
    %v2597 = vshrl.u32 %v2341, 16
    %v2598 = vshrl.u32 %v2342, 16
    %v2599 = vshrl.u32 %v2343, 16
    %v2600 = vshrl.u32 %v2344, 16
    %v2601 = vshrl.u32 %v2345, 16
    %v2602 = vshrl.u32 %v2346, 16
    %v2603 = vshrl.u32 %v2347, 16
    %v2604 = vshrl.u32 %v2348, 16
    %v2605 = vshrl.u32 %v2349, 16
    %v2606 = vshrl.u32 %v2350, 16
    %v2607 = vshrl.u32 %v2351, 16
    %v2608 = vshrl.u32 %v2352, 16
    %v2609 = vshrl.u32 %v2353, 16
    %v2610 = vshrl.u32 %v2354, 16
    %v2611 = vshrl.u32 %v2355, 16
    %v2612 = vshrl.u32 %v2356, 16
    %v2613 = vshrl.u32 %v2357, 16
    %v2614 = vshrl.u32 %v2358, 16
    %v2615 = vshrl.u32 %v2359, 16
    %v2616 = vshrl.u32 %v2360, 16
    %v2617 = vshrl.u32 %v2361, 16
    %v2618 = vshrl.u32 %v2362, 16
    %v2619 = vshrl.u32 %v2363, 16
    %v2620 = vshrl.u32 %v2364, 16
    %v2621 = vshrl.u32 %v2365, 16
    %v2622 = vshrl.u32 %v2366, 16
    %v2623 = vshrl.u32 %v2367, 16
    %v2624 = vshrl.u32 %v2368, 16
    %v2625 = vshrl.u32 %v2369, 16
    %v2626 = vshrl.u32 %v2370, 16
    %v2627 = vshrl.u32 %v2371, 16
    %v2628 = vshrl.u32 %v2372, 16
    %v2629 = vshrl.u32 %v2373, 16
    %v2630 = vshrl.u32 %v2374, 16
    %v2631 = vshrl.u32 %v2375, 16
    %v2632 = vshrl.u32 %v2376, 16
    %v2633 = vshrl.u32 %v2377, 16
    %v2634 = vshrl.u32 %v2378, 16
    %v2635 = vshrl.u32 %v2379, 16
    %v2636 = vshrl.u32 %v2380, 16
    %v2637 = vshrl.u32 %v2381, 16
    %v2638 = vshrl.u32 %v2382, 16
    %v2639 = vshrl.u32 %v2383, 16
    %v2640 = vshrl.u32 %v2384, 16
    %v2641 = vshrl.u32 %v2385, 16
    %v2642 = vshrl.u32 %v2386, 16
    %v2643 = vshrl.u32 %v2387, 16
    %v2644 = vshrl.u32 %v2388, 16
    %v2645 = vshrl.u32 %v2389, 16
    %v2646 = vshrl.u32 %v2390, 16
    %v2647 = vshrl.u32 %v2391, 16
    %v2648 = vshrl.u32 %v2392, 16
    %v2649 = vshrl.u32 %v2393, 16
    %v2650 = vshrl.u32 %v2394, 16
    %v2651 = vshrl.u32 %v2395, 16
    %v2652 = vshrl.u32 %v2396, 16
    %v2653 = vshrl.u32 %v2397, 16
    %v2654 = vshrl.u32 %v2398, 16
    %v2655 = vshrl.u32 %v2399, 16
    %v2656 = vshrl.u32 %v2400, 16
    %v2657 = vshrl.u32 %v2401, 16
    %v2658 = vshrl.u32 %v2402, 16
    %v2659 = vshrl.u32 %v2403, 16
    %v2660 = vshrl.u32 %v2404, 16
    %v2661 = vshrl.u32 %v2405, 16
    %v2662 = vshrl.u32 %v2406, 16
    %v2663 = vshrl.u32 %v2407, 16
    %v2664 = vshrl.u32 %v2408, 16
    %v2665 = vshrl.u32 %v2409, 16
    %v2666 = vshrl.u32 %v2410, 16
    %v2667 = vshrl.u32 %v2411, 16
    %v2668 = vshrl.u32 %v2412, 16
    %v2669 = vshrl.u32 %v2413, 16
    %v2670 = vshrl.u32 %v2414, 16
    %v2671 = vshrl.u32 %v2415, 16
    %v2672 = vshrl.u32 %v2416, 16
    %v2673 = vshrl.u32 %v2417, 16
    %v2674 = vshrl.u32 %v2418, 16
    %v2675 = vshrl.u32 %v2419, 16
    %v2676 = vshrl.u32 %v2420, 16
    %v2677 = vshrl.u32 %v2421, 16
    %v2678 = vshrl.u32 %v2422, 16
    %v2679 = vshrl.u32 %v2423, 16
    %v2680 = vshrl.u32 %v2424, 16
    %v2681 = vshrl.u32 %v2425, 16
    %v2682 = vshrl.u32 %v2426, 16
    %v2683 = vshrl.u32 %v2427, 16
    %v2684 = vshrl.u32 %v2428, 16
    %v2685 = vshrl.u32 %v2429, 16
    %v2686 = vshrl.u32 %v2430, 16
    %v2687 = vshrl.u32 %v2431, 16
    %v2688 = vshrl.u32 %v2432, 16
    %v2689 = vshrl.u32 %v2433, 16
    %v2690 = vshrl.u32 %v2434, 16
    %v2691 = vshrl.u32 %v2435, 16
    %v2692 = vshrl.u32 %v2436, 16
    %v2693 = vshrl.u32 %v2437, 16
    %v2694 = vshrl.u32 %v2438, 16
    %v2695 = vshrl.u32 %v2439, 16
    %v2696 = vshrl.u32 %v2440, 16
    %v2697 = vshrl.u32 %v2441, 16
    %v2698 = vshrl.u32 %v2442, 16
    %v2699 = vshrl.u32 %v2443, 16
    %v2700 = vshrl.u32 %v2444, 16
    %v2701 = vshrl.u32 %v2445, 16
    %v2702 = vshrl.u32 %v2446, 16
    %v2703 = vshrl.u32 %v2447, 16
    %v2704 = vshrl.u32 %v2448, 16
    %v2705 = vshrl.u32 %v2449, 16
    %v2706 = vshrl.u32 %v2450, 16
    %v2707 = vshrl.u32 %v2451, 16
    %v2708 = vshrl.u32 %v2452, 16
    %v2709 = vshrl.u32 %v2453, 16
    %v2710 = vshrl.u32 %v2454, 16
    %v2711 = vshrl.u32 %v2455, 16
    %v2712 = vshrl.u32 %v2456, 16
    %v2713 = vshrl.u32 %v2457, 16
    %v2714 = vshrl.u32 %v2458, 16
    %v2715 = vshrl.u32 %v2459, 16
    %v2716 = vshrl.u32 %v2460, 16
    %v2717 = vshrl.u32 %v2461, 16
    %v2718 = vshrl.u32 %v2462, 16
    %v2719 = vshrl.u32 %v2463, 16
    %v2720 = vshrl.u32 %v2464, 16
    %v2721 = vshrl.u32 %v2465, 16
    %v2722 = vshrl.u32 %v2466, 16
    %v2723 = vshrl.u32 %v2467, 16
    %v2724 = vshrl.u32 %v2468, 16
    %v2725 = vshrl.u32 %v2469, 16
    %v2726 = vshrl.u32 %v2470, 16
    %v2727 = vshrl.u32 %v2471, 16
    %v2728 = vshrl.u32 %v2472, 16
    %v2729 = vshrl.u32 %v2473, 16
    %v2730 = vshrl.u32 %v2474, 16
    %v2731 = vshrl.u32 %v2475, 16
    %v2732 = vshrl.u32 %v2476, 16
    %v2733 = vshrl.u32 %v2477, 16
    %v2734 = vshrl.u32 %v2478, 16
    %v2735 = vshrl.u32 %v2479, 16
    %v2736 = vshrl.u32 %v2480, 16
    %v2737 = vshrl.u32 %v2481, 16
    %v2738 = vshrl.u32 %v2482, 16
    %v2739 = vshrl.u32 %v2483, 16
    %v2740 = vshrl.u32 %v2484, 16
    %v2741 = vshrl.u32 %v2485, 16
    %v2742 = vshrl.u32 %v2486, 16
    %v2743 = vshrl.u32 %v2487, 16
    %v2744 = vshrl.u32 %v2488, 16
    %v2745 = vshrl.u32 %v2489, 16
    %v2746 = vshrl.u32 %v2490, 16
    %v2747 = vshrl.u32 %v2491, 16
    %v2748 = vshrl.u32 %v2492, 16
    %v2749 = vshrl.u32 %v2493, 16
    %v2750 = vshrl.u32 %v2494, 16
    %v2751 = vshrl.u32 %v2495, 16
    %v2752 = vshrl.u32 %v2496, 16
    %v2753 = vshrl.u32 %v2497, 16
    %v2754 = vshrl.u32 %v2498, 16
    %v2755 = vshrl.u32 %v2499, 16
    %v2756 = vshrl.u32 %v2500, 16
    %v2757 = vshrl.u32 %v2501, 16
    %v2758 = vshrl.u32 %v2502, 16
    %v2759 = vshrl.u32 %v2503, 16
    %v2760 = vshrl.u32 %v2504, 16
    %v2761 = vshrl.u32 %v2505, 16
    %v2762 = vshrl.u32 %v2506, 16
    %v2763 = vshrl.u32 %v2507, 16
    %v2764 = vshrl.u32 %v2508, 16
    %v2765 = vshrl.u32 %v2509, 16
    %v2766 = vshrl.u32 %v2510, 16
    %v2767 = vshrl.u32 %v2511, 16
    %v2768 = vshrl.u32 %v2512, 16
    %v2769 = vshrl.u32 %v2513, 16
    %v2770 = vshrl.u32 %v2514, 16
    %v2771 = vshrl.u32 %v2515, 16
    %v2772 = vshrl.u32 %v2516, 16
    %v2773 = vshrl.u32 %v2517, 16
    %v2774 = vshrl.u32 %v2518, 16
    %v2775 = vshrl.u32 %v2519, 16
    %v2776 = vshrl.u32 %v2520, 16
    %v2777 = vshrl.u32 %v2521, 16
    %v2778 = vshrl.u32 %v2522, 16
    %v2779 = vshrl.u32 %v2523, 16
    %v2780 = vshrl.u32 %v2524, 16
    %v2781 = vshrl.u32 %v2525, 16
    %v2782 = vshrl.u32 %v2526, 16
    %v2783 = vshrl.u32 %v2527, 16
    %v2784 = vshrl.u32 %v2528, 16
    %v2785 = vshrl.u32 %v2529, 16
    %v2786 = vshrl.u32 %v2530, 16
    %v2787 = vshrl.u32 %v2531, 16
    %v2788 = vshrl.u32 %v2532, 16
    %v2789 = vshrl.u32 %v2533, 16
    %v2790 = vshrl.u32 %v2534, 16
    %v2791 = vshrl.u32 %v2535, 16
    %v2792 = vshrl.u32 %v2536, 16
    %v2793 = vshrl.u32 %v2537, 16
    %v2794 = vshrl.u32 %v2538, 16
    %v2795 = vshrl.u32 %v2539, 16
    %v2796 = vshrl.u32 %v2540, 16
    %v2797 = vshrl.u32 %v2541, 16
    %v2798 = vshrl.u32 %v2542, 16
    %v2799 = vshrl.u32 %v2543, 16
    %v2800 = vshrl.u32 %v2544, 16
    %v2801 = vshrl.u32 %v2545, 16
    %v2802 = vshrl.u32 %v2546, 16
    %v2803 = vshrl.u32 %v2547, 16
    %v2804 = vshrl.u32 %v2548, 16
    %v2805 = vshrl.u32 %v2549, 16
    %v2806 = vshrl.u32 %v2550, 16
    %v2807 = vshrl.u32 %v2551, 16
    %v2808 = vshrl.u32 %v2552, 16
    %v2809 = vshrl.u32 %v2553, 16
    %v2810 = vshrl.u32 %v2554, 16
    %v2811 = vshrl.u32 %v2555, 16
    %v2812 = vshrl.u32 %v2556, 16
    %v2813 = vshrl.u32 %v2557, 16
    %v2814 = vshrl.u32 %v2558, 16
    %v2815 = vshrl.u32 %v2559, 16
    %v2816 = vshrl.u32 %v2560, 16
    %v2817 = vshrl.u32 %v2561, 16
    %v2818 = vshrl.u32 %v2562, 16
    %v2819 = vshrl.u32 %v2563, 16
    %v2820 = vshrl.u32 %v2564, 16
    %v2821 = vshrl.u32 %v2565, 16
    %v2822 = vshrl.u32 %v2566, 16
    %v2823 = vshrl.u32 %v2567, 16
    %v2824 = vshrl.u32 %v2568, 16
    %v2825 = vshrl.u32 %v2569, 16
    %v2826 = vshrl.u32 %v2570, 16
    %v2827 = vshrl.u32 %v2571, 16
    %v2828 = vshrl.u32 %v2572, 16
    %v2829 = vshrl.u32 %v2573, 16
    %v2830 = vshrl.u32 %v2574, 16
    %v2831 = vshrl.u32 %v2575, 16
    %v2832 = vshrl.u32 %v2576, 16
    %v2833 = vshrl.u32 %v2577, 16
    %v2834 = vshrl.u32 %v2578, 16
    %v2835 = vxor.u32 %v2323, %v2579
    %v2836 = vxor.u32 %v2324, %v2580
    %v2837 = vxor.u32 %v2325, %v2581
    %v2838 = vxor.u32 %v2326, %v2582
    %v2839 = vxor.u32 %v2327, %v2583
    %v2840 = vxor.u32 %v2328, %v2584
    %v2841 = vxor.u32 %v2329, %v2585
    %v2842 = vxor.u32 %v2330, %v2586
    %v2843 = vxor.u32 %v2331, %v2587
    %v2844 = vxor.u32 %v2332, %v2588
    %v2845 = vxor.u32 %v2333, %v2589
    %v2846 = vxor.u32 %v2334, %v2590
    %v2847 = vxor.u32 %v2335, %v2591
    %v2848 = vxor.u32 %v2336, %v2592
    %v2849 = vxor.u32 %v2337, %v2593
    %v2850 = vxor.u32 %v2338, %v2594
    %v2851 = vxor.u32 %v2339, %v2595
    %v2852 = vxor.u32 %v2340, %v2596
    %v2853 = vxor.u32 %v2341, %v2597
    %v2854 = vxor.u32 %v2342, %v2598
    %v2855 = vxor.u32 %v2343, %v2599
    %v2856 = vxor.u32 %v2344, %v2600
    %v2857 = vxor.u32 %v2345, %v2601
    %v2858 = vxor.u32 %v2346, %v2602
    %v2859 = vxor.u32 %v2347, %v2603
    %v2860 = vxor.u32 %v2348, %v2604
    %v2861 = vxor.u32 %v2349, %v2605
    %v2862 = vxor.u32 %v2350, %v2606
    %v2863 = vxor.u32 %v2351, %v2607
    %v2864 = vxor.u32 %v2352, %v2608
    %v2865 = vxor.u32 %v2353, %v2609
    %v2866 = vxor.u32 %v2354, %v2610
    %v2867 = vxor.u32 %v2355, %v2611
    %v2868 = vxor.u32 %v2356, %v2612
    %v2869 = vxor.u32 %v2357, %v2613
    %v2870 = vxor.u32 %v2358, %v2614
    %v2871 = vxor.u32 %v2359, %v2615
    %v2872 = vxor.u32 %v2360, %v2616
    %v2873 = vxor.u32 %v2361, %v2617
    %v2874 = vxor.u32 %v2362, %v2618
    %v2875 = vxor.u32 %v2363, %v2619
    %v2876 = vxor.u32 %v2364, %v2620
    %v2877 = vxor.u32 %v2365, %v2621
    %v2878 = vxor.u32 %v2366, %v2622
    %v2879 = vxor.u32 %v2367, %v2623
    %v2880 = vxor.u32 %v2368, %v2624
    %v2881 = vxor.u32 %v2369, %v2625
    %v2882 = vxor.u32 %v2370, %v2626
    %v2883 = vxor.u32 %v2371, %v2627
    %v2884 = vxor.u32 %v2372, %v2628
    %v2885 = vxor.u32 %v2373, %v2629
    %v2886 = vxor.u32 %v2374, %v2630
    %v2887 = vxor.u32 %v2375, %v2631
    %v2888 = vxor.u32 %v2376, %v2632
    %v2889 = vxor.u32 %v2377, %v2633
    %v2890 = vxor.u32 %v2378, %v2634
    %v2891 = vxor.u32 %v2379, %v2635
    %v2892 = vxor.u32 %v2380, %v2636
    %v2893 = vxor.u32 %v2381, %v2637
    %v2894 = vxor.u32 %v2382, %v2638
    %v2895 = vxor.u32 %v2383, %v2639
    %v2896 = vxor.u32 %v2384, %v2640
    %v2897 = vxor.u32 %v2385, %v2641
    %v2898 = vxor.u32 %v2386, %v2642
    %v2899 = vxor.u32 %v2387, %v2643
    %v2900 = vxor.u32 %v2388, %v2644
    %v2901 = vxor.u32 %v2389, %v2645
    %v2902 = vxor.u32 %v2390, %v2646
    %v2903 = vxor.u32 %v2391, %v2647
    %v2904 = vxor.u32 %v2392, %v2648
    %v2905 = vxor.u32 %v2393, %v2649
    %v2906 = vxor.u32 %v2394, %v2650
    %v2907 = vxor.u32 %v2395, %v2651
    %v2908 = vxor.u32 %v2396, %v2652
    %v2909 = vxor.u32 %v2397, %v2653
    %v2910 = vxor.u32 %v2398, %v2654
    %v2911 = vxor.u32 %v2399, %v2655
    %v2912 = vxor.u32 %v2400, %v2656
    %v2913 = vxor.u32 %v2401, %v2657
    %v2914 = vxor.u32 %v2402, %v2658
    %v2915 = vxor.u32 %v2403, %v2659
    %v2916 = vxor.u32 %v2404, %v2660
    %v2917 = vxor.u32 %v2405, %v2661
    %v2918 = vxor.u32 %v2406, %v2662
    %v2919 = vxor.u32 %v2407, %v2663
    %v2920 = vxor.u32 %v2408, %v2664
    %v2921 = vxor.u32 %v2409, %v2665
    %v2922 = vxor.u32 %v2410, %v2666
    %v2923 = vxor.u32 %v2411, %v2667
    %v2924 = vxor.u32 %v2412, %v2668
    %v2925 = vxor.u32 %v2413, %v2669
    %v2926 = vxor.u32 %v2414, %v2670
    %v2927 = vxor.u32 %v2415, %v2671
    %v2928 = vxor.u32 %v2416, %v2672
    %v2929 = vxor.u32 %v2417, %v2673
    %v2930 = vxor.u32 %v2418, %v2674
    %v2931 = vxor.u32 %v2419, %v2675
    %v2932 = vxor.u32 %v2420, %v2676
    %v2933 = vxor.u32 %v2421, %v2677
    %v2934 = vxor.u32 %v2422, %v2678
    %v2935 = vxor.u32 %v2423, %v2679
    %v2936 = vxor.u32 %v2424, %v2680
    %v2937 = vxor.u32 %v2425, %v2681
    %v2938 = vxor.u32 %v2426, %v2682
    %v2939 = vxor.u32 %v2427, %v2683
    %v2940 = vxor.u32 %v2428, %v2684
    %v2941 = vxor.u32 %v2429, %v2685
    %v2942 = vxor.u32 %v2430, %v2686
    %v2943 = vxor.u32 %v2431, %v2687
    %v2944 = vxor.u32 %v2432, %v2688
    %v2945 = vxor.u32 %v2433, %v2689
    %v2946 = vxor.u32 %v2434, %v2690
    %v2947 = vxor.u32 %v2435, %v2691
    %v2948 = vxor.u32 %v2436, %v2692
    %v2949 = vxor.u32 %v2437, %v2693
    %v2950 = vxor.u32 %v2438, %v2694
    %v2951 = vxor.u32 %v2439, %v2695
    %v2952 = vxor.u32 %v2440, %v2696
    %v2953 = vxor.u32 %v2441, %v2697
    %v2954 = vxor.u32 %v2442, %v2698
    %v2955 = vxor.u32 %v2443, %v2699
    %v2956 = vxor.u32 %v2444, %v2700
    %v2957 = vxor.u32 %v2445, %v2701
    %v2958 = vxor.u32 %v2446, %v2702
    %v2959 = vxor.u32 %v2447, %v2703
    %v2960 = vxor.u32 %v2448, %v2704
    %v2961 = vxor.u32 %v2449, %v2705
    %v2962 = vxor.u32 %v2450, %v2706
    %v2963 = vxor.u32 %v2451, %v2707
    %v2964 = vxor.u32 %v2452, %v2708
    %v2965 = vxor.u32 %v2453, %v2709
    %v2966 = vxor.u32 %v2454, %v2710
    %v2967 = vxor.u32 %v2455, %v2711
    %v2968 = vxor.u32 %v2456, %v2712
    %v2969 = vxor.u32 %v2457, %v2713
    %v2970 = vxor.u32 %v2458, %v2714
    %v2971 = vxor.u32 %v2459, %v2715
    %v2972 = vxor.u32 %v2460, %v2716
    %v2973 = vxor.u32 %v2461, %v2717
    %v2974 = vxor.u32 %v2462, %v2718
    %v2975 = vxor.u32 %v2463, %v2719
    %v2976 = vxor.u32 %v2464, %v2720
    %v2977 = vxor.u32 %v2465, %v2721
    %v2978 = vxor.u32 %v2466, %v2722
    %v2979 = vxor.u32 %v2467, %v2723
    %v2980 = vxor.u32 %v2468, %v2724
    %v2981 = vxor.u32 %v2469, %v2725
    %v2982 = vxor.u32 %v2470, %v2726
    %v2983 = vxor.u32 %v2471, %v2727
    %v2984 = vxor.u32 %v2472, %v2728
    %v2985 = vxor.u32 %v2473, %v2729
    %v2986 = vxor.u32 %v2474, %v2730
    %v2987 = vxor.u32 %v2475, %v2731
    %v2988 = vxor.u32 %v2476, %v2732
    %v2989 = vxor.u32 %v2477, %v2733
    %v2990 = vxor.u32 %v2478, %v2734
    %v2991 = vxor.u32 %v2479, %v2735
    %v2992 = vxor.u32 %v2480, %v2736
    %v2993 = vxor.u32 %v2481, %v2737
    %v2994 = vxor.u32 %v2482, %v2738
    %v2995 = vxor.u32 %v2483, %v2739
    %v2996 = vxor.u32 %v2484, %v2740
    %v2997 = vxor.u32 %v2485, %v2741
    %v2998 = vxor.u32 %v2486, %v2742
    %v2999 = vxor.u32 %v2487, %v2743
    %v3000 = vxor.u32 %v2488, %v2744
    %v3001 = vxor.u32 %v2489, %v2745
    %v3002 = vxor.u32 %v2490, %v2746
    %v3003 = vxor.u32 %v2491, %v2747
    %v3004 = vxor.u32 %v2492, %v2748
    %v3005 = vxor.u32 %v2493, %v2749
    %v3006 = vxor.u32 %v2494, %v2750
    %v3007 = vxor.u32 %v2495, %v2751
    %v3008 = vxor.u32 %v2496, %v2752
    %v3009 = vxor.u32 %v2497, %v2753
    %v3010 = vxor.u32 %v2498, %v2754
    %v3011 = vxor.u32 %v2499, %v2755
    %v3012 = vxor.u32 %v2500, %v2756
    %v3013 = vxor.u32 %v2501, %v2757
    %v3014 = vxor.u32 %v2502, %v2758
    %v3015 = vxor.u32 %v2503, %v2759
    %v3016 = vxor.u32 %v2504, %v2760
    %v3017 = vxor.u32 %v2505, %v2761
    %v3018 = vxor.u32 %v2506, %v2762
    %v3019 = vxor.u32 %v2507, %v2763
    %v3020 = vxor.u32 %v2508, %v2764
    %v3021 = vxor.u32 %v2509, %v2765
    %v3022 = vxor.u32 %v2510, %v2766
    %v3023 = vxor.u32 %v2511, %v2767
    %v3024 = vxor.u32 %v2512, %v2768
    %v3025 = vxor.u32 %v2513, %v2769
    %v3026 = vxor.u32 %v2514, %v2770
    %v3027 = vxor.u32 %v2515, %v2771
    %v3028 = vxor.u32 %v2516, %v2772
    %v3029 = vxor.u32 %v2517, %v2773
    %v3030 = vxor.u32 %v2518, %v2774
    %v3031 = vxor.u32 %v2519, %v2775
    %v3032 = vxor.u32 %v2520, %v2776
    %v3033 = vxor.u32 %v2521, %v2777
    %v3034 = vxor.u32 %v2522, %v2778
    %v3035 = vxor.u32 %v2523, %v2779
    %v3036 = vxor.u32 %v2524, %v2780
    %v3037 = vxor.u32 %v2525, %v2781
    %v3038 = vxor.u32 %v2526, %v2782
    %v3039 = vxor.u32 %v2527, %v2783
    %v3040 = vxor.u32 %v2528, %v2784
    %v3041 = vxor.u32 %v2529, %v2785
    %v3042 = vxor.u32 %v2530, %v2786
    %v3043 = vxor.u32 %v2531, %v2787
    %v3044 = vxor.u32 %v2532, %v2788
    %v3045 = vxor.u32 %v2533, %v2789
    %v3046 = vxor.u32 %v2534, %v2790
    %v3047 = vxor.u32 %v2535, %v2791
    %v3048 = vxor.u32 %v2536, %v2792
    %v3049 = vxor.u32 %v2537, %v2793
    %v3050 = vxor.u32 %v2538, %v2794
    %v3051 = vxor.u32 %v2539, %v2795
    %v3052 = vxor.u32 %v2540, %v2796
    %v3053 = vxor.u32 %v2541, %v2797
    %v3054 = vxor.u32 %v2542, %v2798
    %v3055 = vxor.u32 %v2543, %v2799
    %v3056 = vxor.u32 %v2544, %v2800
    %v3057 = vxor.u32 %v2545, %v2801
    %v3058 = vxor.u32 %v2546, %v2802
    %v3059 = vxor.u32 %v2547, %v2803
    %v3060 = vxor.u32 %v2548, %v2804
    %v3061 = vxor.u32 %v2549, %v2805
    %v3062 = vxor.u32 %v2550, %v2806
    %v3063 = vxor.u32 %v2551, %v2807
    %v3064 = vxor.u32 %v2552, %v2808
    %v3065 = vxor.u32 %v2553, %v2809
    %v3066 = vxor.u32 %v2554, %v2810
    %v3067 = vxor.u32 %v2555, %v2811
    %v3068 = vxor.u32 %v2556, %v2812
    %v3069 = vxor.u32 %v2557, %v2813
    %v3070 = vxor.u32 %v2558, %v2814
    %v3071 = vxor.u32 %v2559, %v2815
    %v3072 = vxor.u32 %v2560, %v2816
    %v3073 = vxor.u32 %v2561, %v2817
    %v3074 = vxor.u32 %v2562, %v2818
    %v3075 = vxor.u32 %v2563, %v2819
    %v3076 = vxor.u32 %v2564, %v2820
    %v3077 = vxor.u32 %v2565, %v2821
    %v3078 = vxor.u32 %v2566, %v2822
    %v3079 = vxor.u32 %v2567, %v2823
    %v3080 = vxor.u32 %v2568, %v2824
    %v3081 = vxor.u32 %v2569, %v2825
    %v3082 = vxor.u32 %v2570, %v2826
    %v3083 = vxor.u32 %v2571, %v2827
    %v3084 = vxor.u32 %v2572, %v2828
    %v3085 = vxor.u32 %v2573, %v2829
    %v3086 = vxor.u32 %v2574, %v2830
    %v3087 = vxor.u32 %v2575, %v2831
    %v3088 = vxor.u32 %v2576, %v2832
    %v3089 = vxor.u32 %v2577, %v2833
    %v3090 = vxor.u32 %v2578, %v2834
    %v3091 = vand.u32 %v2835, 3
    %v3092 = vand.u32 %v2836, 3
    %v3093 = vand.u32 %v2837, 3
    %v3094 = vand.u32 %v2838, 3
    %v3095 = vand.u32 %v2839, 3
    %v3096 = vand.u32 %v2840, 3
    %v3097 = vand.u32 %v2841, 3
    %v3098 = vand.u32 %v2842, 3
    %v3099 = vand.u32 %v2843, 3
    %v3100 = vand.u32 %v2844, 3
    %v3101 = vand.u32 %v2845, 3
    %v3102 = vand.u32 %v2846, 3
    %v3103 = vand.u32 %v2847, 3
    %v3104 = vand.u32 %v2848, 3
    %v3105 = vand.u32 %v2849, 3
    %v3106 = vand.u32 %v2850, 3
    %v3107 = vand.u32 %v2851, 3
    %v3108 = vand.u32 %v2852, 3
    %v3109 = vand.u32 %v2853, 3
    %v3110 = vand.u32 %v2854, 3
    %v3111 = vand.u32 %v2855, 3
    %v3112 = vand.u32 %v2856, 3
    %v3113 = vand.u32 %v2857, 3
    %v3114 = vand.u32 %v2858, 3
    %v3115 = vand.u32 %v2859, 3
    %v3116 = vand.u32 %v2860, 3
    %v3117 = vand.u32 %v2861, 3
    %v3118 = vand.u32 %v2862, 3
    %v3119 = vand.u32 %v2863, 3
    %v3120 = vand.u32 %v2864, 3
    %v3121 = vand.u32 %v2865, 3
    %v3122 = vand.u32 %v2866, 3
    %v3123 = vand.u32 %v2867, 3
    %v3124 = vand.u32 %v2868, 3
    %v3125 = vand.u32 %v2869, 3
    %v3126 = vand.u32 %v2870, 3
    %v3127 = vand.u32 %v2871, 3
    %v3128 = vand.u32 %v2872, 3
    %v3129 = vand.u32 %v2873, 3
    %v3130 = vand.u32 %v2874, 3
    %v3131 = vand.u32 %v2875, 3
    %v3132 = vand.u32 %v2876, 3
    %v3133 = vand.u32 %v2877, 3
    %v3134 = vand.u32 %v2878, 3
    %v3135 = vand.u32 %v2879, 3
    %v3136 = vand.u32 %v2880, 3
    %v3137 = vand.u32 %v2881, 3
    %v3138 = vand.u32 %v2882, 3
    %v3139 = vand.u32 %v2883, 3
    %v3140 = vand.u32 %v2884, 3
    %v3141 = vand.u32 %v2885, 3
    %v3142 = vand.u32 %v2886, 3
    %v3143 = vand.u32 %v2887, 3
    %v3144 = vand.u32 %v2888, 3
    %v3145 = vand.u32 %v2889, 3
    %v3146 = vand.u32 %v2890, 3
    %v3147 = vand.u32 %v2891, 3
    %v3148 = vand.u32 %v2892, 3
    %v3149 = vand.u32 %v2893, 3
    %v3150 = vand.u32 %v2894, 3
    %v3151 = vand.u32 %v2895, 3
    %v3152 = vand.u32 %v2896, 3
    %v3153 = vand.u32 %v2897, 3
    %v3154 = vand.u32 %v2898, 3
    %v3155 = vand.u32 %v2899, 3
    %v3156 = vand.u32 %v2900, 3
    %v3157 = vand.u32 %v2901, 3
    %v3158 = vand.u32 %v2902, 3
    %v3159 = vand.u32 %v2903, 3
    %v3160 = vand.u32 %v2904, 3
    %v3161 = vand.u32 %v2905, 3
    %v3162 = vand.u32 %v2906, 3
    %v3163 = vand.u32 %v2907, 3
    %v3164 = vand.u32 %v2908, 3
    %v3165 = vand.u32 %v2909, 3
    %v3166 = vand.u32 %v2910, 3
    %v3167 = vand.u32 %v2911, 3
    %v3168 = vand.u32 %v2912, 3
    %v3169 = vand.u32 %v2913, 3
    %v3170 = vand.u32 %v2914, 3
    %v3171 = vand.u32 %v2915, 3
    %v3172 = vand.u32 %v2916, 3
    %v3173 = vand.u32 %v2917, 3
    %v3174 = vand.u32 %v2918, 3
    %v3175 = vand.u32 %v2919, 3
    %v3176 = vand.u32 %v2920, 3
    %v3177 = vand.u32 %v2921, 3
    %v3178 = vand.u32 %v2922, 3
    %v3179 = vand.u32 %v2923, 3
    %v3180 = vand.u32 %v2924, 3
    %v3181 = vand.u32 %v2925, 3
    %v3182 = vand.u32 %v2926, 3
    %v3183 = vand.u32 %v2927, 3
    %v3184 = vand.u32 %v2928, 3
    %v3185 = vand.u32 %v2929, 3
    %v3186 = vand.u32 %v2930, 3
    %v3187 = vand.u32 %v2931, 3
    %v3188 = vand.u32 %v2932, 3
    %v3189 = vand.u32 %v2933, 3
    %v3190 = vand.u32 %v2934, 3
    %v3191 = vand.u32 %v2935, 3
    %v3192 = vand.u32 %v2936, 3
    %v3193 = vand.u32 %v2937, 3
    %v3194 = vand.u32 %v2938, 3
    %v3195 = vand.u32 %v2939, 3
    %v3196 = vand.u32 %v2940, 3
    %v3197 = vand.u32 %v2941, 3
    %v3198 = vand.u32 %v2942, 3
    %v3199 = vand.u32 %v2943, 3
    %v3200 = vand.u32 %v2944, 3
    %v3201 = vand.u32 %v2945, 3
    %v3202 = vand.u32 %v2946, 3
    %v3203 = vand.u32 %v2947, 3
    %v3204 = vand.u32 %v2948, 3
    %v3205 = vand.u32 %v2949, 3
    %v3206 = vand.u32 %v2950, 3
    %v3207 = vand.u32 %v2951, 3
    %v3208 = vand.u32 %v2952, 3
    %v3209 = vand.u32 %v2953, 3
    %v3210 = vand.u32 %v2954, 3
    %v3211 = vand.u32 %v2955, 3
    %v3212 = vand.u32 %v2956, 3
    %v3213 = vand.u32 %v2957, 3
    %v3214 = vand.u32 %v2958, 3
    %v3215 = vand.u32 %v2959, 3
    %v3216 = vand.u32 %v2960, 3
    %v3217 = vand.u32 %v2961, 3
    %v3218 = vand.u32 %v2962, 3
    %v3219 = vand.u32 %v2963, 3
    %v3220 = vand.u32 %v2964, 3
    %v3221 = vand.u32 %v2965, 3
    %v3222 = vand.u32 %v2966, 3
    %v3223 = vand.u32 %v2967, 3
    %v3224 = vand.u32 %v2968, 3
    %v3225 = vand.u32 %v2969, 3
    %v3226 = vand.u32 %v2970, 3
    %v3227 = vand.u32 %v2971, 3
    %v3228 = vand.u32 %v2972, 3
    %v3229 = vand.u32 %v2973, 3
    %v3230 = vand.u32 %v2974, 3
    %v3231 = vand.u32 %v2975, 3
    %v3232 = vand.u32 %v2976, 3
    %v3233 = vand.u32 %v2977, 3
    %v3234 = vand.u32 %v2978, 3
    %v3235 = vand.u32 %v2979, 3
    %v3236 = vand.u32 %v2980, 3
    %v3237 = vand.u32 %v2981, 3
    %v3238 = vand.u32 %v2982, 3
    %v3239 = vand.u32 %v2983, 3
    %v3240 = vand.u32 %v2984, 3
    %v3241 = vand.u32 %v2985, 3
    %v3242 = vand.u32 %v2986, 3
    %v3243 = vand.u32 %v2987, 3
    %v3244 = vand.u32 %v2988, 3
    %v3245 = vand.u32 %v2989, 3
    %v3246 = vand.u32 %v2990, 3
    %v3247 = vand.u32 %v2991, 3
    %v3248 = vand.u32 %v2992, 3
    %v3249 = vand.u32 %v2993, 3
    %v3250 = vand.u32 %v2994, 3
    %v3251 = vand.u32 %v2995, 3
    %v3252 = vand.u32 %v2996, 3
    %v3253 = vand.u32 %v2997, 3
    %v3254 = vand.u32 %v2998, 3
    %v3255 = vand.u32 %v2999, 3
    %v3256 = vand.u32 %v3000, 3
    %v3257 = vand.u32 %v3001, 3
    %v3258 = vand.u32 %v3002, 3
    %v3259 = vand.u32 %v3003, 3
    %v3260 = vand.u32 %v3004, 3
    %v3261 = vand.u32 %v3005, 3
    %v3262 = vand.u32 %v3006, 3
    %v3263 = vand.u32 %v3007, 3
    %v3264 = vand.u32 %v3008, 3
    %v3265 = vand.u32 %v3009, 3
    %v3266 = vand.u32 %v3010, 3
    %v3267 = vand.u32 %v3011, 3
    %v3268 = vand.u32 %v3012, 3
    %v3269 = vand.u32 %v3013, 3
    %v3270 = vand.u32 %v3014, 3
    %v3271 = vand.u32 %v3015, 3
    %v3272 = vand.u32 %v3016, 3
    %v3273 = vand.u32 %v3017, 3
    %v3274 = vand.u32 %v3018, 3
    %v3275 = vand.u32 %v3019, 3
    %v3276 = vand.u32 %v3020, 3
    %v3277 = vand.u32 %v3021, 3
    %v3278 = vand.u32 %v3022, 3
    %v3279 = vand.u32 %v3023, 3
    %v3280 = vand.u32 %v3024, 3
    %v3281 = vand.u32 %v3025, 3
    %v3282 = vand.u32 %v3026, 3
    %v3283 = vand.u32 %v3027, 3
    %v3284 = vand.u32 %v3028, 3
    %v3285 = vand.u32 %v3029, 3
    %v3286 = vand.u32 %v3030, 3
    %v3287 = vand.u32 %v3031, 3
    %v3288 = vand.u32 %v3032, 3
    %v3289 = vand.u32 %v3033, 3
    %v3290 = vand.u32 %v3034, 3
    %v3291 = vand.u32 %v3035, 3
    %v3292 = vand.u32 %v3036, 3
    %v3293 = vand.u32 %v3037, 3
    %v3294 = vand.u32 %v3038, 3
    %v3295 = vand.u32 %v3039, 3
    %v3296 = vand.u32 %v3040, 3
    %v3297 = vand.u32 %v3041, 3
    %v3298 = vand.u32 %v3042, 3
    %v3299 = vand.u32 %v3043, 3
    %v3300 = vand.u32 %v3044, 3
    %v3301 = vand.u32 %v3045, 3
    %v3302 = vand.u32 %v3046, 3
    %v3303 = vand.u32 %v3047, 3
    %v3304 = vand.u32 %v3048, 3
    %v3305 = vand.u32 %v3049, 3
    %v3306 = vand.u32 %v3050, 3
    %v3307 = vand.u32 %v3051, 3
    %v3308 = vand.u32 %v3052, 3
    %v3309 = vand.u32 %v3053, 3
    %v3310 = vand.u32 %v3054, 3
    %v3311 = vand.u32 %v3055, 3
    %v3312 = vand.u32 %v3056, 3
    %v3313 = vand.u32 %v3057, 3
    %v3314 = vand.u32 %v3058, 3
    %v3315 = vand.u32 %v3059, 3
    %v3316 = vand.u32 %v3060, 3
    %v3317 = vand.u32 %v3061, 3
    %v3318 = vand.u32 %v3062, 3
    %v3319 = vand.u32 %v3063, 3
    %v3320 = vand.u32 %v3064, 3
    %v3321 = vand.u32 %v3065, 3
    %v3322 = vand.u32 %v3066, 3
    %v3323 = vand.u32 %v3067, 3
    %v3324 = vand.u32 %v3068, 3
    %v3325 = vand.u32 %v3069, 3
    %v3326 = vand.u32 %v3070, 3
    %v3327 = vand.u32 %v3071, 3
    %v3328 = vand.u32 %v3072, 3
    %v3329 = vand.u32 %v3073, 3
    %v3330 = vand.u32 %v3074, 3
    %v3331 = vand.u32 %v3075, 3
    %v3332 = vand.u32 %v3076, 3
    %v3333 = vand.u32 %v3077, 3
    %v3334 = vand.u32 %v3078, 3
    %v3335 = vand.u32 %v3079, 3
    %v3336 = vand.u32 %v3080, 3
    %v3337 = vand.u32 %v3081, 3
    %v3338 = vand.u32 %v3082, 3
    %v3339 = vand.u32 %v3083, 3
    %v3340 = vand.u32 %v3084, 3
    %v3341 = vand.u32 %v3085, 3
    %v3342 = vand.u32 %v3086, 3
    %v3343 = vand.u32 %v3087, 3
    %v3344 = vand.u32 %v3088, 3
    %v3345 = vand.u32 %v3089, 3
    %v3346 = vand.u32 %v3090, 3
    %v3347 = vpack.c.b16 %v3092, %v3091
    %v3348 = vpack.c.b16 %v3094, %v3093
    %v3349 = vpack.c.b8 %v3348, %v3347
    %v3350 = vpack.c.b16 %v3096, %v3095
    %v3351 = vpack.c.b16 %v3098, %v3097
    %v3352 = vpack.c.b8 %v3351, %v3350
    %v3353 = vpack.c.b16 %v3100, %v3099
    %v3354 = vpack.c.b16 %v3102, %v3101
    %v3355 = vpack.c.b8 %v3354, %v3353
    %v3356 = vpack.c.b16 %v3104, %v3103
    %v3357 = vpack.c.b16 %v3106, %v3105
    %v3358 = vpack.c.b8 %v3357, %v3356
    %v3359 = vpack.c.b16 %v3108, %v3107
    %v3360 = vpack.c.b16 %v3110, %v3109
    %v3361 = vpack.c.b8 %v3360, %v3359
    %v3362 = vpack.c.b16 %v3112, %v3111
    %v3363 = vpack.c.b16 %v3114, %v3113
    %v3364 = vpack.c.b8 %v3363, %v3362
    %v3365 = vpack.c.b16 %v3116, %v3115
    %v3366 = vpack.c.b16 %v3118, %v3117
    %v3367 = vpack.c.b8 %v3366, %v3365
    %v3368 = vpack.c.b16 %v3120, %v3119
    %v3369 = vpack.c.b16 %v3122, %v3121
    %v3370 = vpack.c.b8 %v3369, %v3368
    %v3371 = vpack.c.b16 %v3124, %v3123
    %v3372 = vpack.c.b16 %v3126, %v3125
    %v3373 = vpack.c.b8 %v3372, %v3371
    %v3374 = vpack.c.b16 %v3128, %v3127
    %v3375 = vpack.c.b16 %v3130, %v3129
    %v3376 = vpack.c.b8 %v3375, %v3374
    %v3377 = vpack.c.b16 %v3132, %v3131
    %v3378 = vpack.c.b16 %v3134, %v3133
    %v3379 = vpack.c.b8 %v3378, %v3377
    %v3380 = vpack.c.b16 %v3136, %v3135
    %v3381 = vpack.c.b16 %v3138, %v3137
    %v3382 = vpack.c.b8 %v3381, %v3380
    %v3383 = vpack.c.b16 %v3140, %v3139
    %v3384 = vpack.c.b16 %v3142, %v3141
    %v3385 = vpack.c.b8 %v3384, %v3383
    %v3386 = vpack.c.b16 %v3144, %v3143
    %v3387 = vpack.c.b16 %v3146, %v3145
    %v3388 = vpack.c.b8 %v3387, %v3386
    %v3389 = vpack.c.b16 %v3148, %v3147
    %v3390 = vpack.c.b16 %v3150, %v3149
    %v3391 = vpack.c.b8 %v3390, %v3389
    %v3392 = vpack.c.b16 %v3152, %v3151
    %v3393 = vpack.c.b16 %v3154, %v3153
    %v3394 = vpack.c.b8 %v3393, %v3392
    %v3395 = vpack.c.b16 %v3156, %v3155
    %v3396 = vpack.c.b16 %v3158, %v3157
    %v3397 = vpack.c.b8 %v3396, %v3395
    %v3398 = vpack.c.b16 %v3160, %v3159
    %v3399 = vpack.c.b16 %v3162, %v3161
    %v3400 = vpack.c.b8 %v3399, %v3398
    %v3401 = vpack.c.b16 %v3164, %v3163
    %v3402 = vpack.c.b16 %v3166, %v3165
    %v3403 = vpack.c.b8 %v3402, %v3401
    %v3404 = vpack.c.b16 %v3168, %v3167
    %v3405 = vpack.c.b16 %v3170, %v3169
    %v3406 = vpack.c.b8 %v3405, %v3404
    %v3407 = vpack.c.b16 %v3172, %v3171
    %v3408 = vpack.c.b16 %v3174, %v3173
    %v3409 = vpack.c.b8 %v3408, %v3407
    %v3410 = vpack.c.b16 %v3176, %v3175
    %v3411 = vpack.c.b16 %v3178, %v3177
    %v3412 = vpack.c.b8 %v3411, %v3410
    %v3413 = vpack.c.b16 %v3180, %v3179
    %v3414 = vpack.c.b16 %v3182, %v3181
    %v3415 = vpack.c.b8 %v3414, %v3413
    %v3416 = vpack.c.b16 %v3184, %v3183
    %v3417 = vpack.c.b16 %v3186, %v3185
    %v3418 = vpack.c.b8 %v3417, %v3416
    %v3419 = vpack.c.b16 %v3188, %v3187
    %v3420 = vpack.c.b16 %v3190, %v3189
    %v3421 = vpack.c.b8 %v3420, %v3419
    %v3422 = vpack.c.b16 %v3192, %v3191
    %v3423 = vpack.c.b16 %v3194, %v3193
    %v3424 = vpack.c.b8 %v3423, %v3422
    %v3425 = vpack.c.b16 %v3196, %v3195
    %v3426 = vpack.c.b16 %v3198, %v3197
    %v3427 = vpack.c.b8 %v3426, %v3425
    %v3428 = vpack.c.b16 %v3200, %v3199
    %v3429 = vpack.c.b16 %v3202, %v3201
    %v3430 = vpack.c.b8 %v3429, %v3428
    %v3431 = vpack.c.b16 %v3204, %v3203
    %v3432 = vpack.c.b16 %v3206, %v3205
    %v3433 = vpack.c.b8 %v3432, %v3431
    %v3434 = vpack.c.b16 %v3208, %v3207
    %v3435 = vpack.c.b16 %v3210, %v3209
    %v3436 = vpack.c.b8 %v3435, %v3434
    %v3437 = vpack.c.b16 %v3212, %v3211
    %v3438 = vpack.c.b16 %v3214, %v3213
    %v3439 = vpack.c.b8 %v3438, %v3437
    %v3440 = vpack.c.b16 %v3216, %v3215
    %v3441 = vpack.c.b16 %v3218, %v3217
    %v3442 = vpack.c.b8 %v3441, %v3440
    %v3443 = vpack.c.b16 %v3220, %v3219
    %v3444 = vpack.c.b16 %v3222, %v3221
    %v3445 = vpack.c.b8 %v3444, %v3443
    %v3446 = vpack.c.b16 %v3224, %v3223
    %v3447 = vpack.c.b16 %v3226, %v3225
    %v3448 = vpack.c.b8 %v3447, %v3446
    %v3449 = vpack.c.b16 %v3228, %v3227
    %v3450 = vpack.c.b16 %v3230, %v3229
    %v3451 = vpack.c.b8 %v3450, %v3449
    %v3452 = vpack.c.b16 %v3232, %v3231
    %v3453 = vpack.c.b16 %v3234, %v3233
    %v3454 = vpack.c.b8 %v3453, %v3452
    %v3455 = vpack.c.b16 %v3236, %v3235
    %v3456 = vpack.c.b16 %v3238, %v3237
    %v3457 = vpack.c.b8 %v3456, %v3455
    %v3458 = vpack.c.b16 %v3240, %v3239
    %v3459 = vpack.c.b16 %v3242, %v3241
    %v3460 = vpack.c.b8 %v3459, %v3458
    %v3461 = vpack.c.b16 %v3244, %v3243
    %v3462 = vpack.c.b16 %v3246, %v3245
    %v3463 = vpack.c.b8 %v3462, %v3461
    %v3464 = vpack.c.b16 %v3248, %v3247
    %v3465 = vpack.c.b16 %v3250, %v3249
    %v3466 = vpack.c.b8 %v3465, %v3464
    %v3467 = vpack.c.b16 %v3252, %v3251
    %v3468 = vpack.c.b16 %v3254, %v3253
    %v3469 = vpack.c.b8 %v3468, %v3467
    %v3470 = vpack.c.b16 %v3256, %v3255
    %v3471 = vpack.c.b16 %v3258, %v3257
    %v3472 = vpack.c.b8 %v3471, %v3470
    %v3473 = vpack.c.b16 %v3260, %v3259
    %v3474 = vpack.c.b16 %v3262, %v3261
    %v3475 = vpack.c.b8 %v3474, %v3473
    %v3476 = vpack.c.b16 %v3264, %v3263
    %v3477 = vpack.c.b16 %v3266, %v3265
    %v3478 = vpack.c.b8 %v3477, %v3476
    %v3479 = vpack.c.b16 %v3268, %v3267
    %v3480 = vpack.c.b16 %v3270, %v3269
    %v3481 = vpack.c.b8 %v3480, %v3479
    %v3482 = vpack.c.b16 %v3272, %v3271
    %v3483 = vpack.c.b16 %v3274, %v3273
    %v3484 = vpack.c.b8 %v3483, %v3482
    %v3485 = vpack.c.b16 %v3276, %v3275
    %v3486 = vpack.c.b16 %v3278, %v3277
    %v3487 = vpack.c.b8 %v3486, %v3485
    %v3488 = vpack.c.b16 %v3280, %v3279
    %v3489 = vpack.c.b16 %v3282, %v3281
    %v3490 = vpack.c.b8 %v3489, %v3488
    %v3491 = vpack.c.b16 %v3284, %v3283
    %v3492 = vpack.c.b16 %v3286, %v3285
    %v3493 = vpack.c.b8 %v3492, %v3491
    %v3494 = vpack.c.b16 %v3288, %v3287
    %v3495 = vpack.c.b16 %v3290, %v3289
    %v3496 = vpack.c.b8 %v3495, %v3494
    %v3497 = vpack.c.b16 %v3292, %v3291
    %v3498 = vpack.c.b16 %v3294, %v3293
    %v3499 = vpack.c.b8 %v3498, %v3497
    %v3500 = vpack.c.b16 %v3296, %v3295
    %v3501 = vpack.c.b16 %v3298, %v3297
    %v3502 = vpack.c.b8 %v3501, %v3500
    %v3503 = vpack.c.b16 %v3300, %v3299
    %v3504 = vpack.c.b16 %v3302, %v3301
    %v3505 = vpack.c.b8 %v3504, %v3503
    %v3506 = vpack.c.b16 %v3304, %v3303
    %v3507 = vpack.c.b16 %v3306, %v3305
    %v3508 = vpack.c.b8 %v3507, %v3506
    %v3509 = vpack.c.b16 %v3308, %v3307
    %v3510 = vpack.c.b16 %v3310, %v3309
    %v3511 = vpack.c.b8 %v3510, %v3509
    %v3512 = vpack.c.b16 %v3312, %v3311
    %v3513 = vpack.c.b16 %v3314, %v3313
    %v3514 = vpack.c.b8 %v3513, %v3512
    %v3515 = vpack.c.b16 %v3316, %v3315
    %v3516 = vpack.c.b16 %v3318, %v3317
    %v3517 = vpack.c.b8 %v3516, %v3515
    %v3518 = vpack.c.b16 %v3320, %v3319
    %v3519 = vpack.c.b16 %v3322, %v3321
    %v3520 = vpack.c.b8 %v3519, %v3518
    %v3521 = vpack.c.b16 %v3324, %v3323
    %v3522 = vpack.c.b16 %v3326, %v3325
    %v3523 = vpack.c.b8 %v3522, %v3521
    %v3524 = vpack.c.b16 %v3328, %v3327
    %v3525 = vpack.c.b16 %v3330, %v3329
    %v3526 = vpack.c.b8 %v3525, %v3524
    %v3527 = vpack.c.b16 %v3332, %v3331
    %v3528 = vpack.c.b16 %v3334, %v3333
    %v3529 = vpack.c.b8 %v3528, %v3527
    %v3530 = vpack.c.b16 %v3336, %v3335
    %v3531 = vpack.c.b16 %v3338, %v3337
    %v3532 = vpack.c.b8 %v3531, %v3530
    %v3533 = vpack.c.b16 %v3340, %v3339
    %v3534 = vpack.c.b16 %v3342, %v3341
    %v3535 = vpack.c.b8 %v3534, %v3533
    %v3536 = vpack.c.b16 %v3344, %v3343
    %v3537 = vpack.c.b16 %v3346, %v3345
    %v3538 = vpack.c.b8 %v3537, %v3536
    %3539 = vst [vmem:[#allocation3] sm:$0xff] %v3349
    %3540 = vst [vmem:[#allocation3 + $0x8] sm:$0xff] %v3352
    %3541 = vst [vmem:[#allocation3 + $0x10] sm:$0xff] %v3355
    %3542 = vst [vmem:[#allocation3 + $0x18] sm:$0xff] %v3358
    %3543 = vst [vmem:[#allocation3 + $0x20] sm:$0xff] %v3361
    %3544 = vst [vmem:[#allocation3 + $0x28] sm:$0xff] %v3364
    %3545 = vst [vmem:[#allocation3 + $0x30] sm:$0xff] %v3367
    %3546 = vst [vmem:[#allocation3 + $0x38] sm:$0xff] %v3370
    %3547 = vst [vmem:[#allocation3 + $0x40] sm:$0xff] %v3373
    %3548 = vst [vmem:[#allocation3 + $0x48] sm:$0xff] %v3376
    %3549 = vst [vmem:[#allocation3 + $0x50] sm:$0xff] %v3379
    %3550 = vst [vmem:[#allocation3 + $0x58] sm:$0xff] %v3382
    %3551 = vst [vmem:[#allocation3 + $0x60] sm:$0xff] %v3385
    %3552 = vst [vmem:[#allocation3 + $0x68] sm:$0xff] %v3388
    %3553 = vst [vmem:[#allocation3 + $0x70] sm:$0xff] %v3391
    %3554 = vst [vmem:[#allocation3 + $0x78] sm:$0xff] %v3394
    %3555 = vst [vmem:[#allocation3 + $0x80] sm:$0xff] %v3397
    %3556 = vst [vmem:[#allocation3 + $0x88] sm:$0xff] %v3400
    %3557 = vst [vmem:[#allocation3 + $0x90] sm:$0xff] %v3403
    %3558 = vst [vmem:[#allocation3 + $0x98] sm:$0xff] %v3406
    %3559 = vst [vmem:[#allocation3 + $0xa0] sm:$0xff] %v3409
    %3560 = vst [vmem:[#allocation3 + $0xa8] sm:$0xff] %v3412
    %3561 = vst [vmem:[#allocation3 + $0xb0] sm:$0xff] %v3415
    %3562 = vst [vmem:[#allocation3 + $0xb8] sm:$0xff] %v3418
    %3563 = vst [vmem:[#allocation3 + $0xc0] sm:$0xff] %v3421
    %3564 = vst [vmem:[#allocation3 + $0xc8] sm:$0xff] %v3424
    %3565 = vst [vmem:[#allocation3 + $0xd0] sm:$0xff] %v3427
    %3566 = vst [vmem:[#allocation3 + $0xd8] sm:$0xff] %v3430
    %3567 = vst [vmem:[#allocation3 + $0xe0] sm:$0xff] %v3433
    %3568 = vst [vmem:[#allocation3 + $0xe8] sm:$0xff] %v3436
    %3569 = vst [vmem:[#allocation3 + $0xf0] sm:$0xff] %v3439
    %3570 = vst [vmem:[#allocation3 + $0xf8] sm:$0xff] %v3442
    %3571 = vst [vmem:[#allocation3 + $0x100] sm:$0xff] %v3445
    %3572 = vst [vmem:[#allocation3 + $0x108] sm:$0xff] %v3448
    %3573 = vst [vmem:[#allocation3 + $0x110] sm:$0xff] %v3451
    %3574 = vst [vmem:[#allocation3 + $0x118] sm:$0xff] %v3454
    %3575 = vst [vmem:[#allocation3 + $0x120] sm:$0xff] %v3457
    %3576 = vst [vmem:[#allocation3 + $0x128] sm:$0xff] %v3460
    %3577 = vst [vmem:[#allocation3 + $0x130] sm:$0xff] %v3463
    %3578 = vst [vmem:[#allocation3 + $0x138] sm:$0xff] %v3466
    %3579 = vst [vmem:[#allocation3 + $0x140] sm:$0xff] %v3469
    %3580 = vst [vmem:[#allocation3 + $0x148] sm:$0xff] %v3472
    %3581 = vst [vmem:[#allocation3 + $0x150] sm:$0xff] %v3475
    %3582 = vst [vmem:[#allocation3 + $0x158] sm:$0xff] %v3478
    %3583 = vst [vmem:[#allocation3 + $0x160] sm:$0xff] %v3481
    %3584 = vst [vmem:[#allocation3 + $0x168] sm:$0xff] %v3484
    %3585 = vst [vmem:[#allocation3 + $0x170] sm:$0xff] %v3487
    %3586 = vst [vmem:[#allocation3 + $0x178] sm:$0xff] %v3490
    %3587 = vst [vmem:[#allocation3 + $0x180] sm:$0xff] %v3493
    %3588 = vst [vmem:[#allocation3 + $0x188] sm:$0xff] %v3496
    %3589 = vst [vmem:[#allocation3 + $0x190] sm:$0xff] %v3499
    %3590 = vst [vmem:[#allocation3 + $0x198] sm:$0xff] %v3502
    %3591 = vst [vmem:[#allocation3 + $0x1a0] sm:$0xff] %v3505
    %3592 = vst [vmem:[#allocation3 + $0x1a8] sm:$0xff] %v3508
    %3593 = vst [vmem:[#allocation3 + $0x1b0] sm:$0xff] %v3511
    %3594 = vst [vmem:[#allocation3 + $0x1b8] sm:$0xff] %v3514
    %3595 = vst [vmem:[#allocation3 + $0x1c0] sm:$0xff] %v3517
    %3596 = vst [vmem:[#allocation3 + $0x1c8] sm:$0xff] %v3520
    %3597 = vst [vmem:[#allocation3 + $0x1d0] sm:$0xff] %v3523
    %3598 = vst [vmem:[#allocation3 + $0x1d8] sm:$0xff] %v3526
    %3599 = vst [vmem:[#allocation3 + $0x1e0] sm:$0xff] %v3529
    %3600 = vst [vmem:[#allocation3 + $0x1e8] sm:$0xff] %v3532
    %3601 = vst [vmem:[#allocation3 + $0x1f0] sm:$0xff] %v3535
    %3602 = vst [vmem:[#allocation3 + $0x1f8] sm:$0xff] %v3538
    %s3603 = sld [smem:[#allocation2]]
    %s3604 = sadd.s32 %s3603, 1
    %s3605 = scalar_lea.smem [#allocation6], 0
    %3606 = sst [smem:[%s3605]] %s3604
    // Predicated region
    $region6: #{tpu_custom_call.1} parent=1 // pred_check
      _
    $region7: #{tpu_custom_call.1} parent=1 // pred_check_branch
      %3608 = sbr.rel (0) target = $region9
    $region8: #{tpu_custom_call.1} parent=1 // pred_region
      %s3610 = ssub.s32 8192, 8192
      %3611 = vsyncadd [#allocation4], %s3610
      %s3612 = sshll.u32 [#allocation3], 4
      %s3613 = int_to_ptr.vmem [resolvable:$true] %s3612
      %3618 = dma.vmem_to_hbm [thread:$0]  %s3613, 8192, %s1, [#allocation4], 128, 128, 8
    $region9: #{tpu_custom_call.1} parent=1 // pred_fallthru
      _
    // Predicated region
    $region10: #{tpu_custom_call.1} parent=1 // pred_check
      _
    $region11: #{tpu_custom_call.1} parent=1 // pred_check_branch
      %3620 = sbr.rel (0) target = $region13
    $region12: #{tpu_custom_call.1} parent=1 // pred_region
      %s3622 = ssub.s32 16, 16
      %3623 = vsyncadd [#allocation5], %s3622
      %3626 = dma.smem_to_hbm [#allocation6], 16, %s2, [#allocation5]
    $region13: #{tpu_custom_call.1} parent=1 // pred_fallthru
      _
    // Predicated region
    $region14: #{tpu_custom_call.1} parent=1 // pred_check
      _
    $region15: #{tpu_custom_call.1} parent=1 // pred_check_branch
      %3628 = sbr.rel (0) target = $region17
    $region16: #{tpu_custom_call.1} parent=1 // pred_region
      %3629 = dma.done [#allocation4], 8192
    $region17: #{tpu_custom_call.1} parent=1 // pred_fallthru
      _
    // Predicated region
    $region18: #{tpu_custom_call.1} parent=1 // pred_check
      _
    $region19: #{tpu_custom_call.1} parent=1 // pred_check_branch
      %3631 = sbr.rel (0) target = $region21
    $region20: #{tpu_custom_call.1} parent=1 // pred_region
      %3632 = dma.done [#allocation5], 16
    $region21: #{tpu_custom_call.1} parent=1 // pred_fallthru
      _
    %3633 = sfence
    %3634 = vsyncpa [#allocation4], 1
    %3635 = vsyncpa [#allocation5], 1

</llo_original>
